<compile_context>
chip_gen: v6e
topology: v6e:2x2x1
jax: 0.10.0
libtpu: 0.0.40
codegen_flags: <defaults>
</compile_context>

<pallas_src>
import functools

import numpy as np
import jax
import jax.numpy as jnp
from jax.experimental import pallas as pl
from jax.experimental.pallas import tpu as pltpu


def _round_up(x, m):
    return ((x + m - 1) // m) * m


def _decoder_step_kernel(
    dec_len_ref,                 # (TB, 1)        int32  decode lengths (sorted desc)
    att1_ref,                    # (TB, Pp, A)    precomputed enc attention proj
    enc_ref,                     # (TB, Pp, E)    encoder features (padded pixels = 0)
    emb_ref,                     # (1, TB, Em)    embeddings at step t (time-major)
    w_full_ref, b_full_ref,      # (1, A), (1, 1)
    w_h_ref, b_h_ref,            # (D, A+E+4D), (1, A+E+4D)   [dec_att | f_beta | W_hh]
    w_x_ref, b_x_ref,            # (Em+E, 4D), (1, 4D)        [W_ih_emb ; W_ih_enc]
    w_fc_ref, b_fc_ref,          # (D, Vp), (1, Vp)
    w_init_ref, b_init_ref,      # (E, 2D), (1, 2D)           [init_h | init_c]
    preds_ref,                   # out (1, TB, Vp)  time slice t
    alphas_ref,                  # out (1, TB, Pp)  time slice t
    h_scr, c_scr,                # VMEM scratch (TB, D) f32, carried over t
    *, num_pixels,               # real (unpadded) pixel count
):
    t = pl.program_id(1)
    A = w_full_ref.shape[1]
    E = enc_ref.shape[2]
    D = h_scr.shape[1]

    def mm(x, w_ref):
        # feed the MXU in the weight's storage dtype (bf16 or f32), accumulate in f32
        w = w_ref[...]
        return jnp.dot(x.astype(w.dtype), w, preferred_element_type=jnp.float32)

    # ---------- init_hidden_state (per batch tile, once at t == 0) ----------
    @pl.when(t == 0)
    def _():
        mean_enc = jnp.sum(enc_ref[...].astype(jnp.float32), axis=1) * (1.0 / num_pixels)
        hc0 = mm(mean_enc, w_init_ref) + b_init_ref[...]        # (TB, 2D)
        h_scr[...] = hc0[:, :D]
        c_scr[...] = hc0[:, D:]

    h = h_scr[...]                                              # (TB, D)
    c_prev = c_scr[...]

    # ---------- fused hidden-state projection: [att2 | gate_pre | hh] ----------
    h_proj = mm(h, w_h_ref) + b_h_ref[...]                      # (TB, A+E+4D)
    att2 = h_proj[:, :A]
    gate_pre = h_proj[:, A:A + E]
    hh = h_proj[:, A + E:]

    # ---------- attention (att1 hoisted out of the time loop) ----------
    att = jnp.maximum(att1_ref[...].astype(jnp.float32) + att2[:, None, :], 0.0)
    scores = jnp.sum(att * w_full_ref[...][None], axis=2) + b_full_ref[...]   # (TB, Pp)
    pix = jax.lax.broadcasted_iota(jnp.int32, scores.shape, 1)
    scores = jnp.where(pix < num_pixels, scores, -jnp.inf)      # mask padded pixels
    m = jnp.max(scores, axis=1, keepdims=True)
    ex = jnp.exp(scores - m)
    alpha = ex * pl.reciprocal(jnp.sum(ex, axis=1, keepdims=True), approx=True)

    # context vector: VPU weighted sum over pixels (no M=1 matvec on the MXU)
    awe = jnp.sum(alpha[:, :, None] * enc_ref[...].astype(jnp.float32), axis=1)  # (TB, E)
    awe = jax.nn.sigmoid(gate_pre) * awe                        # f_beta gating

    # ---------- LSTMCell, fused input matmul (PyTorch gate order: i, f, g, o) -------
    x = jnp.concatenate([emb_ref[0], awe], axis=1)              # (TB, Em+E) f32
    gates = mm(x, w_x_ref) + b_x_ref[...] + hh                  # (TB, 4D)
    i_g = jax.nn.sigmoid(gates[:, 0 * D:1 * D])
    f_g = jax.nn.sigmoid(gates[:, 1 * D:2 * D])
    g_g = jnp.tanh(gates[:, 2 * D:3 * D])
    o_g = jax.nn.sigmoid(gates[:, 3 * D:4 * D])
    c_new = f_g * c_prev + i_g * g_g
    h_new = o_g * jnp.tanh(c_new)

    # ---------- fc head ----------
    # TODO(synk): nn.Dropout is implemented as identity (inference semantics).
    preds = mm(h_new, w_fc_ref) + b_fc_ref[...]                 # (TB, Vp)

    # ---------- mask rows whose caption is already finished (batch_size_t) ----------
    active = dec_len_ref[...] > t                               # (TB, 1)
    h_scr[...] = jnp.where(active, h_new, h)
    c_scr[...] = jnp.where(active, c_new, c_prev)
    preds_ref[...] = jnp.where(active, preds, 0.0)[None]
    alphas_ref[...] = jnp.where(active, alpha, 0.0)[None]


def init_params(key, attention_dim, embed_dim, decoder_dim, vocab_size, encoder_dim):
    A, Em, D, V, E = attention_dim, embed_dim, decoder_dim, vocab_size, encoder_dim
    ks = jax.random.split(key, 20)
    u = lambda k, shape, s: jax.random.uniform(k, shape, jnp.float32, -s, s)
    sE, sD, sA = 1.0 / np.sqrt(E), 1.0 / np.sqrt(D), 1.0 / np.sqrt(A)
    return {
        'embedding': u(ks[0], (V, Em), 0.1),
        'w_enc_att': u(ks[1], (E, A), sE), 'b_enc_att': u(ks[2], (1, A), sE),
        'w_dec_att': u(ks[3], (D, A), sD), 'b_dec_att': u(ks[4], (1, A), sD),
        'w_full':    u(ks[5], (1, A), sA), 'b_full':    u(ks[6], (1, 1), sA),
        'w_fbeta':   u(ks[7], (D, E), sD), 'b_fbeta':   u(ks[8], (1, E), sD),
        'w_ih_emb':  u(ks[9], (Em, 4 * D), sD),
        'w_ih_enc':  u(ks[10], (E, 4 * D), sD),
        'b_ih':      u(ks[11], (1, 4 * D), sD),
        'w_hh':      u(ks[12], (D, 4 * D), sD),
        'b_hh':      u(ks[13], (1, 4 * D), sD),
        'w_fc':      u(ks[14], (D, V), 0.1),
        'b_fc':      jnp.zeros((1, V), jnp.float32),
        'w_init_h':  u(ks[15], (E, D), sE), 'b_init_h': u(ks[16], (1, D), sE),
        'w_init_c':  u(ks[17], (E, D), sE), 'b_init_c': u(ks[18], (1, D), sE),
    }


def decoder_forward(params, encoder_out, encoded_captions, caption_lengths,
                    *, matmul_dtype=jnp.bfloat16, batch_tile=None):
    """Pallas version of DecoderWithAttention.forward.

    Returns (predictions, caps_sorted, decode_lengths, alphas, sort_ind).
    predictions/alphas have L-1 timesteps (L = max caption length); steps beyond a
    row's decode length (and beyond max(decode_lengths)) are exactly zero.  This
    avoids a host sync / recompile per distinct max decode length.
    """
    B = encoder_out.shape[0]
    E = encoder_out.shape[-1]
    enc = encoder_out.reshape(B, -1, E).astype(jnp.float32)          # (B, P, E)
    P = enc.shape[1]
    L = encoded_captions.shape[1]
    T = L - 1                                                        # static step count

    cap_len = caption_lengths.reshape(B)
    sort_ind = jnp.argsort(-cap_len)                                 # stable, descending
    cap_sorted = cap_len[sort_ind]
    enc = enc[sort_ind]
    caps_sorted = encoded_captions[sort_ind]
    decode_lengths = cap_sorted - 1

    embeddings = params['embedding'][caps_sorted].astype(jnp.float32)  # (B, L, Em) glue gather

    Em = embeddings.shape[-1]
    A = params['w_enc_att'].shape[1]
    D = params['w_hh'].shape[0]
    V = params['w_fc'].shape[1]

    # ---------------- padding for TPU-friendly layouts ----------------
    if batch_tile is None:
        B_pad = _round_up(B, 8)
        batch_tile = B_pad
    else:
        assert batch_tile % 8 == 0, "batch_tile must be a multiple of 8 (sublane)"
        B_pad = _round_up(B, batch_tile)
    TB = batch_tile
    nb = B_pad // TB
    P_pad = _round_up(P, 128)          # lane-dense alphas stores
    V_pad = _round_up(V, 128)          # lane-dense prediction stores

    enc_pad = jnp.zeros((B_pad, P_pad, E), jnp.float32).at[:B, :P, :].set(enc)
    dec_len_pad = jnp.zeros((B_pad, 1), jnp.int32).at[:B, 0].set(
        decode_lengths.astype(jnp.int32))
    emb_tmaj = jnp.zeros((T, B_pad, Em), jnp.float32).at[:, :B, :].set(
        jnp.transpose(embeddings[:, :T, :], (1, 0, 2)))

    # ---- hoist the time-invariant encoder attention projection (largest matmul) ----
    att1_pre = (jnp.einsum('bpe,ea->bpa', enc_pad,
                           params['w_enc_att'].astype(jnp.float32),
                           precision=jax.lax.Precision.HIGHEST)
                + params['b_enc_att'].astype(jnp.float32))           # (B_pad, P_pad, A)

    # ---- fuse per-step small weights (wider MXU N, fewer pushes/drains) ----
    w_h_fused = jnp.concatenate(
        [params['w_dec_att'], params['w_fbeta'], params['w_hh']], axis=1)   # (D, A+E+4D)
    b_h_fused = jnp.concatenate(
        [params['b_dec_att'], params['b_fbeta'], params['b_hh']], axis=1)
    w_x_fused = jnp.concatenate([params['w_ih_emb'], params['w_ih_enc']], axis=0)  # (Em+E, 4D)
    b_x = params['b_ih']
    w_init = jnp.concatenate([params['w_init_h'], params['w_init_c']], axis=1)     # (E, 2D)
    b_init = jnp.concatenate([params['b_init_h'], params['b_init_c']], axis=1)
    w_fc = jnp.pad(params['w_fc'], ((0, 0), (0, V_pad - V)))
    b_fc = jnp.pad(params['b_fc'], ((0, 0), (0, V_pad - V)))

    big = lambda x: x.astype(matmul_dtype)          # big MXU operands
    f32 = lambda x: x.astype(jnp.float32)           # biases / small vectors stay f32

    inputs = [
        dec_len_pad,
        big(att1_pre),
        big(enc_pad),
        emb_tmaj,
        f32(params['w_full']), f32(params['b_full']),
        big(w_h_fused), f32(b_h_fused),
        big(w_x_fused), f32(b_x),
        big(w_fc), f32(b_fc),
        big(w_init), f32(b_init),
    ]

    def const(shape):
        return pl.BlockSpec(shape, lambda b, t, _n=len(shape): (0,) * _n)

    in_specs = [
        pl.BlockSpec((TB, 1), lambda b, t: (b, 0)),                  # decode lengths
        pl.BlockSpec((TB, P_pad, A), lambda b, t: (b, 0, 0)),        # hoisted att1
        pl.BlockSpec((TB, P_pad, E), lambda b, t: (b, 0, 0)),        # encoder features
        pl.BlockSpec((1, TB, Em), lambda b, t: (t, b, 0)),           # embedding slice t
    ] + [const(x.shape) for x in inputs[4:]]                         # weights (constant)

    out_specs = [
        pl.BlockSpec((1, TB, V_pad), lambda b, t: (t, b, 0)),
        pl.BlockSpec((1, TB, P_pad), lambda b, t: (t, b, 0)),
    ]

    kernel = functools.partial(_decoder_step_kernel, num_pixels=P)

    preds_tmaj, alphas_tmaj = pl.pallas_call(
        kernel,
        out_shape=(jax.ShapeDtypeStruct((T, B_pad, V_pad), jnp.float32),
                   jax.ShapeDtypeStruct((T, B_pad, P_pad), jnp.float32)),
        grid_spec=pltpu.PrefetchScalarGridSpec(
            num_scalar_prefetch=0,
            grid=(nb, T),                                            # batch tiles x time
            in_specs=in_specs,
            out_specs=out_specs,
            scratch_shapes=[pltpu.VMEM((TB, D), jnp.float32),        # h carry
                            pltpu.VMEM((TB, D), jnp.float32)],       # c carry
        ),
        compiler_params=pltpu.CompilerParams(
            dimension_semantics=("parallel", "arbitrary"),
            vmem_limit_bytes=32 * 1024 * 1024,
        ),
    )(*inputs)

    predictions = jnp.transpose(preds_tmaj, (1, 0, 2))[:B, :, :V]    # (B, T, V)
    alphas = jnp.transpose(alphas_tmaj, (1, 0, 2))[:B, :, :P]        # (B, T, P)
    return predictions, caps_sorted, decode_lengths, alphas, sort_ind


# -------------------- pure numpy reference (float64, unfused weights) --------------------
def reference_forward(params, encoder_out, encoded_captions, caption_lengths):
    p = {k: np.asarray(v, np.float64) for k, v in params.items()}
    sig = lambda x: 1.0 / (1.0 + np.exp(-x))
    enc_out = np.asarray(encoder_out, np.float64)
    caps = np.asarray(encoded_captions)
    cap_len = np.asarray(caption_lengths).reshape(-1)

    B, E = enc_out.shape[0], enc_out.shape[-1]
    enc = enc_out.reshape(B, -1, E)
    P = enc.shape[1]
    sort_ind = np.argsort(-cap_len, kind='stable')
    cap_sorted = cap_len[sort_ind]
    enc = enc[sort_ind]
    caps_sorted = caps[sort_ind]
    emb = p['embedding'][caps_sorted]
    dec_len = cap_sorted - 1
    T = int(dec_len.max())
    V = p['w_fc'].shape[1]
    D = p['w_hh'].shape[0]

    mean_enc = enc.mean(axis=1)
    h = mean_enc @ p['w_init_h'] + p['b_init_h']
    c = mean_enc @ p['w_init_c'] + p['b_init_c']

    predictions = np.zeros((B, T, V), np.float64)
    alphas = np.zeros((B, T, P), np.float64)
    for t in range(T):
        bt = int((dec_len > t).sum())
        enc_t, h_t, c_t = enc[:bt], h[:bt], c[:bt]
        att1 = enc_t @ p['w_enc_att'] + p['b_enc_att']
        att2 = h_t @ p['w_dec_att'] + p['b_dec_att']
        att = np.maximum(att1 + att2[:, None, :], 0.0)
        scores = np.sum(att * p['w_full'][None], axis=2) + p['b_full'][0, 0]
        sm = scores - scores.max(axis=1, keepdims=True)
        ex = np.exp(sm)
        alpha = ex / ex.sum(axis=1, keepdims=True)
        awe = (enc_t * alpha[:, :, None]).sum(axis=1)
        gate = sig(h_t @ p['w_fbeta'] + p['b_fbeta'])
        awe = gate * awe
        emb_t = emb[:bt, t, :]
        gates = (emb_t @ p['w_ih_emb'] + awe @ p['w_ih_enc'] + p['b_ih']
                 + h_t @ p['w_hh'] + p['b_hh'])
        i_g, f_g = sig(gates[:, :D]), sig(gates[:, D:2 * D])
        g_g, o_g = np.tanh(gates[:, 2 * D:3 * D]), sig(gates[:, 3 * D:])
        c_new = f_g * c_t + i_g * g_g
        h_new = o_g * np.tanh(c_new)
        preds = h_new @ p['w_fc'] + p['b_fc']
        predictions[:bt, t, :] = preds
        alphas[:bt, t, :] = alpha
        h, c = h_new, c_new
    return predictions, alphas


if __name__ == "__main__":
    # small shapes consistent with the module
    B, enc_size, E = 4, 4, 32          # batch, enc_image_size, encoder_dim
    A, Em, D, V = 32, 32, 32, 48       # attention_dim, embed_dim, decoder_dim, vocab
    Lmax = 8                           # max caption length

    key = jax.random.PRNGKey(0)
    kp, ke, kc, kl = jax.random.split(key, 4)
    params = init_params(kp, A, Em, D, V, E)

    encoder_out = jax.random.normal(ke, (B, enc_size, enc_size, E), jnp.float32)
    encoded_captions = jax.random.randint(kc, (B, Lmax), 0, V)
    caption_lengths = jax.random.randint(kl, (B, 1), 3, Lmax + 1)

    ref_preds, ref_alphas = reference_forward(
        params, encoder_out, encoded_captions, caption_lengths)
    Tref = ref_preds.shape[1]

    # f32 MXU path: tight check against the float64 reference.
    preds32, caps_sorted, dec_lens, alphas32, sort_ind = decoder_forward(
        params, encoder_out, encoded_captions, caption_lengths,
        matmul_dtype=jnp.float32)
    jax.block_until_ready((preds32, alphas32))

    p32 = np.asarray(preds32)
    a32 = np.asarray(alphas32)
    np.testing.assert_allclose(p32[:, :Tref], ref_preds, atol=2e-2, rtol=2e-2)
    np.testing.assert_allclose(a32[:, :Tref], ref_alphas, atol=2e-2, rtol=2e-2)
    assert not np.any(p32[:, Tref:]) and not np.any(a32[:, Tref:])

    # bf16 MXU path (default, production setting): looser tolerance.
    preds_bf, _, _, alphas_bf, _ = decoder_forward(
        params, encoder_out, encoded_captions, caption_lengths,
        matmul_dtype=jnp.bfloat16)
    jax.block_until_ready((preds_bf, alphas_bf))
    np.testing.assert_allclose(np.asarray(preds_bf)[:, :Tref], ref_preds,
                               atol=1e-1, rtol=1e-1)
    np.testing.assert_allclose(np.asarray(alphas_bf)[:, :Tref], ref_alphas,
                               atol=5e-2, rtol=1e-1)

    print("KERNEL_OK")
</pallas_src>

<mosaic_0001>
module attributes {stable_mosaic.version = 11 : i64} {
  func.func @_decoder_step_kernel(%arg0: i32, %arg1: i32, %arg2: memref<8x1xi32, #tpu.memory_space<vmem>>, %arg3: memref<8x128x32xf32, #tpu.memory_space<vmem>>, %arg4: memref<8x128x32xf32, #tpu.memory_space<vmem>>, %arg5: memref<1x8x32xf32, #tpu.memory_space<vmem>>, %arg6: memref<1x32xf32, #tpu.memory_space<vmem>>, %arg7: memref<1x1xf32, #tpu.memory_space<vmem>>, %arg8: memref<32x192xf32, #tpu.memory_space<vmem>>, %arg9: memref<1x192xf32, #tpu.memory_space<vmem>>, %arg10: memref<64x128xf32, #tpu.memory_space<vmem>>, %arg11: memref<1x128xf32, #tpu.memory_space<vmem>>, %arg12: memref<32x128xf32, #tpu.memory_space<vmem>>, %arg13: memref<1x128xf32, #tpu.memory_space<vmem>>, %arg14: memref<32x64xf32, #tpu.memory_space<vmem>>, %arg15: memref<1x64xf32, #tpu.memory_space<vmem>>, %arg16: memref<1x8x128xf32, #tpu.memory_space<vmem>>, %arg17: memref<1x8x128xf32, #tpu.memory_space<vmem>>, %arg18: memref<8x32xf32, #tpu.memory_space<vmem>>, %arg19: memref<8x32xf32, #tpu.memory_space<vmem>>) attributes {dimension_semantics = [#tpu.dimension_semantics<parallel>, #tpu.dimension_semantics<arbitrary>], iteration_bounds = array<i64: 1, 7>, scalar_prefetch = 0 : i64, scratch_operands = 2 : i64, tpu.core_type = #tpu.core_type<tc>, window_params = [{transform_indices = @transform_0, window_bounds = array<i64: 8, 1>}, {transform_indices = @transform_1, window_bounds = array<i64: 8, 128, 32>}, {transform_indices = @transform_2, window_bounds = array<i64: 8, 128, 32>}, {transform_indices = @transform_3, window_bounds = array<i64: 1, 8, 32>}, {pipeline_mode = #tpu.pipeline_mode<synchronous>, transform_indices = @transform_4, window_bounds = array<i64: 1, 32>}, {pipeline_mode = #tpu.pipeline_mode<synchronous>, transform_indices = @transform_5, window_bounds = array<i64: 1, 1>}, {pipeline_mode = #tpu.pipeline_mode<synchronous>, transform_indices = @transform_6, window_bounds = array<i64: 32, 192>}, {pipeline_mode = #tpu.pipeline_mode<synchronous>, transform_indices = @transform_7, window_bounds = array<i64: 1, 192>}, {pipeline_mode = #tpu.pipeline_mode<synchronous>, transform_indices = @transform_8, window_bounds = array<i64: 64, 128>}, {pipeline_mode = #tpu.pipeline_mode<synchronous>, transform_indices = @transform_9, window_bounds = array<i64: 1, 128>}, {pipeline_mode = #tpu.pipeline_mode<synchronous>, transform_indices = @transform_10, window_bounds = array<i64: 32, 128>}, {pipeline_mode = #tpu.pipeline_mode<synchronous>, transform_indices = @transform_11, window_bounds = array<i64: 1, 128>}, {pipeline_mode = #tpu.pipeline_mode<synchronous>, transform_indices = @transform_12, window_bounds = array<i64: 32, 64>}, {pipeline_mode = #tpu.pipeline_mode<synchronous>, transform_indices = @transform_13, window_bounds = array<i64: 1, 64>}, {transform_indices = @transform_14, window_bounds = array<i64: 1, 8, 128>}, {transform_indices = @transform_15, window_bounds = array<i64: 1, 8, 128>}]} {
    %c0_i32 = arith.constant 0 : i32
    %0 = arith.cmpi eq, %arg1, %c0_i32 : i32
    %1 = arith.extui %0 : i1 to i32
    %c0_i32_0 = arith.constant 0 : i32
    %2 = arith.cmpi ne, %1, %c0_i32_0 : i32
    scf.if %2 {
      %c0_55 = arith.constant 0 : index
      %c0_56 = arith.constant 0 : index
      %c0_57 = arith.constant 0 : index
      %115 = vector.load %arg4[%c0_55, %c0_56, %c0_57] : memref<8x128x32xf32, #tpu.memory_space<vmem>>, vector<8x128x32xf32>
      %cst_58 = arith.constant dense<0.000000e+00> : vector<8x32xf32>
      %116 = vector.multi_reduction <add>, %115, %cst_58 [1] : vector<8x128x32xf32> to vector<8x32xf32>
      %cst_59 = arith.constant 6.250000e-02 : f32
      %117 = vector.broadcast %cst_59 : f32 to vector<8x32xf32>
      %118 = arith.mulf %116, %117 : vector<8x32xf32>
      %c0_60 = arith.constant 0 : index
      %c0_61 = arith.constant 0 : index
      %119 = vector.load %arg14[%c0_60, %c0_61] : memref<32x64xf32, #tpu.memory_space<vmem>>, vector<32x64xf32>
      %cst_62 = arith.constant dense<0.000000e+00> : vector<8x64xf32>
      %120 = tpu.matmul %118, %119, %cst_62 {dimension_numbers = #tpu.dot_dimension_numbers<[1], [0], [0], [1], [0, 0, 1, 1], [], []>} : vector<8x32xf32>, vector<32x64xf32>, vector<8x64xf32> -> vector<8x64xf32>
      %c0_63 = arith.constant 0 : index
      %c0_64 = arith.constant 0 : index
      %121 = vector.load %arg15[%c0_63, %c0_64] : memref<1x64xf32, #tpu.memory_space<vmem>>, vector<1x64xf32>
      %122 = vector.broadcast %121 : vector<1x64xf32> to vector<8x64xf32>
      %123 = arith.addf %120, %122 : vector<8x64xf32>
      %124 = vector.extract_strided_slice %123 {offsets = [0, 0], sizes = [8, 32], strides = [1, 1]} : vector<8x64xf32> to vector<8x32xf32>
      %c0_65 = arith.constant 0 : index
      %c0_66 = arith.constant 0 : index
      %125 = vector.load %arg18[%c0_65, %c0_66] : memref<8x32xf32, #tpu.memory_space<vmem>>, vector<8x32xf32>
      tpu.vector_store %arg18[%c0_65, %c0_66], %124 {strides = array<i32>} : memref<8x32xf32, #tpu.memory_space<vmem>>, vector<8x32xf32>,
      %126 = vector.extract_strided_slice %123 {offsets = [0, 32], sizes = [8, 32], strides = [1, 1]} : vector<8x64xf32> to vector<8x32xf32>
      %c0_67 = arith.constant 0 : index
      %c0_68 = arith.constant 0 : index
      %127 = vector.load %arg19[%c0_67, %c0_68] : memref<8x32xf32, #tpu.memory_space<vmem>>, vector<8x32xf32>
      tpu.vector_store %arg19[%c0_67, %c0_68], %126 {strides = array<i32>} : memref<8x32xf32, #tpu.memory_space<vmem>>, vector<8x32xf32>,
    } else {
    }
    %c0 = arith.constant 0 : index
    %c0_1 = arith.constant 0 : index
    %3 = vector.load %arg18[%c0, %c0_1] : memref<8x32xf32, #tpu.memory_space<vmem>>, vector<8x32xf32>
    %c0_2 = arith.constant 0 : index
    %c0_3 = arith.constant 0 : index
    %4 = vector.load %arg19[%c0_2, %c0_3] : memref<8x32xf32, #tpu.memory_space<vmem>>, vector<8x32xf32>
    %c0_4 = arith.constant 0 : index
    %c0_5 = arith.constant 0 : index
    %5 = vector.load %arg8[%c0_4, %c0_5] : memref<32x192xf32, #tpu.memory_space<vmem>>, vector<32x192xf32>
    %cst = arith.constant dense<0.000000e+00> : vector<8x192xf32>
    %6 = tpu.matmul %3, %5, %cst {dimension_numbers = #tpu.dot_dimension_numbers<[1], [0], [0], [1], [0, 0, 1, 1], [], []>} : vector<8x32xf32>, vector<32x192xf32>, vector<8x192xf32> -> vector<8x192xf32>
    %c0_6 = arith.constant 0 : index
    %c0_7 = arith.constant 0 : index
    %7 = vector.load %arg9[%c0_6, %c0_7] : memref<1x192xf32, #tpu.memory_space<vmem>>, vector<1x192xf32>
    %8 = vector.broadcast %7 : vector<1x192xf32> to vector<8x192xf32>
    %9 = arith.addf %6, %8 : vector<8x192xf32>
    %10 = vector.extract_strided_slice %9 {offsets = [0, 0], sizes = [8, 32], strides = [1, 1]} : vector<8x192xf32> to vector<8x32xf32>
    %11 = vector.extract_strided_slice %9 {offsets = [0, 32], sizes = [8, 32], strides = [1, 1]} : vector<8x192xf32> to vector<8x32xf32>
    %12 = vector.extract_strided_slice %9 {offsets = [0, 64], sizes = [8, 128], strides = [1, 1]} : vector<8x192xf32> to vector<8x128xf32>
    %c0_8 = arith.constant 0 : index
    %c0_9 = arith.constant 0 : index
    %c0_10 = arith.constant 0 : index
    %13 = vector.load %arg3[%c0_8, %c0_9, %c0_10] : memref<8x128x32xf32, #tpu.memory_space<vmem>>, vector<8x128x32xf32>
    %14 = vector.shape_cast %10 : vector<8x32xf32> to vector<8x1x32xf32>
    %15 = vector.broadcast %14 : vector<8x1x32xf32> to vector<8x128x32xf32>
    %16 = arith.addf %13, %15 : vector<8x128x32xf32>
    %cst_11 = arith.constant 0.000000e+00 : f32
    %17 = vector.broadcast %cst_11 : f32 to vector<8x128x32xf32>
    %18 = arith.maximumf %16, %17 : vector<8x128x32xf32>
    %c0_12 = arith.constant 0 : index
    %c0_13 = arith.constant 0 : index
    %19 = vector.load %arg6[%c0_12, %c0_13] : memref<1x32xf32, #tpu.memory_space<vmem>>, vector<1x32xf32>
    %20 = vector.shape_cast %19 : vector<1x32xf32> to vector<1x1x32xf32>
    %21 = vector.broadcast %20 : vector<1x1x32xf32> to vector<8x128x32xf32>
    %22 = arith.mulf %18, %21 : vector<8x128x32xf32>
    %cst_14 = arith.constant dense<0.000000e+00> : vector<8x128xf32>
    %23 = vector.multi_reduction <add>, %22, %cst_14 [2] : vector<8x128x32xf32> to vector<8x128xf32>
    %c0_15 = arith.constant 0 : index
    %c0_16 = arith.constant 0 : index
    %24 = vector.load %arg7[%c0_15, %c0_16] : memref<1x1xf32, #tpu.memory_space<vmem>>, vector<1x1xf32>
    %25 = vector.broadcast %24 : vector<1x1xf32> to vector<8x128xf32>
    %26 = arith.addf %23, %25 : vector<8x128xf32>
    %27 = tpu.iota {dimensions = array<i32: 1>} : vector<8x128xi32>
    %c16_i32 = arith.constant 16 : i32
    %28 = vector.broadcast %c16_i32 : i32 to vector<8x128xi32>
    %29 = arith.cmpi slt, %27, %28 : vector<8x128xi32>
    %cst_17 = arith.constant 0xFF800000 : f32
    %30 = vector.broadcast %cst_17 : f32 to vector<8x128xf32>
    %31 = arith.select %29, %26, %30 : vector<8x128xi1>, vector<8x128xf32>
    %cst_18 = arith.constant dense<0xFF800000> : vector<8xf32>
    %32 = vector.multi_reduction <maximumf>, %31, %cst_18 [1] : vector<8x128xf32> to vector<8xf32>
    %33 = vector.shape_cast %32 : vector<8xf32> to vector<8x1xf32>
    %34 = vector.broadcast %33 : vector<8x1xf32> to vector<8x128xf32>
    %35 = arith.subf %31, %34 : vector<8x128xf32>
    %36 = math.exp %35 : vector<8x128xf32>
    %cst_19 = arith.constant dense<0.000000e+00> : vector<8xf32>
    %37 = vector.multi_reduction <add>, %36, %cst_19 [1] : vector<8x128xf32> to vector<8xf32>
    %38 = vector.shape_cast %37 : vector<8xf32> to vector<8x1xf32>
    %39 = tpu.reciprocal %38 {approx = true} : vector<8x1xf32> -> vector<8x1xf32>
    %40 = vector.broadcast %39 : vector<8x1xf32> to vector<8x128xf32>
    %41 = arith.mulf %36, %40 : vector<8x128xf32>
    %42 = vector.shape_cast %41 : vector<8x128xf32> to vector<8x128x1xf32>
    %c0_20 = arith.constant 0 : index
    %c0_21 = arith.constant 0 : index
    %c0_22 = arith.constant 0 : index
    %43 = vector.load %arg4[%c0_20, %c0_21, %c0_22] : memref<8x128x32xf32, #tpu.memory_space<vmem>>, vector<8x128x32xf32>
    %44 = vector.broadcast %42 : vector<8x128x1xf32> to vector<8x128x32xf32>
    %45 = arith.mulf %44, %43 : vector<8x128x32xf32>
    %cst_23 = arith.constant dense<0.000000e+00> : vector<8x32xf32>
    %46 = vector.multi_reduction <add>, %45, %cst_23 [1] : vector<8x128x32xf32> to vector<8x32xf32>
    %47 = arith.negf %11 : vector<8x32xf32>
    %48 = math.exp %47 : vector<8x32xf32>
    %cst_24 = arith.constant 1.000000e+00 : f32
    %49 = vector.broadcast %cst_24 : f32 to vector<8x32xf32>
    %50 = arith.addf %49, %48 : vector<8x32xf32>
    %51 = arith.divf %49, %50 : vector<8x32xf32>
    %52 = arith.mulf %51, %46 : vector<8x32xf32>
    %c0_25 = arith.constant 0 : index
    %c0_26 = arith.constant 0 : index
    %c0_27 = arith.constant 0 : index
    %53 = vector.load %arg5[%c0_25, %c0_26, %c0_27] : memref<1x8x32xf32, #tpu.memory_space<vmem>>, vector<1x8x32xf32>
    %54 = vector.shape_cast %53 : vector<1x8x32xf32> to vector<8x32xf32>
    %55 = tpu.concatenate %54, %52 in 1 : vector<8x32xf32>, vector<8x32xf32> -> vector<8x64xf32>
    %c0_28 = arith.constant 0 : index
    %c0_29 = arith.constant 0 : index
    %56 = vector.load %arg10[%c0_28, %c0_29] : memref<64x128xf32, #tpu.memory_space<vmem>>, vector<64x128xf32>
    %cst_30 = arith.constant dense<0.000000e+00> : vector<8x128xf32>
    %57 = tpu.matmul %55, %56, %cst_30 {dimension_numbers = #tpu.dot_dimension_numbers<[1], [0], [0], [1], [0, 0, 1, 1], [], []>} : vector<8x64xf32>, vector<64x128xf32>, vector<8x128xf32> -> vector<8x128xf32>
    %c0_31 = arith.constant 0 : index
    %c0_32 = arith.constant 0 : index
    %58 = vector.load %arg11[%c0_31, %c0_32] : memref<1x128xf32, #tpu.memory_space<vmem>>, vector<1x128xf32>
    %59 = vector.broadcast %58 : vector<1x128xf32> to vector<8x128xf32>
    %60 = arith.addf %57, %59 : vector<8x128xf32>
    %61 = arith.addf %60, %12 : vector<8x128xf32>
    %62 = vector.extract_strided_slice %61 {offsets = [0, 0], sizes = [8, 32], strides = [1, 1]} : vector<8x128xf32> to vector<8x32xf32>
    %63 = arith.negf %62 : vector<8x32xf32>
    %64 = math.exp %63 : vector<8x32xf32>
    %cst_33 = arith.constant 1.000000e+00 : f32
    %65 = vector.broadcast %cst_33 : f32 to vector<8x32xf32>
    %66 = arith.addf %65, %64 : vector<8x32xf32>
    %67 = arith.divf %65, %66 : vector<8x32xf32>
    %68 = vector.extract_strided_slice %61 {offsets = [0, 32], sizes = [8, 32], strides = [1, 1]} : vector<8x128xf32> to vector<8x32xf32>
    %69 = arith.negf %68 : vector<8x32xf32>
    %70 = math.exp %69 : vector<8x32xf32>
    %cst_34 = arith.constant 1.000000e+00 : f32
    %71 = vector.broadcast %cst_34 : f32 to vector<8x32xf32>
    %72 = arith.addf %71, %70 : vector<8x32xf32>
    %73 = arith.divf %71, %72 : vector<8x32xf32>
    %74 = vector.extract_strided_slice %61 {offsets = [0, 64], sizes = [8, 32], strides = [1, 1]} : vector<8x128xf32> to vector<8x32xf32>
    %75 = math.tanh %74 : vector<8x32xf32>
    %76 = vector.extract_strided_slice %61 {offsets = [0, 96], sizes = [8, 32], strides = [1, 1]} : vector<8x128xf32> to vector<8x32xf32>
    %77 = arith.negf %76 : vector<8x32xf32>
    %78 = math.exp %77 : vector<8x32xf32>
    %cst_35 = arith.constant 1.000000e+00 : f32
    %79 = vector.broadcast %cst_35 : f32 to vector<8x32xf32>
    %80 = arith.addf %79, %78 : vector<8x32xf32>
    %81 = arith.divf %79, %80 : vector<8x32xf32>
    %82 = arith.mulf %73, %4 : vector<8x32xf32>
    %83 = arith.mulf %67, %75 : vector<8x32xf32>
    %84 = arith.addf %82, %83 : vector<8x32xf32>
    %85 = math.tanh %84 : vector<8x32xf32>
    %86 = arith.mulf %81, %85 : vector<8x32xf32>
    %c0_36 = arith.constant 0 : index
    %c0_37 = arith.constant 0 : index
    %87 = vector.load %arg12[%c0_36, %c0_37] : memref<32x128xf32, #tpu.memory_space<vmem>>, vector<32x128xf32>
    %cst_38 = arith.constant dense<0.000000e+00> : vector<8x128xf32>
    %88 = tpu.matmul %86, %87, %cst_38 {dimension_numbers = #tpu.dot_dimension_numbers<[1], [0], [0], [1], [0, 0, 1, 1], [], []>} : vector<8x32xf32>, vector<32x128xf32>, vector<8x128xf32> -> vector<8x128xf32>
    %c0_39 = arith.constant 0 : index
    %c0_40 = arith.constant 0 : index
    %89 = vector.load %arg13[%c0_39, %c0_40] : memref<1x128xf32, #tpu.memory_space<vmem>>, vector<1x128xf32>
    %90 = vector.broadcast %89 : vector<1x128xf32> to vector<8x128xf32>
    %91 = arith.addf %88, %90 : vector<8x128xf32>
    %c0_41 = arith.constant 0 : index
    %c0_42 = arith.constant 0 : index
    %92 = vector.load %arg2[%c0_41, %c0_42] : memref<8x1xi32, #tpu.memory_space<vmem>>, vector<8x1xi32>
    %93 = vector.broadcast %arg1 : i32 to vector<8x1xi32>
    %94 = arith.cmpi sgt, %92, %93 : vector<8x1xi32>
    %95 = vector.shape_cast %94 : vector<8x1xi1> to vector<8x1xi1>
    %96 = vector.broadcast %95 : vector<8x1xi1> to vector<8x32xi1>
    %97 = arith.select %96, %86, %3 : vector<8x32xi1>, vector<8x32xf32>
    %c0_43 = arith.constant 0 : index
    %c0_44 = arith.constant 0 : index
    %98 = vector.load %arg18[%c0_43, %c0_44] : memref<8x32xf32, #tpu.memory_space<vmem>>, vector<8x32xf32>
    tpu.vector_store %arg18[%c0_43, %c0_44], %97 {strides = array<i32>} : memref<8x32xf32, #tpu.memory_space<vmem>>, vector<8x32xf32>,
    %99 = vector.shape_cast %94 : vector<8x1xi1> to vector<8x1xi1>
    %100 = vector.broadcast %99 : vector<8x1xi1> to vector<8x32xi1>
    %101 = arith.select %100, %84, %4 : vector<8x32xi1>, vector<8x32xf32>
    %c0_45 = arith.constant 0 : index
    %c0_46 = arith.constant 0 : index
    %102 = vector.load %arg19[%c0_45, %c0_46] : memref<8x32xf32, #tpu.memory_space<vmem>>, vector<8x32xf32>
    tpu.vector_store %arg19[%c0_45, %c0_46], %101 {strides = array<i32>} : memref<8x32xf32, #tpu.memory_space<vmem>>, vector<8x32xf32>,
    %cst_47 = arith.constant 0.000000e+00 : f32
    %103 = vector.shape_cast %94 : vector<8x1xi1> to vector<8x1xi1>
    %104 = vector.broadcast %103 : vector<8x1xi1> to vector<8x128xi1>
    %105 = vector.broadcast %cst_47 : f32 to vector<8x128xf32>
    %106 = arith.select %104, %91, %105 : vector<8x128xi1>, vector<8x128xf32>
    %107 = vector.shape_cast %106 : vector<8x128xf32> to vector<1x8x128xf32>
    %c0_48 = arith.constant 0 : index
    %c0_49 = arith.constant 0 : index
    %c0_50 = arith.constant 0 : index
    %108 = vector.load %arg16[%c0_48, %c0_49, %c0_50] : memref<1x8x128xf32, #tpu.memory_space<vmem>>, vector<1x8x128xf32>
    tpu.vector_store %arg16[%c0_48, %c0_49, %c0_50], %107 {strides = array<i32>} : memref<1x8x128xf32, #tpu.memory_space<vmem>>, vector<1x8x128xf32>,
    %cst_51 = arith.constant 0.000000e+00 : f32
    %109 = vector.shape_cast %94 : vector<8x1xi1> to vector<8x1xi1>
    %110 = vector.broadcast %109 : vector<8x1xi1> to vector<8x128xi1>
    %111 = vector.broadcast %cst_51 : f32 to vector<8x128xf32>
    %112 = arith.select %110, %41, %111 : vector<8x128xi1>, vector<8x128xf32>
    %113 = vector.shape_cast %112 : vector<8x128xf32> to vector<1x8x128xf32>
    %c0_52 = arith.constant 0 : index
    %c0_53 = arith.constant 0 : index
    %c0_54 = arith.constant 0 : index
    %114 = vector.load %arg17[%c0_52, %c0_53, %c0_54] : memref<1x8x128xf32, #tpu.memory_space<vmem>>, vector<1x8x128xf32>
    tpu.vector_store %arg17[%c0_52, %c0_53, %c0_54], %113 {strides = array<i32>} : memref<1x8x128xf32, #tpu.memory_space<vmem>>, vector<1x8x128xf32>,
    return
  }
  func.func @transform_0(%arg0: i32, %arg1: i32) -> (i32, i32) {
    %c0_i32 = arith.constant 0 : i32
    %c0_i32_0 = arith.constant 0 : i32
    return %arg0, %c0_i32 : i32, i32
  }
  func.func @transform_1(%arg0: i32, %arg1: i32) -> (i32, i32, i32) {
    %c0_i32 = arith.constant 0 : i32
    %c0_i32_0 = arith.constant 0 : i32
    %c0_i32_1 = arith.constant 0 : i32
    return %arg0, %c0_i32, %c0_i32_0 : i32, i32, i32
  }
  func.func @transform_2(%arg0: i32, %arg1: i32) -> (i32, i32, i32) {
    %c0_i32 = arith.constant 0 : i32
    %c0_i32_0 = arith.constant 0 : i32
    %c0_i32_1 = arith.constant 0 : i32
    return %arg0, %c0_i32, %c0_i32_0 : i32, i32, i32
  }
  func.func @transform_3(%arg0: i32, %arg1: i32) -> (i32, i32, i32) {
    %c0_i32 = arith.constant 0 : i32
    %c0_i32_0 = arith.constant 0 : i32
    return %arg1, %arg0, %c0_i32 : i32, i32, i32
  }
  func.func @transform_4(%arg0: i32, %arg1: i32) -> (i32, i32) {
    %c0_i32 = arith.constant 0 : i32
    %c0_i32_0 = arith.constant 0 : i32
    %c0_i32_1 = arith.constant 0 : i32
    return %c0_i32, %c0_i32_0 : i32, i32
  }
  func.func @transform_5(%arg0: i32, %arg1: i32) -> (i32, i32) {
    %c0_i32 = arith.constant 0 : i32
    %c0_i32_0 = arith.constant 0 : i32
    %c0_i32_1 = arith.constant 0 : i32
    return %c0_i32, %c0_i32_0 : i32, i32
  }
  func.func @transform_6(%arg0: i32, %arg1: i32) -> (i32, i32) {
    %c0_i32 = arith.constant 0 : i32
    %c0_i32_0 = arith.constant 0 : i32
    %c0_i32_1 = arith.constant 0 : i32
    return %c0_i32, %c0_i32_0 : i32, i32
  }
  func.func @transform_7(%arg0: i32, %arg1: i32) -> (i32, i32) {
    %c0_i32 = arith.constant 0 : i32
    %c0_i32_0 = arith.constant 0 : i32
    %c0_i32_1 = arith.constant 0 : i32
    return %c0_i32, %c0_i32_0 : i32, i32
  }
  func.func @transform_8(%arg0: i32, %arg1: i32) -> (i32, i32) {
    %c0_i32 = arith.constant 0 : i32
    %c0_i32_0 = arith.constant 0 : i32
    %c0_i32_1 = arith.constant 0 : i32
    return %c0_i32, %c0_i32_0 : i32, i32
  }
  func.func @transform_9(%arg0: i32, %arg1: i32) -> (i32, i32) {
    %c0_i32 = arith.constant 0 : i32
    %c0_i32_0 = arith.constant 0 : i32
    %c0_i32_1 = arith.constant 0 : i32
    return %c0_i32, %c0_i32_0 : i32, i32
  }
  func.func @transform_10(%arg0: i32, %arg1: i32) -> (i32, i32) {
    %c0_i32 = arith.constant 0 : i32
    %c0_i32_0 = arith.constant 0 : i32
    %c0_i32_1 = arith.constant 0 : i32
    return %c0_i32, %c0_i32_0 : i32, i32
  }
  func.func @transform_11(%arg0: i32, %arg1: i32) -> (i32, i32) {
    %c0_i32 = arith.constant 0 : i32
    %c0_i32_0 = arith.constant 0 : i32
    %c0_i32_1 = arith.constant 0 : i32
    return %c0_i32, %c0_i32_0 : i32, i32
  }
  func.func @transform_12(%arg0: i32, %arg1: i32) -> (i32, i32) {
    %c0_i32 = arith.constant 0 : i32
    %c0_i32_0 = arith.constant 0 : i32
    %c0_i32_1 = arith.constant 0 : i32
    return %c0_i32, %c0_i32_0 : i32, i32
  }
  func.func @transform_13(%arg0: i32, %arg1: i32) -> (i32, i32) {
    %c0_i32 = arith.constant 0 : i32
    %c0_i32_0 = arith.constant 0 : i32
    %c0_i32_1 = arith.constant 0 : i32
    return %c0_i32, %c0_i32_0 : i32, i32
  }
  func.func @transform_14(%arg0: i32, %arg1: i32) -> (i32, i32, i32) {
    %c0_i32 = arith.constant 0 : i32
    %c0_i32_0 = arith.constant 0 : i32
    return %arg1, %arg0, %c0_i32 : i32, i32, i32
  }
  func.func @transform_15(%arg0: i32, %arg1: i32) -> (i32, i32, i32) {
    %c0_i32 = arith.constant 0 : i32
    %c0_i32_0 = arith.constant 0 : i32
    return %arg1, %arg0, %c0_i32 : i32, i32, i32
  }
}

</mosaic_0001>

<llo_original>
// kernel: tpu_custom_call.1
$region0: #{tpu_custom_call.1}
  #allocation0 [shape = 'u32[]', space=smem, size = 0x4, offset = 0x4, fixed_abs, tag = 'smem constant byte address 0x4 - core index']
  #allocation1 [shape = 'u32[144,128]{1,0:T(1,128)}', space=vmem, size = 0x12000, scoped, tag = 'internal scratch']
  #allocation2 [shape = 'f32[8,32]{1,0:T(8,128)}', space=vmem, size = 0x1000, scoped, tag = 'scratch operand']
  #allocation3 [shape = 'f32[8,32]{1,0:T(8,128)}', space=vmem, size = 0x1000, scoped, tag = 'scratch operand']
  #allocation4 [shape = 'f32[1,1]{1,0:T(1,128)S(1)}', space=vmem, size = 0x200, scoped, tag = 'scoped memory for tpu_custom_call.1']
  %s0 = inlined_call_operand.vmem [shape: s32[8,1], index: 0, kind: input, shape index: {}]
  %s1 = inlined_call_operand.vmem [shape: f32[8,128,32], index: 1, kind: input, shape index: {}]
  %s2 = inlined_call_operand.vmem [shape: f32[8,128,32], index: 2, kind: input, shape index: {}]
  %s3 = inlined_call_operand.vmem [shape: f32[7,8,32], index: 3, kind: input, shape index: {}]
  %s4 = inlined_call_operand.vmem [shape: f32[1,32], index: 4, kind: input, shape index: {}]
  %s5 = inlined_call_operand.<no memory space> [shape: f32[1,1], index: 5, kind: input, shape index: {}]
  %s6 = inlined_call_operand.vmem [shape: f32[32,192], index: 6, kind: input, shape index: {}]
  %s7 = inlined_call_operand.vmem [shape: f32[1,192], index: 7, kind: input, shape index: {}]
  %s8 = inlined_call_operand.vmem [shape: f32[64,128], index: 8, kind: input, shape index: {}]
  %s9 = inlined_call_operand.vmem [shape: f32[1,128], index: 9, kind: input, shape index: {}]
  %s10 = inlined_call_operand.vmem [shape: f32[32,128], index: 10, kind: input, shape index: {}]
  %s11 = inlined_call_operand.vmem [shape: f32[1,128], index: 11, kind: input, shape index: {}]
  %s12 = inlined_call_operand.vmem [shape: f32[32,64], index: 12, kind: input, shape index: {}]
  %s13 = inlined_call_operand.vmem [shape: f32[1,64], index: 13, kind: input, shape index: {}]
  %s14 = inlined_call_operand.hbm [shape: f32[7,8,128], index: 14, kind: output, shape index: {0}]
  %s15 = inlined_call_operand.hbm [shape: f32[7,8,128], index: 15, kind: output, shape index: {1}]
  %16 = xla_tuple %s14, %s15
  %s17 = sld [smem:[#allocation0]]
  $region101: #{tpu_custom_call.1} parent=0
    _
  %s19 = ssub.s32 1, %s17
  %s20 = scalar_select 0, %s19, %s17
  %v21 = vstv %s5
  %22 = vst [vmem:[#allocation4] sm:$0x1] %v21
  $region1: #{tpu_custom_call.1} parent=0
    #allocation5 [shape = 'u8[8192]{0}', space=vmem, size = 0x2000, scoped, tag = 'output window, operand 0']
    #allocation6 [shape = 's32[2]{0}', space=sflag, size = 0x8, scoped, tag = 'scoped memory for tpu_custom_call.1']
    #allocation7 [shape = 'u8[8192]{0}', space=vmem, size = 0x2000, scoped, tag = 'output window, operand 1']
    #allocation8 [shape = 's32[2]{0}', space=sflag, size = 0x8, scoped, tag = 'scoped memory for tpu_custom_call.1']
    %23 = vsyncpa [#allocation6], 0
    %s24 = scalar_lea.sflag [#allocation6], 1
    %25 = vsyncpa %s24, 0
    %26 = vsyncpa [#allocation8], 0
    %s27 = scalar_lea.sflag [#allocation8], 1
    %28 = vsyncpa %s27, 0
    loop: start=0, step=1, limit=9
    $region2: #{tpu_custom_call.1} parent=1 // loop_pre_header
      _
    $region3: #{tpu_custom_call.1} parent=1 // loop_header
      %s30 = sphi 0, %s34
      %p31 = scmp.ge.s32.totalorder %s30, 9
      %s37 = sphi 0, %s49
      %s38 = sphi 0, %s45
      %s39 = sphi 0, %s37
      %s40 = sphi 0, %s38
      %s41 = sphi 0, %s39
      %s42 = sphi 0, %s40
      %s52 = sphi 0, %s54
      %s55 = sphi 0, %s52
      %s56 = sphi 0, %s55
      %s72 = sphi 0, %s56
      %s78 = sphi 0, %s80
      %s81 = sphi 0, %s78
      %s82 = sphi 0, %s81
      %s98 = sphi 0, %s82
      %s104 = sphi 0, %s106
      %s107 = sphi 0, %s104
      %s108 = sphi 0, %s107
      %s124 = sphi 0, %s108
      %s132 = sphi 0, %s134
      %s135 = sphi 0, %s132
      %s136 = sphi 0, %s135
      %s152 = sphi 0, %s136
      %s156 = sphi 0, %s156
      %s158 = sphi 0, %s156
      %s159 = sphi 0, %s158
      %s173 = sphi 0, %s159
      %s177 = sphi 0, %s177
      %s179 = sphi 0, %s177
      %s180 = sphi 0, %s179
      %s194 = sphi 0, %s180
      %s198 = sphi 0, %s198
      %s200 = sphi 0, %s198
      %s201 = sphi 0, %s200
      %s215 = sphi 0, %s201
      %s219 = sphi 0, %s219
      %s221 = sphi 0, %s219
      %s222 = sphi 0, %s221
      %s236 = sphi 0, %s222
      %s240 = sphi 0, %s240
      %s242 = sphi 0, %s240
      %s243 = sphi 0, %s242
      %s257 = sphi 0, %s243
      %s261 = sphi 0, %s261
      %s263 = sphi 0, %s261
      %s264 = sphi 0, %s263
      %s278 = sphi 0, %s264
      %s282 = sphi 0, %s282
      %s284 = sphi 0, %s282
      %s285 = sphi 0, %s284
      %s299 = sphi 0, %s285
      %s303 = sphi 0, %s303
      %s305 = sphi 0, %s303
      %s306 = sphi 0, %s305
      %s320 = sphi 0, %s306
      %s324 = sphi 0, %s324
      %s326 = sphi 0, %s324
      %s327 = sphi 0, %s326
      %s341 = sphi 0, %s327
      %s345 = sphi 0, %s345
      %s347 = sphi 0, %s345
      %s348 = sphi 0, %s347
      %s362 = sphi 0, %s348
      %s370 = sphi 0, %s372
      %s373 = sphi 0, %s370
      %s374 = sphi 0, %s373
      %s390 = sphi 0, %s374
      %s398 = sphi 0, %s400
      %s401 = sphi 0, %s398
      %s402 = sphi 0, %s401
      %s418 = sphi 0, %s402
    $region4: #{tpu_custom_call.1} parent=1 // loop_header_branch
      %33 = sbr.rel (%p31) target = $region8
    $region5: #{tpu_custom_call.1} parent=1 // loop_body
      %s35 = ssub.s32 %s30, 1
      %s36 = ssub.s32 %s30, 2
      %s43 = sadd.s32 1, %s38
      %p44 = scmp.ge.s32.totalorder %s43, 7
      %s45 = scalar_select %p44, 0, %s43
      %s46 = sadd.s32 1, %s37
      %s47 = scalar_select %p44, %s46, %s37
      %p48 = scmp.ge.s32.totalorder %s47, 1
      %s49 = scalar_select %p48, 0, %s47
      %s50 = ssub.s32 %s37, %s49
      %p51 = scmp.eq.s32.totalorder %s50, 0
      %s53 = sadd.s32 %s52, 1
      %s54 = scalar_select %p51, %s52, %s53
      %p57 = pneg %p51
      %p58 = scmp.eq.s32.totalorder %s30, 6
      %p59 = por %p57, %p58
      %p60 = scmp.ne.s32.totalorder %s52, %s55
      %p61 = scmp.eq.s32.totalorder %s30, 0
      %p62 = por %p60, %p61
      %p63 = scmp.ne.s32.totalorder %s52, %s55
      %p64 = scmp.eq.s32.totalorder %s35, 6
      %p65 = por %p63, %p64
      %p66 = scmp.ne.s32.totalorder %s55, %s56
      %p67 = scmp.eq.s32.totalorder %s35, 0
      %p68 = por %p66, %p67
      %p69 = scmp.ne.s32.totalorder %s55, %s56
      %p70 = scmp.eq.s32.totalorder %s36, 6
      %p71 = por %p69, %p70
      %p73 = scmp.ne.s32.totalorder %s56, %s72
      %p74 = scmp.eq.s32.totalorder %s36, 0
      %p75 = por %p73, %p74
      %s76 = ssub.s32 %s37, %s49
      %p77 = scmp.eq.s32.totalorder %s76, 0
      %s79 = sadd.s32 %s78, 1
      %s80 = scalar_select %p77, %s78, %s79
      %p83 = pneg %p77
      %p84 = scmp.eq.s32.totalorder %s30, 6
      %p85 = por %p83, %p84
      %p86 = scmp.ne.s32.totalorder %s78, %s81
      %p87 = scmp.eq.s32.totalorder %s30, 0
      %p88 = por %p86, %p87
      %p89 = scmp.ne.s32.totalorder %s78, %s81
      %p90 = scmp.eq.s32.totalorder %s35, 6
      %p91 = por %p89, %p90
      %p92 = scmp.ne.s32.totalorder %s81, %s82
      %p93 = scmp.eq.s32.totalorder %s35, 0
      %p94 = por %p92, %p93
      %p95 = scmp.ne.s32.totalorder %s81, %s82
      %p96 = scmp.eq.s32.totalorder %s36, 6
      %p97 = por %p95, %p96
      %p99 = scmp.ne.s32.totalorder %s82, %s98
      %p100 = scmp.eq.s32.totalorder %s36, 0
      %p101 = por %p99, %p100
      %s102 = ssub.s32 %s37, %s49
      %p103 = scmp.eq.s32.totalorder %s102, 0
      %s105 = sadd.s32 %s104, 1
      %s106 = scalar_select %p103, %s104, %s105
      %p109 = pneg %p103
      %p110 = scmp.eq.s32.totalorder %s30, 6
      %p111 = por %p109, %p110
      %p112 = scmp.ne.s32.totalorder %s104, %s107
      %p113 = scmp.eq.s32.totalorder %s30, 0
      %p114 = por %p112, %p113
      %p115 = scmp.ne.s32.totalorder %s104, %s107
      %p116 = scmp.eq.s32.totalorder %s35, 6
      %p117 = por %p115, %p116
      %p118 = scmp.ne.s32.totalorder %s107, %s108
      %p119 = scmp.eq.s32.totalorder %s35, 0
      %p120 = por %p118, %p119
      %p121 = scmp.ne.s32.totalorder %s107, %s108
      %p122 = scmp.eq.s32.totalorder %s36, 6
      %p123 = por %p121, %p122
      %p125 = scmp.ne.s32.totalorder %s108, %s124
      %p126 = scmp.eq.s32.totalorder %s36, 0
      %p127 = por %p125, %p126
      %s128 = ssub.s32 %s38, %s45
      %s129 = ssub.s32 %s37, %s49
      %s130 = sor.u32 %s128, %s129
      %p131 = scmp.eq.s32.totalorder %s130, 0
      %s133 = sadd.s32 %s132, 1
      %s134 = scalar_select %p131, %s132, %s133
      %p137 = pneg %p131
      %p138 = scmp.eq.s32.totalorder %s30, 6
      %p139 = por %p137, %p138
      %p140 = scmp.ne.s32.totalorder %s132, %s135
      %p141 = scmp.eq.s32.totalorder %s30, 0
      %p142 = por %p140, %p141
      %p143 = scmp.ne.s32.totalorder %s132, %s135
      %p144 = scmp.eq.s32.totalorder %s35, 6
      %p145 = por %p143, %p144
      %p146 = scmp.ne.s32.totalorder %s135, %s136
      %p147 = scmp.eq.s32.totalorder %s35, 0
      %p148 = por %p146, %p147
      %p149 = scmp.ne.s32.totalorder %s135, %s136
      %p150 = scmp.eq.s32.totalorder %s36, 6
      %p151 = por %p149, %p150
      %p153 = scmp.ne.s32.totalorder %s136, %s152
      %p154 = scmp.eq.s32.totalorder %s36, 0
      %p155 = por %p153, %p154
      %s157 = sadd.s32 %s156, 1
      %p160 = scmp.eq.s32.totalorder %s30, 6
      %p161 = scmp.ne.s32.totalorder %s156, %s158
      %p162 = scmp.eq.s32.totalorder %s30, 0
      %p163 = por %p161, %p162
      %p164 = scmp.ne.s32.totalorder %s156, %s158
      %p165 = scmp.eq.s32.totalorder %s35, 6
      %p166 = por %p164, %p165
      %p167 = scmp.ne.s32.totalorder %s158, %s159
      %p168 = scmp.eq.s32.totalorder %s35, 0
      %p169 = por %p167, %p168
      %p170 = scmp.ne.s32.totalorder %s158, %s159
      %p171 = scmp.eq.s32.totalorder %s36, 6
      %p172 = por %p170, %p171
      %p174 = scmp.ne.s32.totalorder %s159, %s173
      %p175 = scmp.eq.s32.totalorder %s36, 0
      %p176 = por %p174, %p175
      %s178 = sadd.s32 %s177, 1
      %p181 = scmp.eq.s32.totalorder %s30, 6
      %p182 = scmp.ne.s32.totalorder %s177, %s179
      %p183 = scmp.eq.s32.totalorder %s30, 0
      %p184 = por %p182, %p183
      %p185 = scmp.ne.s32.totalorder %s177, %s179
      %p186 = scmp.eq.s32.totalorder %s35, 6
      %p187 = por %p185, %p186
      %p188 = scmp.ne.s32.totalorder %s179, %s180
      %p189 = scmp.eq.s32.totalorder %s35, 0
      %p190 = por %p188, %p189
      %p191 = scmp.ne.s32.totalorder %s179, %s180
      %p192 = scmp.eq.s32.totalorder %s36, 6
      %p193 = por %p191, %p192
      %p195 = scmp.ne.s32.totalorder %s180, %s194
      %p196 = scmp.eq.s32.totalorder %s36, 0
      %p197 = por %p195, %p196
      %s199 = sadd.s32 %s198, 1
      %p202 = scmp.eq.s32.totalorder %s30, 6
      %p203 = scmp.ne.s32.totalorder %s198, %s200
      %p204 = scmp.eq.s32.totalorder %s30, 0
      %p205 = por %p203, %p204
      %p206 = scmp.ne.s32.totalorder %s198, %s200
      %p207 = scmp.eq.s32.totalorder %s35, 6
      %p208 = por %p206, %p207
      %p209 = scmp.ne.s32.totalorder %s200, %s201
      %p210 = scmp.eq.s32.totalorder %s35, 0
      %p211 = por %p209, %p210
      %p212 = scmp.ne.s32.totalorder %s200, %s201
      %p213 = scmp.eq.s32.totalorder %s36, 6
      %p214 = por %p212, %p213
      %p216 = scmp.ne.s32.totalorder %s201, %s215
      %p217 = scmp.eq.s32.totalorder %s36, 0
      %p218 = por %p216, %p217
      %s220 = sadd.s32 %s219, 1
      %p223 = scmp.eq.s32.totalorder %s30, 6
      %p224 = scmp.ne.s32.totalorder %s219, %s221
      %p225 = scmp.eq.s32.totalorder %s30, 0
      %p226 = por %p224, %p225
      %p227 = scmp.ne.s32.totalorder %s219, %s221
      %p228 = scmp.eq.s32.totalorder %s35, 6
      %p229 = por %p227, %p228
      %p230 = scmp.ne.s32.totalorder %s221, %s222
      %p231 = scmp.eq.s32.totalorder %s35, 0
      %p232 = por %p230, %p231
      %p233 = scmp.ne.s32.totalorder %s221, %s222
      %p234 = scmp.eq.s32.totalorder %s36, 6
      %p235 = por %p233, %p234
      %p237 = scmp.ne.s32.totalorder %s222, %s236
      %p238 = scmp.eq.s32.totalorder %s36, 0
      %p239 = por %p237, %p238
      %s241 = sadd.s32 %s240, 1
      %p244 = scmp.eq.s32.totalorder %s30, 6
      %p245 = scmp.ne.s32.totalorder %s240, %s242
      %p246 = scmp.eq.s32.totalorder %s30, 0
      %p247 = por %p245, %p246
      %p248 = scmp.ne.s32.totalorder %s240, %s242
      %p249 = scmp.eq.s32.totalorder %s35, 6
      %p250 = por %p248, %p249
      %p251 = scmp.ne.s32.totalorder %s242, %s243
      %p252 = scmp.eq.s32.totalorder %s35, 0
      %p253 = por %p251, %p252
      %p254 = scmp.ne.s32.totalorder %s242, %s243
      %p255 = scmp.eq.s32.totalorder %s36, 6
      %p256 = por %p254, %p255
      %p258 = scmp.ne.s32.totalorder %s243, %s257
      %p259 = scmp.eq.s32.totalorder %s36, 0
      %p260 = por %p258, %p259
      %s262 = sadd.s32 %s261, 1
      %p265 = scmp.eq.s32.totalorder %s30, 6
      %p266 = scmp.ne.s32.totalorder %s261, %s263
      %p267 = scmp.eq.s32.totalorder %s30, 0
      %p268 = por %p266, %p267
      %p269 = scmp.ne.s32.totalorder %s261, %s263
      %p270 = scmp.eq.s32.totalorder %s35, 6
      %p271 = por %p269, %p270
      %p272 = scmp.ne.s32.totalorder %s263, %s264
      %p273 = scmp.eq.s32.totalorder %s35, 0
      %p274 = por %p272, %p273
      %p275 = scmp.ne.s32.totalorder %s263, %s264
      %p276 = scmp.eq.s32.totalorder %s36, 6
      %p277 = por %p275, %p276
      %p279 = scmp.ne.s32.totalorder %s264, %s278
      %p280 = scmp.eq.s32.totalorder %s36, 0
      %p281 = por %p279, %p280
      %s283 = sadd.s32 %s282, 1
      %p286 = scmp.eq.s32.totalorder %s30, 6
      %p287 = scmp.ne.s32.totalorder %s282, %s284
      %p288 = scmp.eq.s32.totalorder %s30, 0
      %p289 = por %p287, %p288
      %p290 = scmp.ne.s32.totalorder %s282, %s284
      %p291 = scmp.eq.s32.totalorder %s35, 6
      %p292 = por %p290, %p291
      %p293 = scmp.ne.s32.totalorder %s284, %s285
      %p294 = scmp.eq.s32.totalorder %s35, 0
      %p295 = por %p293, %p294
      %p296 = scmp.ne.s32.totalorder %s284, %s285
      %p297 = scmp.eq.s32.totalorder %s36, 6
      %p298 = por %p296, %p297
      %p300 = scmp.ne.s32.totalorder %s285, %s299
      %p301 = scmp.eq.s32.totalorder %s36, 0
      %p302 = por %p300, %p301
      %s304 = sadd.s32 %s303, 1
      %p307 = scmp.eq.s32.totalorder %s30, 6
      %p308 = scmp.ne.s32.totalorder %s303, %s305
      %p309 = scmp.eq.s32.totalorder %s30, 0
      %p310 = por %p308, %p309
      %p311 = scmp.ne.s32.totalorder %s303, %s305
      %p312 = scmp.eq.s32.totalorder %s35, 6
      %p313 = por %p311, %p312
      %p314 = scmp.ne.s32.totalorder %s305, %s306
      %p315 = scmp.eq.s32.totalorder %s35, 0
      %p316 = por %p314, %p315
      %p317 = scmp.ne.s32.totalorder %s305, %s306
      %p318 = scmp.eq.s32.totalorder %s36, 6
      %p319 = por %p317, %p318
      %p321 = scmp.ne.s32.totalorder %s306, %s320
      %p322 = scmp.eq.s32.totalorder %s36, 0
      %p323 = por %p321, %p322
      %s325 = sadd.s32 %s324, 1
      %p328 = scmp.eq.s32.totalorder %s30, 6
      %p329 = scmp.ne.s32.totalorder %s324, %s326
      %p330 = scmp.eq.s32.totalorder %s30, 0
      %p331 = por %p329, %p330
      %p332 = scmp.ne.s32.totalorder %s324, %s326
      %p333 = scmp.eq.s32.totalorder %s35, 6
      %p334 = por %p332, %p333
      %p335 = scmp.ne.s32.totalorder %s326, %s327
      %p336 = scmp.eq.s32.totalorder %s35, 0
      %p337 = por %p335, %p336
      %p338 = scmp.ne.s32.totalorder %s326, %s327
      %p339 = scmp.eq.s32.totalorder %s36, 6
      %p340 = por %p338, %p339
      %p342 = scmp.ne.s32.totalorder %s327, %s341
      %p343 = scmp.eq.s32.totalorder %s36, 0
      %p344 = por %p342, %p343
      %s346 = sadd.s32 %s345, 1
      %p349 = scmp.eq.s32.totalorder %s30, 6
      %p350 = scmp.ne.s32.totalorder %s345, %s347
      %p351 = scmp.eq.s32.totalorder %s30, 0
      %p352 = por %p350, %p351
      %p353 = scmp.ne.s32.totalorder %s345, %s347
      %p354 = scmp.eq.s32.totalorder %s35, 6
      %p355 = por %p353, %p354
      %p356 = scmp.ne.s32.totalorder %s347, %s348
      %p357 = scmp.eq.s32.totalorder %s35, 0
      %p358 = por %p356, %p357
      %p359 = scmp.ne.s32.totalorder %s347, %s348
      %p360 = scmp.eq.s32.totalorder %s36, 6
      %p361 = por %p359, %p360
      %p363 = scmp.ne.s32.totalorder %s348, %s362
      %p364 = scmp.eq.s32.totalorder %s36, 0
      %p365 = por %p363, %p364
      %s366 = ssub.s32 %s38, %s45
      %s367 = ssub.s32 %s37, %s49
      %s368 = sor.u32 %s366, %s367
      %p369 = scmp.eq.s32.totalorder %s368, 0
      %s371 = sadd.s32 %s370, 1
      %s372 = scalar_select %p369, %s370, %s371
      %p375 = pneg %p369
      %p376 = scmp.eq.s32.totalorder %s30, 6
      %p377 = por %p375, %p376
      %p378 = scmp.ne.s32.totalorder %s370, %s373
      %p379 = scmp.eq.s32.totalorder %s30, 0
      %p380 = por %p378, %p379
      %p381 = scmp.ne.s32.totalorder %s370, %s373
      %p382 = scmp.eq.s32.totalorder %s35, 6
      %p383 = por %p381, %p382
      %p384 = scmp.ne.s32.totalorder %s373, %s374
      %p385 = scmp.eq.s32.totalorder %s35, 0
      %p386 = por %p384, %p385
      %p387 = scmp.ne.s32.totalorder %s373, %s374
      %p388 = scmp.eq.s32.totalorder %s36, 6
      %p389 = por %p387, %p388
      %p391 = scmp.ne.s32.totalorder %s374, %s390
      %p392 = scmp.eq.s32.totalorder %s36, 0
      %p393 = por %p391, %p392
      %s394 = ssub.s32 %s38, %s45
      %s395 = ssub.s32 %s37, %s49
      %s396 = sor.u32 %s394, %s395
      %p397 = scmp.eq.s32.totalorder %s396, 0
      %s399 = sadd.s32 %s398, 1
      %s400 = scalar_select %p397, %s398, %s399
      %p403 = pneg %p397
      %p404 = scmp.eq.s32.totalorder %s30, 6
      %p405 = por %p403, %p404
      %p406 = scmp.ne.s32.totalorder %s398, %s401
      %p407 = scmp.eq.s32.totalorder %s30, 0
      %p408 = por %p406, %p407
      %p409 = scmp.ne.s32.totalorder %s398, %s401
      %p410 = scmp.eq.s32.totalorder %s35, 6
      %p411 = por %p409, %p410
      %p412 = scmp.ne.s32.totalorder %s401, %s402
      %p413 = scmp.eq.s32.totalorder %s35, 0
      %p414 = por %p412, %p413
      %p415 = scmp.ne.s32.totalorder %s401, %s402
      %p416 = scmp.eq.s32.totalorder %s36, 6
      %p417 = por %p415, %p416
      %p419 = scmp.ne.s32.totalorder %s402, %s418
      %p420 = scmp.eq.s32.totalorder %s36, 0
      %p421 = por %p419, %p420
      %p422 = scmp.le.s32.totalorder 1, %s30
      %p423 = scmp.lt.s32.totalorder %s30, 8
      %p424 = pnand %p422, %p423
      %p425 = pneg %p424
      // Predicated region
      $region9: #{tpu_custom_call.1} parent=5 // pred_check
        _
      $region10: #{tpu_custom_call.1} parent=5 // pred_check_branch
        %427 = sbr.rel (%p424) target = $region12
      $region11: #{tpu_custom_call.1} parent=5 // pred_region
        %s428 = ssub.s32 %s30, 1
        // Predicated region
        $region13: #{tpu_custom_call.1} parent=11 // pred_check
          %p429 = pneg %p68
        $region14: #{tpu_custom_call.1} parent=11 // pred_check_branch
          %431 = sbr.rel (%p429) target = $region16
        $region15: #{tpu_custom_call.1} parent=11 // pred_region
          %p432 = scmp.lt.s32.totalorder %s39, 0
          %s433 = scalar_select %p432, %s39, 0
          %s434 = smul.addr %s433, 8
          %s435 = scalar_lea.vmem %s0, %s434
        $region16: #{tpu_custom_call.1} parent=11 // pred_fallthru
          _
        // Predicated region
        $region17: #{tpu_custom_call.1} parent=11 // pred_check
          %p436 = pneg %p94
        $region18: #{tpu_custom_call.1} parent=11 // pred_check_branch
          %438 = sbr.rel (%p436) target = $region20
        $region19: #{tpu_custom_call.1} parent=11 // pred_region
          %s439 = smul.u32 8, %s39
          %p440 = scmp.lt.s32.totalorder %s439, 7
          %s441 = scalar_select %p440, %s439, 7
          %s442 = smul.addr %s441, 16
          %s443 = smul.addr %s442, 8
          %s444 = scalar_lea.vmem %s1, %s443
          %s445 = smul.u32 8, %s39
        $region20: #{tpu_custom_call.1} parent=11 // pred_fallthru
          _
        // Predicated region
        $region21: #{tpu_custom_call.1} parent=11 // pred_check
          %p446 = pneg %p120
        $region22: #{tpu_custom_call.1} parent=11 // pred_check_branch
          %448 = sbr.rel (%p446) target = $region24
        $region23: #{tpu_custom_call.1} parent=11 // pred_region
          %s449 = smul.u32 8, %s39
          %p450 = scmp.lt.s32.totalorder %s449, 7
          %s451 = scalar_select %p450, %s449, 7
          %s452 = smul.addr %s451, 16
          %s453 = smul.addr %s452, 8
          %s454 = scalar_lea.vmem %s2, %s453
          %s455 = smul.u32 8, %s39
        $region24: #{tpu_custom_call.1} parent=11 // pred_fallthru
          _
        // Predicated region
        $region25: #{tpu_custom_call.1} parent=11 // pred_check
          %p456 = pneg %p169
        $region26: #{tpu_custom_call.1} parent=11 // pred_check_branch
          %458 = sbr.rel (%p456) target = $region28
        $region27: #{tpu_custom_call.1} parent=11 // pred_region
          _
        $region28: #{tpu_custom_call.1} parent=11 // pred_fallthru
          _
        // Predicated region
        $region29: #{tpu_custom_call.1} parent=11 // pred_check
          %p459 = pneg %p190
        $region30: #{tpu_custom_call.1} parent=11 // pred_check_branch
          %461 = sbr.rel (%p459) target = $region32
        $region31: #{tpu_custom_call.1} parent=11 // pred_region
          _
        $region32: #{tpu_custom_call.1} parent=11 // pred_fallthru
          _
        // Predicated region
        $region33: #{tpu_custom_call.1} parent=11 // pred_check
          %p462 = pneg %p211
        $region34: #{tpu_custom_call.1} parent=11 // pred_check_branch
          %464 = sbr.rel (%p462) target = $region36
        $region35: #{tpu_custom_call.1} parent=11 // pred_region
          _
        $region36: #{tpu_custom_call.1} parent=11 // pred_fallthru
          _
        // Predicated region
        $region37: #{tpu_custom_call.1} parent=11 // pred_check
          %p465 = pneg %p232
        $region38: #{tpu_custom_call.1} parent=11 // pred_check_branch
          %467 = sbr.rel (%p465) target = $region40
        $region39: #{tpu_custom_call.1} parent=11 // pred_region
          _
        $region40: #{tpu_custom_call.1} parent=11 // pred_fallthru
          _
        // Predicated region
        $region41: #{tpu_custom_call.1} parent=11 // pred_check
          %p468 = pneg %p253
        $region42: #{tpu_custom_call.1} parent=11 // pred_check_branch
          %470 = sbr.rel (%p468) target = $region44
        $region43: #{tpu_custom_call.1} parent=11 // pred_region
          _
        $region44: #{tpu_custom_call.1} parent=11 // pred_fallthru
          _
        // Predicated region
        $region45: #{tpu_custom_call.1} parent=11 // pred_check
          %p471 = pneg %p274
        $region46: #{tpu_custom_call.1} parent=11 // pred_check_branch
          %473 = sbr.rel (%p471) target = $region48
        $region47: #{tpu_custom_call.1} parent=11 // pred_region
          _
        $region48: #{tpu_custom_call.1} parent=11 // pred_fallthru
          _
        // Predicated region
        $region49: #{tpu_custom_call.1} parent=11 // pred_check
          %p474 = pneg %p295
        $region50: #{tpu_custom_call.1} parent=11 // pred_check_branch
          %476 = sbr.rel (%p474) target = $region52
        $region51: #{tpu_custom_call.1} parent=11 // pred_region
          _
        $region52: #{tpu_custom_call.1} parent=11 // pred_fallthru
          _
        // Predicated region
        $region53: #{tpu_custom_call.1} parent=11 // pred_check
          %p477 = pneg %p316
        $region54: #{tpu_custom_call.1} parent=11 // pred_check_branch
          %479 = sbr.rel (%p477) target = $region56
        $region55: #{tpu_custom_call.1} parent=11 // pred_region
          _
        $region56: #{tpu_custom_call.1} parent=11 // pred_fallthru
          _
        // Predicated region
        $region57: #{tpu_custom_call.1} parent=11 // pred_check
          %p480 = pneg %p337
        $region58: #{tpu_custom_call.1} parent=11 // pred_check_branch
          %482 = sbr.rel (%p480) target = $region60
        $region59: #{tpu_custom_call.1} parent=11 // pred_region
          _
        $region60: #{tpu_custom_call.1} parent=11 // pred_fallthru
          _
        // Predicated region
        $region61: #{tpu_custom_call.1} parent=11 // pred_check
          %p483 = pneg %p358
        $region62: #{tpu_custom_call.1} parent=11 // pred_check_branch
          %485 = sbr.rel (%p483) target = $region64
        $region63: #{tpu_custom_call.1} parent=11 // pred_region
          _
        $region64: #{tpu_custom_call.1} parent=11 // pred_fallthru
          _
      $region12: #{tpu_custom_call.1} parent=5 // pred_fallthru
        _
      %p486 = scmp.lt.s32.totalorder %s30, 7
      // Predicated region
      $region65: #{tpu_custom_call.1} parent=5 // pred_check
        %p487 = pneg %p486
      $region66: #{tpu_custom_call.1} parent=5 // pred_check_branch
        %489 = sbr.rel (%p487) target = $region68
      $region67: #{tpu_custom_call.1} parent=5 // pred_region
        // Predicated region
        $region69: #{tpu_custom_call.1} parent=67 // pred_check
          %p490 = pneg %p142
        $region70: #{tpu_custom_call.1} parent=67 // pred_check_branch
          %492 = sbr.rel (%p490) target = $region72
        $region71: #{tpu_custom_call.1} parent=67 // pred_region
          %p493 = scmp.lt.s32.totalorder %s38, 6
          %s494 = scalar_select %p493, %s38, 6
          %p495 = scmp.lt.s32.totalorder %s37, 0
          %s496 = scalar_select %p495, %s37, 0
          %s497 = sadd.s32 %s496, %s494
          %s498 = smul.addr %s497, 8
          %s499 = scalar_lea.vmem %s3, %s498
        $region72: #{tpu_custom_call.1} parent=67 // pred_fallthru
          _
      $region68: #{tpu_custom_call.1} parent=5 // pred_fallthru
        _
      %p500 = scmp.le.s32.totalorder 1, %s30
      %p501 = scmp.lt.s32.totalorder %s30, 8
      %p502 = pnand %p500, %p501
      %p503 = pneg %p502
      // Predicated region
      $region73: #{tpu_custom_call.1} parent=5 // pred_check
        _
      $region74: #{tpu_custom_call.1} parent=5 // pred_check_branch
        %505 = sbr.rel (%p502) target = $region76
      $region75: #{tpu_custom_call.1} parent=5 // pred_region
        %s506 = ssub.s32 %s30, 1
        %p507 = scmp.lt.s32.totalorder %s39, 0
        %s508 = scalar_select %p507, %s39, 0
        %s509 = smul.addr %s508, 8
        %s510 = scalar_lea.vmem %s0, %s509
        %p511 = pneg %p68
        %p512 = pneg %p65
        %s513 = smul.u32 8, %s39
        %p514 = scmp.lt.s32.totalorder %s513, 7
        %s515 = scalar_select %p514, %s513, 7
        %s516 = smul.addr %s515, 16
        %s517 = smul.addr %s516, 8
        %s518 = scalar_lea.vmem %s1, %s517
        %p519 = pneg %p94
        %p520 = pneg %p91
        %s521 = smul.u32 8, %s39
        %p522 = scmp.lt.s32.totalorder %s521, 7
        %s523 = scalar_select %p522, %s521, 7
        %s524 = smul.addr %s523, 16
        %s525 = smul.addr %s524, 8
        %s526 = scalar_lea.vmem %s2, %s525
        %p527 = pneg %p120
        %p528 = pneg %p117
        %p529 = scmp.lt.s32.totalorder %s40, 6
        %s530 = scalar_select %p529, %s40, 6
        %p531 = scmp.lt.s32.totalorder %s39, 0
        %s532 = scalar_select %p531, %s39, 0
        %s533 = sadd.s32 %s532, %s530
        %s534 = smul.addr %s533, 8
        %s535 = scalar_lea.vmem %s3, %s534
        %p536 = pneg %p148
        %p537 = pneg %p145
        %p538 = pneg %p169
        %p539 = pneg %p166
        %p540 = pneg %p190
        %p541 = pneg %p187
        %p542 = pneg %p211
        %p543 = pneg %p208
        %p544 = pneg %p232
        %p545 = pneg %p229
        %p546 = pneg %p253
        %p547 = pneg %p250
        %p548 = pneg %p274
        %p549 = pneg %p271
        %p550 = pneg %p295
        %p551 = pneg %p292
        %p552 = pneg %p316
        %p553 = pneg %p313
        %p554 = pneg %p337
        %p555 = pneg %p334
        %p556 = pneg %p358
        %p557 = pneg %p355
        %p558 = pneg %p386
        %p559 = pneg %p383
        %s560 = sand.u32 %s373, 1
        %s561 = scalar_lea.sflag [#allocation6], %s560
        %s562 = sand.u32 %s373, 1
        %s563 = smul.addr %s562, 8
        %s564 = scalar_lea.vmem [#allocation5], %s563
        %p565 = pneg %p414
        %p566 = pneg %p411
        %s567 = sand.u32 %s401, 1
        %s568 = scalar_lea.sflag [#allocation8], %s567
        %s569 = sand.u32 %s401, 1
        %s570 = smul.addr %s569, 8
        %s571 = scalar_lea.vmem [#allocation7], %s570
        %p572 = scmp.lt.s32.totalorder %s39, 0
        %s573 = scalar_select %p572, %s39, 0
        %s574 = smul.addr %s573, 8
        %s575 = scalar_lea.vmem %s0, %s574
        %s576 = smul.u32 8, %s39
        %p577 = scmp.lt.s32.totalorder %s576, 7
        %s578 = scalar_select %p577, %s576, 7
        %s579 = smul.addr %s578, 16
        %s580 = smul.addr %s579, 8
        %s581 = scalar_lea.vmem %s1, %s580
        %s582 = smul.u32 8, %s39
        %s583 = smul.u32 8, %s39
        %p584 = scmp.lt.s32.totalorder %s583, 7
        %s585 = scalar_select %p584, %s583, 7
        %s586 = smul.addr %s585, 16
        %s587 = smul.addr %s586, 8
        %s588 = scalar_lea.vmem %s2, %s587
        %s589 = smul.u32 8, %s39
        %p590 = scmp.lt.s32.totalorder %s40, 6
        %s591 = scalar_select %p590, %s40, 6
        %p592 = scmp.lt.s32.totalorder %s39, 0
        %s593 = scalar_select %p592, %s39, 0
        %s594 = sadd.s32 %s593, %s591
        %s595 = smul.addr %s594, 8
        %s596 = scalar_lea.vmem %s3, %s595
        %p597 = scmp.eq.s32.totalorder %s40, 0
        // Predicated region
        $region77: #{tpu_custom_call.1} parent=75 // pred_check
          %p598 = pneg %p597
        $region78: #{tpu_custom_call.1} parent=75 // pred_check_branch
          %600 = sbr.rel (%p598) target = $region80
        $region79: #{tpu_custom_call.1} parent=75 // pred_region
          %v601 = vld [vmem:[%s588] sm:$0xff]
          %v602 = vld [vmem:[%s588 + $0x8] sm:$0xff]
          %v603 = vld [vmem:[%s588 + $0x10] sm:$0xff]
          %v604 = vld [vmem:[%s588 + $0x18] sm:$0xff]
          %v605 = vld [vmem:[%s588 + $0x20] sm:$0xff]
          %v606 = vld [vmem:[%s588 + $0x28] sm:$0xff]
          %v607 = vld [vmem:[%s588 + $0x30] sm:$0xff]
          %v608 = vld [vmem:[%s588 + $0x38] sm:$0xff]
          %v609 = vld [vmem:[%s588 + $0x40] sm:$0xff]
          %v610 = vld [vmem:[%s588 + $0x48] sm:$0xff]
          %v611 = vld [vmem:[%s588 + $0x50] sm:$0xff]
          %v612 = vld [vmem:[%s588 + $0x58] sm:$0xff]
          %v613 = vld [vmem:[%s588 + $0x60] sm:$0xff]
          %v614 = vld [vmem:[%s588 + $0x68] sm:$0xff]
          %v615 = vld [vmem:[%s588 + $0x70] sm:$0xff]
          %v616 = vld [vmem:[%s588 + $0x78] sm:$0xff]
          %v617 = vld [vmem:[%s588 + $0x80] sm:$0xff]
          %v618 = vld [vmem:[%s588 + $0x88] sm:$0xff]
          %v619 = vld [vmem:[%s588 + $0x90] sm:$0xff]
          %v620 = vld [vmem:[%s588 + $0x98] sm:$0xff]
          %v621 = vld [vmem:[%s588 + $0xa0] sm:$0xff]
          %v622 = vld [vmem:[%s588 + $0xa8] sm:$0xff]
          %v623 = vld [vmem:[%s588 + $0xb0] sm:$0xff]
          %v624 = vld [vmem:[%s588 + $0xb8] sm:$0xff]
          %v625 = vld [vmem:[%s588 + $0xc0] sm:$0xff]
          %v626 = vld [vmem:[%s588 + $0xc8] sm:$0xff]
          %v627 = vld [vmem:[%s588 + $0xd0] sm:$0xff]
          %v628 = vld [vmem:[%s588 + $0xd8] sm:$0xff]
          %v629 = vld [vmem:[%s588 + $0xe0] sm:$0xff]
          %v630 = vld [vmem:[%s588 + $0xe8] sm:$0xff]
          %v631 = vld [vmem:[%s588 + $0xf0] sm:$0xff]
          %v632 = vld [vmem:[%s588 + $0xf8] sm:$0xff]
          %v633 = vld [vmem:[%s588 + $0x100] sm:$0xff]
          %v634 = vld [vmem:[%s588 + $0x108] sm:$0xff]
          %v635 = vld [vmem:[%s588 + $0x110] sm:$0xff]
          %v636 = vld [vmem:[%s588 + $0x118] sm:$0xff]
          %v637 = vld [vmem:[%s588 + $0x120] sm:$0xff]
          %v638 = vld [vmem:[%s588 + $0x128] sm:$0xff]
          %v639 = vld [vmem:[%s588 + $0x130] sm:$0xff]
          %v640 = vld [vmem:[%s588 + $0x138] sm:$0xff]
          %v641 = vld [vmem:[%s588 + $0x140] sm:$0xff]
          %v642 = vld [vmem:[%s588 + $0x148] sm:$0xff]
          %v643 = vld [vmem:[%s588 + $0x150] sm:$0xff]
          %v644 = vld [vmem:[%s588 + $0x158] sm:$0xff]
          %v645 = vld [vmem:[%s588 + $0x160] sm:$0xff]
          %v646 = vld [vmem:[%s588 + $0x168] sm:$0xff]
          %v647 = vld [vmem:[%s588 + $0x170] sm:$0xff]
          %v648 = vld [vmem:[%s588 + $0x178] sm:$0xff]
          %v649 = vld [vmem:[%s588 + $0x180] sm:$0xff]
          %v650 = vld [vmem:[%s588 + $0x188] sm:$0xff]
          %v651 = vld [vmem:[%s588 + $0x190] sm:$0xff]
          %v652 = vld [vmem:[%s588 + $0x198] sm:$0xff]
          %v653 = vld [vmem:[%s588 + $0x1a0] sm:$0xff]
          %v654 = vld [vmem:[%s588 + $0x1a8] sm:$0xff]
          %v655 = vld [vmem:[%s588 + $0x1b0] sm:$0xff]
          %v656 = vld [vmem:[%s588 + $0x1b8] sm:$0xff]
          %v657 = vld [vmem:[%s588 + $0x1c0] sm:$0xff]
          %v658 = vld [vmem:[%s588 + $0x1c8] sm:$0xff]
          %v659 = vld [vmem:[%s588 + $0x1d0] sm:$0xff]
          %v660 = vld [vmem:[%s588 + $0x1d8] sm:$0xff]
          %v661 = vld [vmem:[%s588 + $0x1e0] sm:$0xff]
          %v662 = vld [vmem:[%s588 + $0x1e8] sm:$0xff]
          %v663 = vld [vmem:[%s588 + $0x1f0] sm:$0xff]
          %v664 = vld [vmem:[%s588 + $0x1f8] sm:$0xff]
          %v665 = vld [vmem:[%s588 + $0x200] sm:$0xff]
          %v666 = vld [vmem:[%s588 + $0x208] sm:$0xff]
          %v667 = vld [vmem:[%s588 + $0x210] sm:$0xff]
          %v668 = vld [vmem:[%s588 + $0x218] sm:$0xff]
          %v669 = vld [vmem:[%s588 + $0x220] sm:$0xff]
          %v670 = vld [vmem:[%s588 + $0x228] sm:$0xff]
          %v671 = vld [vmem:[%s588 + $0x230] sm:$0xff]
          %v672 = vld [vmem:[%s588 + $0x238] sm:$0xff]
          %v673 = vld [vmem:[%s588 + $0x240] sm:$0xff]
          %v674 = vld [vmem:[%s588 + $0x248] sm:$0xff]
          %v675 = vld [vmem:[%s588 + $0x250] sm:$0xff]
          %v676 = vld [vmem:[%s588 + $0x258] sm:$0xff]
          %v677 = vld [vmem:[%s588 + $0x260] sm:$0xff]
          %v678 = vld [vmem:[%s588 + $0x268] sm:$0xff]
          %v679 = vld [vmem:[%s588 + $0x270] sm:$0xff]
          %v680 = vld [vmem:[%s588 + $0x278] sm:$0xff]
          %v681 = vld [vmem:[%s588 + $0x280] sm:$0xff]
          %v682 = vld [vmem:[%s588 + $0x288] sm:$0xff]
          %v683 = vld [vmem:[%s588 + $0x290] sm:$0xff]
          %v684 = vld [vmem:[%s588 + $0x298] sm:$0xff]
          %v685 = vld [vmem:[%s588 + $0x2a0] sm:$0xff]
          %v686 = vld [vmem:[%s588 + $0x2a8] sm:$0xff]
          %v687 = vld [vmem:[%s588 + $0x2b0] sm:$0xff]
          %v688 = vld [vmem:[%s588 + $0x2b8] sm:$0xff]
          %v689 = vld [vmem:[%s588 + $0x2c0] sm:$0xff]
          %v690 = vld [vmem:[%s588 + $0x2c8] sm:$0xff]
          %v691 = vld [vmem:[%s588 + $0x2d0] sm:$0xff]
          %v692 = vld [vmem:[%s588 + $0x2d8] sm:$0xff]
          %v693 = vld [vmem:[%s588 + $0x2e0] sm:$0xff]
          %v694 = vld [vmem:[%s588 + $0x2e8] sm:$0xff]
          %v695 = vld [vmem:[%s588 + $0x2f0] sm:$0xff]
          %v696 = vld [vmem:[%s588 + $0x2f8] sm:$0xff]
          %v697 = vld [vmem:[%s588 + $0x300] sm:$0xff]
          %v698 = vld [vmem:[%s588 + $0x308] sm:$0xff]
          %v699 = vld [vmem:[%s588 + $0x310] sm:$0xff]
          %v700 = vld [vmem:[%s588 + $0x318] sm:$0xff]
          %v701 = vld [vmem:[%s588 + $0x320] sm:$0xff]
          %v702 = vld [vmem:[%s588 + $0x328] sm:$0xff]
          %v703 = vld [vmem:[%s588 + $0x330] sm:$0xff]
          %v704 = vld [vmem:[%s588 + $0x338] sm:$0xff]
          %v705 = vld [vmem:[%s588 + $0x340] sm:$0xff]
          %v706 = vld [vmem:[%s588 + $0x348] sm:$0xff]
          %v707 = vld [vmem:[%s588 + $0x350] sm:$0xff]
          %v708 = vld [vmem:[%s588 + $0x358] sm:$0xff]
          %v709 = vld [vmem:[%s588 + $0x360] sm:$0xff]
          %v710 = vld [vmem:[%s588 + $0x368] sm:$0xff]
          %v711 = vld [vmem:[%s588 + $0x370] sm:$0xff]
          %v712 = vld [vmem:[%s588 + $0x378] sm:$0xff]
          %v713 = vld [vmem:[%s588 + $0x380] sm:$0xff]
          %v714 = vld [vmem:[%s588 + $0x388] sm:$0xff]
          %v715 = vld [vmem:[%s588 + $0x390] sm:$0xff]
          %v716 = vld [vmem:[%s588 + $0x398] sm:$0xff]
          %v717 = vld [vmem:[%s588 + $0x3a0] sm:$0xff]
          %v718 = vld [vmem:[%s588 + $0x3a8] sm:$0xff]
          %v719 = vld [vmem:[%s588 + $0x3b0] sm:$0xff]
          %v720 = vld [vmem:[%s588 + $0x3b8] sm:$0xff]
          %v721 = vld [vmem:[%s588 + $0x3c0] sm:$0xff]
          %v722 = vld [vmem:[%s588 + $0x3c8] sm:$0xff]
          %v723 = vld [vmem:[%s588 + $0x3d0] sm:$0xff]
          %v724 = vld [vmem:[%s588 + $0x3d8] sm:$0xff]
          %v725 = vld [vmem:[%s588 + $0x3e0] sm:$0xff]
          %v726 = vld [vmem:[%s588 + $0x3e8] sm:$0xff]
          %v727 = vld [vmem:[%s588 + $0x3f0] sm:$0xff]
          %v728 = vld [vmem:[%s588 + $0x3f8] sm:$0xff]
          %vm729 = vcmask 261120
          %v730 = vsel %vm729, %v601, 0.0
          %v731 = vsel %vm729, %v602, 0.0
          %v732 = vadd.f32 %v730, %v731
          %v733 = vsel %vm729, %v603, 0.0
          %v734 = vadd.f32 %v732, %v733
          %v735 = vsel %vm729, %v604, 0.0
          %v736 = vadd.f32 %v734, %v735
          %v737 = vsel %vm729, %v605, 0.0
          %v738 = vadd.f32 %v736, %v737
          %v739 = vsel %vm729, %v606, 0.0
          %v740 = vadd.f32 %v738, %v739
          %v741 = vsel %vm729, %v607, 0.0
          %v742 = vadd.f32 %v740, %v741
          %v743 = vsel %vm729, %v608, 0.0
          %v744 = vadd.f32 %v742, %v743
          %v745 = vsel %vm729, %v609, 0.0
          %v746 = vadd.f32 %v744, %v745
          %v747 = vsel %vm729, %v610, 0.0
          %v748 = vadd.f32 %v746, %v747
          %v749 = vsel %vm729, %v611, 0.0
          %v750 = vadd.f32 %v748, %v749
          %v751 = vsel %vm729, %v612, 0.0
          %v752 = vadd.f32 %v750, %v751
          %v753 = vsel %vm729, %v613, 0.0
          %v754 = vadd.f32 %v752, %v753
          %v755 = vsel %vm729, %v614, 0.0
          %v756 = vadd.f32 %v754, %v755
          %v757 = vsel %vm729, %v615, 0.0
          %v758 = vadd.f32 %v756, %v757
          %v759 = vsel %vm729, %v616, 0.0
          %v760 = vadd.f32 %v758, %v759
          %v761 = vrot.slane %v760, 4
          %v762 = vadd.f32 %v760, %v761
          %v763 = vrot.slane %v762, 2
          %v764 = vadd.f32 %v762, %v763
          %v765 = vrot.slane %v764, 1
          %v766 = vadd.f32 %v764, %v765
          %v767 = vsel %vm729, %v617, 0.0
          %v768 = vsel %vm729, %v618, 0.0
          %v769 = vadd.f32 %v767, %v768
          %v770 = vsel %vm729, %v619, 0.0
          %v771 = vadd.f32 %v769, %v770
          %v772 = vsel %vm729, %v620, 0.0
          %v773 = vadd.f32 %v771, %v772
          %v774 = vsel %vm729, %v621, 0.0
          %v775 = vadd.f32 %v773, %v774
          %v776 = vsel %vm729, %v622, 0.0
          %v777 = vadd.f32 %v775, %v776
          %v778 = vsel %vm729, %v623, 0.0
          %v779 = vadd.f32 %v777, %v778
          %v780 = vsel %vm729, %v624, 0.0
          %v781 = vadd.f32 %v779, %v780
          %v782 = vsel %vm729, %v625, 0.0
          %v783 = vadd.f32 %v781, %v782
          %v784 = vsel %vm729, %v626, 0.0
          %v785 = vadd.f32 %v783, %v784
          %v786 = vsel %vm729, %v627, 0.0
          %v787 = vadd.f32 %v785, %v786
          %v788 = vsel %vm729, %v628, 0.0
          %v789 = vadd.f32 %v787, %v788
          %v790 = vsel %vm729, %v629, 0.0
          %v791 = vadd.f32 %v789, %v790
          %v792 = vsel %vm729, %v630, 0.0
          %v793 = vadd.f32 %v791, %v792
          %v794 = vsel %vm729, %v631, 0.0
          %v795 = vadd.f32 %v793, %v794
          %v796 = vsel %vm729, %v632, 0.0
          %v797 = vadd.f32 %v795, %v796
          %v798 = vrot.slane %v797, 4
          %v799 = vadd.f32 %v797, %v798
          %v800 = vrot.slane %v799, 2
          %v801 = vadd.f32 %v799, %v800
          %v802 = vrot.slane %v801, 1
          %v803 = vadd.f32 %v801, %v802
          %v804 = vsel %vm729, %v633, 0.0
          %v805 = vsel %vm729, %v634, 0.0
          %v806 = vadd.f32 %v804, %v805
          %v807 = vsel %vm729, %v635, 0.0
          %v808 = vadd.f32 %v806, %v807
          %v809 = vsel %vm729, %v636, 0.0
          %v810 = vadd.f32 %v808, %v809
          %v811 = vsel %vm729, %v637, 0.0
          %v812 = vadd.f32 %v810, %v811
          %v813 = vsel %vm729, %v638, 0.0
          %v814 = vadd.f32 %v812, %v813
          %v815 = vsel %vm729, %v639, 0.0
          %v816 = vadd.f32 %v814, %v815
          %v817 = vsel %vm729, %v640, 0.0
          %v818 = vadd.f32 %v816, %v817
          %v819 = vsel %vm729, %v641, 0.0
          %v820 = vadd.f32 %v818, %v819
          %v821 = vsel %vm729, %v642, 0.0
          %v822 = vadd.f32 %v820, %v821
          %v823 = vsel %vm729, %v643, 0.0
          %v824 = vadd.f32 %v822, %v823
          %v825 = vsel %vm729, %v644, 0.0
          %v826 = vadd.f32 %v824, %v825
          %v827 = vsel %vm729, %v645, 0.0
          %v828 = vadd.f32 %v826, %v827
          %v829 = vsel %vm729, %v646, 0.0
          %v830 = vadd.f32 %v828, %v829
          %v831 = vsel %vm729, %v647, 0.0
          %v832 = vadd.f32 %v830, %v831
          %v833 = vsel %vm729, %v648, 0.0
          %v834 = vadd.f32 %v832, %v833
          %v835 = vrot.slane %v834, 4
          %v836 = vadd.f32 %v834, %v835
          %v837 = vrot.slane %v836, 2
          %v838 = vadd.f32 %v836, %v837
          %v839 = vrot.slane %v838, 1
          %v840 = vadd.f32 %v838, %v839
          %v841 = vsel %vm729, %v649, 0.0
          %v842 = vsel %vm729, %v650, 0.0
          %v843 = vadd.f32 %v841, %v842
          %v844 = vsel %vm729, %v651, 0.0
          %v845 = vadd.f32 %v843, %v844
          %v846 = vsel %vm729, %v652, 0.0
          %v847 = vadd.f32 %v845, %v846
          %v848 = vsel %vm729, %v653, 0.0
          %v849 = vadd.f32 %v847, %v848
          %v850 = vsel %vm729, %v654, 0.0
          %v851 = vadd.f32 %v849, %v850
          %v852 = vsel %vm729, %v655, 0.0
          %v853 = vadd.f32 %v851, %v852
          %v854 = vsel %vm729, %v656, 0.0
          %v855 = vadd.f32 %v853, %v854
          %v856 = vsel %vm729, %v657, 0.0
          %v857 = vadd.f32 %v855, %v856
          %v858 = vsel %vm729, %v658, 0.0
          %v859 = vadd.f32 %v857, %v858
          %v860 = vsel %vm729, %v659, 0.0
          %v861 = vadd.f32 %v859, %v860
          %v862 = vsel %vm729, %v660, 0.0
          %v863 = vadd.f32 %v861, %v862
          %v864 = vsel %vm729, %v661, 0.0
          %v865 = vadd.f32 %v863, %v864
          %v866 = vsel %vm729, %v662, 0.0
          %v867 = vadd.f32 %v865, %v866
          %v868 = vsel %vm729, %v663, 0.0
          %v869 = vadd.f32 %v867, %v868
          %v870 = vsel %vm729, %v664, 0.0
          %v871 = vadd.f32 %v869, %v870
          %v872 = vrot.slane %v871, 4
          %v873 = vadd.f32 %v871, %v872
          %v874 = vrot.slane %v873, 2
          %v875 = vadd.f32 %v873, %v874
          %v876 = vrot.slane %v875, 1
          %v877 = vadd.f32 %v875, %v876
          %v878 = vsel %vm729, %v665, 0.0
          %v879 = vsel %vm729, %v666, 0.0
          %v880 = vadd.f32 %v878, %v879
          %v881 = vsel %vm729, %v667, 0.0
          %v882 = vadd.f32 %v880, %v881
          %v883 = vsel %vm729, %v668, 0.0
          %v884 = vadd.f32 %v882, %v883
          %v885 = vsel %vm729, %v669, 0.0
          %v886 = vadd.f32 %v884, %v885
          %v887 = vsel %vm729, %v670, 0.0
          %v888 = vadd.f32 %v886, %v887
          %v889 = vsel %vm729, %v671, 0.0
          %v890 = vadd.f32 %v888, %v889
          %v891 = vsel %vm729, %v672, 0.0
          %v892 = vadd.f32 %v890, %v891
          %v893 = vsel %vm729, %v673, 0.0
          %v894 = vadd.f32 %v892, %v893
          %v895 = vsel %vm729, %v674, 0.0
          %v896 = vadd.f32 %v894, %v895
          %v897 = vsel %vm729, %v675, 0.0
          %v898 = vadd.f32 %v896, %v897
          %v899 = vsel %vm729, %v676, 0.0
          %v900 = vadd.f32 %v898, %v899
          %v901 = vsel %vm729, %v677, 0.0
          %v902 = vadd.f32 %v900, %v901
          %v903 = vsel %vm729, %v678, 0.0
          %v904 = vadd.f32 %v902, %v903
          %v905 = vsel %vm729, %v679, 0.0
          %v906 = vadd.f32 %v904, %v905
          %v907 = vsel %vm729, %v680, 0.0
          %v908 = vadd.f32 %v906, %v907
          %v909 = vrot.slane %v908, 4
          %v910 = vadd.f32 %v908, %v909
          %v911 = vrot.slane %v910, 2
          %v912 = vadd.f32 %v910, %v911
          %v913 = vrot.slane %v912, 1
          %v914 = vadd.f32 %v912, %v913
          %v915 = vsel %vm729, %v681, 0.0
          %v916 = vsel %vm729, %v682, 0.0
          %v917 = vadd.f32 %v915, %v916
          %v918 = vsel %vm729, %v683, 0.0
          %v919 = vadd.f32 %v917, %v918
          %v920 = vsel %vm729, %v684, 0.0
          %v921 = vadd.f32 %v919, %v920
          %v922 = vsel %vm729, %v685, 0.0
          %v923 = vadd.f32 %v921, %v922
          %v924 = vsel %vm729, %v686, 0.0
          %v925 = vadd.f32 %v923, %v924
          %v926 = vsel %vm729, %v687, 0.0
          %v927 = vadd.f32 %v925, %v926
          %v928 = vsel %vm729, %v688, 0.0
          %v929 = vadd.f32 %v927, %v928
          %v930 = vsel %vm729, %v689, 0.0
          %v931 = vadd.f32 %v929, %v930
          %v932 = vsel %vm729, %v690, 0.0
          %v933 = vadd.f32 %v931, %v932
          %v934 = vsel %vm729, %v691, 0.0
          %v935 = vadd.f32 %v933, %v934
          %v936 = vsel %vm729, %v692, 0.0
          %v937 = vadd.f32 %v935, %v936
          %v938 = vsel %vm729, %v693, 0.0
          %v939 = vadd.f32 %v937, %v938
          %v940 = vsel %vm729, %v694, 0.0
          %v941 = vadd.f32 %v939, %v940
          %v942 = vsel %vm729, %v695, 0.0
          %v943 = vadd.f32 %v941, %v942
          %v944 = vsel %vm729, %v696, 0.0
          %v945 = vadd.f32 %v943, %v944
          %v946 = vrot.slane %v945, 4
          %v947 = vadd.f32 %v945, %v946
          %v948 = vrot.slane %v947, 2
          %v949 = vadd.f32 %v947, %v948
          %v950 = vrot.slane %v949, 1
          %v951 = vadd.f32 %v949, %v950
          %v952 = vsel %vm729, %v697, 0.0
          %v953 = vsel %vm729, %v698, 0.0
          %v954 = vadd.f32 %v952, %v953
          %v955 = vsel %vm729, %v699, 0.0
          %v956 = vadd.f32 %v954, %v955
          %v957 = vsel %vm729, %v700, 0.0
          %v958 = vadd.f32 %v956, %v957
          %v959 = vsel %vm729, %v701, 0.0
          %v960 = vadd.f32 %v958, %v959
          %v961 = vsel %vm729, %v702, 0.0
          %v962 = vadd.f32 %v960, %v961
          %v963 = vsel %vm729, %v703, 0.0
          %v964 = vadd.f32 %v962, %v963
          %v965 = vsel %vm729, %v704, 0.0
          %v966 = vadd.f32 %v964, %v965
          %v967 = vsel %vm729, %v705, 0.0
          %v968 = vadd.f32 %v966, %v967
          %v969 = vsel %vm729, %v706, 0.0
          %v970 = vadd.f32 %v968, %v969
          %v971 = vsel %vm729, %v707, 0.0
          %v972 = vadd.f32 %v970, %v971
          %v973 = vsel %vm729, %v708, 0.0
          %v974 = vadd.f32 %v972, %v973
          %v975 = vsel %vm729, %v709, 0.0
          %v976 = vadd.f32 %v974, %v975
          %v977 = vsel %vm729, %v710, 0.0
          %v978 = vadd.f32 %v976, %v977
          %v979 = vsel %vm729, %v711, 0.0
          %v980 = vadd.f32 %v978, %v979
          %v981 = vsel %vm729, %v712, 0.0
          %v982 = vadd.f32 %v980, %v981
          %v983 = vrot.slane %v982, 4
          %v984 = vadd.f32 %v982, %v983
          %v985 = vrot.slane %v984, 2
          %v986 = vadd.f32 %v984, %v985
          %v987 = vrot.slane %v986, 1
          %v988 = vadd.f32 %v986, %v987
          %v989 = vsel %vm729, %v713, 0.0
          %v990 = vsel %vm729, %v714, 0.0
          %v991 = vadd.f32 %v989, %v990
          %v992 = vsel %vm729, %v715, 0.0
          %v993 = vadd.f32 %v991, %v992
          %v994 = vsel %vm729, %v716, 0.0
          %v995 = vadd.f32 %v993, %v994
          %v996 = vsel %vm729, %v717, 0.0
          %v997 = vadd.f32 %v995, %v996
          %v998 = vsel %vm729, %v718, 0.0
          %v999 = vadd.f32 %v997, %v998
          %v1000 = vsel %vm729, %v719, 0.0
          %v1001 = vadd.f32 %v999, %v1000
          %v1002 = vsel %vm729, %v720, 0.0
          %v1003 = vadd.f32 %v1001, %v1002
          %v1004 = vsel %vm729, %v721, 0.0
          %v1005 = vadd.f32 %v1003, %v1004
          %v1006 = vsel %vm729, %v722, 0.0
          %v1007 = vadd.f32 %v1005, %v1006
          %v1008 = vsel %vm729, %v723, 0.0
          %v1009 = vadd.f32 %v1007, %v1008
          %v1010 = vsel %vm729, %v724, 0.0
          %v1011 = vadd.f32 %v1009, %v1010
          %v1012 = vsel %vm729, %v725, 0.0
          %v1013 = vadd.f32 %v1011, %v1012
          %v1014 = vsel %vm729, %v726, 0.0
          %v1015 = vadd.f32 %v1013, %v1014
          %v1016 = vsel %vm729, %v727, 0.0
          %v1017 = vadd.f32 %v1015, %v1016
          %v1018 = vsel %vm729, %v728, 0.0
          %v1019 = vadd.f32 %v1017, %v1018
          %v1020 = vrot.slane %v1019, 4
          %v1021 = vadd.f32 %v1019, %v1020
          %v1022 = vrot.slane %v1021, 2
          %v1023 = vadd.f32 %v1021, %v1022
          %v1024 = vrot.slane %v1023, 1
          %v1025 = vadd.f32 %v1023, %v1024
          %v1026 = vmul.f32 %v766, 0.0625
          %v1027 = vmul.f32 %v803, 0.0625
          %v1028 = vmul.f32 %v840, 0.0625
          %v1029 = vmul.f32 %v877, 0.0625
          %v1030 = vmul.f32 %v914, 0.0625
          %v1031 = vmul.f32 %v951, 0.0625
          %v1032 = vmul.f32 %v988, 0.0625
          %v1033 = vmul.f32 %v1025, 0.0625
          %v1034 = vld [vmem:[%s12] sm:$0xff]
          %v1035 = vld [vmem:[%s12 + $0x8] sm:$0xff]
          %v1036 = vld [vmem:[%s12 + $0x10] sm:$0xff]
          %v1037 = vld [vmem:[%s12 + $0x18] sm:$0xff]
          %v1038 = vld [vmem:[%s13] sm:$0x1]
          %v1040 = vlaneseq
          %v1041 = vshrl.u32 %v1040, 7
          %v1042 = vsub.s32 0, %v1041
          %v1043 = vrot.slane %v1038, %v1042
          %vm1053 = vcmask 1041409
          %v1054 = vsel %vm1053, %v1027, %v1026
          %vm1055 = vcmask 1042434
          %v1056 = vsel %vm1055, %v1028, %v1054
          %vm1057 = vcmask 1043459
          %v1058 = vsel %vm1057, %v1029, %v1056
          %vm1059 = vcmask 1044484
          %v1060 = vsel %vm1059, %v1030, %v1058
          %vm1061 = vcmask 1045509
          %v1062 = vsel %vm1061, %v1031, %v1060
          %vm1063 = vcmask 1046534
          %v1064 = vsel %vm1063, %v1032, %v1062
          %vm1065 = vcmask 1047559
          %v1066 = vsel %vm1065, %v1033, %v1064
          %v1067 = vsel %vm729, %v1066, 0
          %1069 = vmatprep.subr.mxu0 0.0
          %1070 = vmatpush1.msra.mxu0 0.0
          %1071 = vmatprep.subr.mxu0 0.0
          %1072 = vmatpush1.msra.mxu0 0.0
          %1073 = vmatprep.subr.mxu0 0.0
          %1074 = vmatpush1.msra.mxu0 0.0
          %1075 = vmatprep.subr.mxu0 0.0
          %1076 = vmatpush1.msra.mxu0 0.0
          %1077 = vmatprep.subr.mxu0 0.0
          %1078 = vmatpush1.msra.mxu0 0.0
          %1079 = vmatprep.subr.mxu0 0.0
          %1080 = vmatpush1.msra.mxu0 0.0
          %1081 = vmatprep.subr.mxu0 0.0
          %1082 = vmatpush1.msra.mxu0 0.0
          %1083 = vmatprep.subr.mxu0 0.0
          %1084 = vmatpush1.msra.mxu0 0.0
          %1085 = vmatprep.subr.mxu0 0.0
          %1086 = vmatpush1.msra.mxu0 0.0
          %1087 = vmatprep.subr.mxu0 0.0
          %1088 = vmatpush1.msra.mxu0 0.0
          %1089 = vmatprep.subr.mxu0 0.0
          %1090 = vmatpush1.msra.mxu0 0.0
          %1091 = vmatprep.subr.mxu0 0.0
          %1092 = vmatpush1.msra.mxu0 0.0
          %1093 = vmatprep.subr.mxu0 0.0
          %1094 = vmatpush1.msra.mxu0 %v1037
          %1095 = vmatprep.subr.mxu0 0.0
          %1096 = vmatpush1.msra.mxu0 %v1036
          %1097 = vmatprep.subr.mxu0 0.0
          %1098 = vmatpush1.msra.mxu0 %v1035
          %1099 = vmatprep.subr.mxu0 0.0
          %1100 = vmatpush1.msra.mxu0 %v1034
          %1101 = vmatprep.subr.mxu0 0.0
          %1102 = vmatpush2.msra.mxu0 0.0
          %1103 = vmatprep.subr.mxu0 0.0
          %1104 = vmatpush2.msra.mxu0 0.0
          %1105 = vmatprep.subr.mxu0 0.0
          %1106 = vmatpush2.msra.mxu0 0.0
          %1107 = vmatprep.subr.mxu0 0.0
          %1108 = vmatpush2.msra.mxu0 0.0
          %1109 = vmatprep.subr.mxu0 0.0
          %1110 = vmatpush2.msra.mxu0 0.0
          %1111 = vmatprep.subr.mxu0 0.0
          %1112 = vmatpush2.msra.mxu0 0.0
          %1113 = vmatprep.subr.mxu0 0.0
          %1114 = vmatpush2.msra.mxu0 0.0
          %1115 = vmatprep.subr.mxu0 0.0
          %1116 = vmatpush2.msra.mxu0 0.0
          %1117 = vmatprep.subr.mxu0 0.0
          %1118 = vmatpush2.msra.mxu0 0.0
          %1119 = vmatprep.subr.mxu0 0.0
          %1120 = vmatpush2.msra.mxu0 0.0
          %1121 = vmatprep.subr.mxu0 0.0
          %1122 = vmatpush2.msra.mxu0 0.0
          %1123 = vmatprep.subr.mxu0 0.0
          %1124 = vmatpush2.msra.mxu0 0.0
          %1125 = vmatprep.subr.mxu0 0.0
          %1126 = vmatpush2.msra.mxu0 0.0
          %1127 = vmatprep.subr.mxu0 0.0
          %1128 = vmatpush2.msra.mxu0 0.0
          %1129 = vmatprep.subr.mxu0 0.0
          %1130 = vmatpush2.msra.mxu0 0.0
          %1131 = vmatprep.subr.mxu0 0.0
          %1132 = vmatpush2.msra.mxu0 0.0
          %1133 = vmatprep.mubr.f32.mxu0 0.0
          %1134 = vmatmul.mubr.f32.gmra.mxu0 %v1067
          %v1135 = vpop.f32.mrf.mxu0
          %v1136 = vadd.f32 %v1043, %v1135
          %v1137 = vpop.f32.mrf.mxu0
          %1138 = vdwg.mxu0
          %1139 = vst.msk [vmem:[#allocation2] sm:$0xff] %vm729, %v1136
          %1141 = vrot.lane.b32.xlu0 %v1136, 96
          %v1142 = vpop.permute.xlu0 %1141
          %1144 = vst.msk [vmem:[#allocation3] sm:$0xff] %vm729, %v1142
        $region80: #{tpu_custom_call.1} parent=75 // pred_fallthru
          _
        %v1145 = vld [vmem:[#allocation2] sm:$0xff]
        %v1146 = vld [vmem:[#allocation3] sm:$0xff]
        %v1147 = vld [vmem:[%s6] sm:$0xff]
        %v1148 = vld [vmem:[%s6 + $0x8] sm:$0xff]
        %v1149 = vld [vmem:[%s6 + $0x10] sm:$0xff]
        %v1150 = vld [vmem:[%s6 + $0x18] sm:$0xff]
        %v1151 = vld [vmem:[%s6 + $0x20] sm:$0xff]
        %v1152 = vld [vmem:[%s6 + $0x28] sm:$0xff]
        %v1153 = vld [vmem:[%s6 + $0x30] sm:$0xff]
        %v1154 = vld [vmem:[%s6 + $0x38] sm:$0xff]
        %v1155 = vld [vmem:[%s7] sm:$0x3]
        %v1157 = vlaneseq
        %v1158 = vshrl.u32 %v1157, 7
        %v1159 = vsub.s32 0, %v1158
        %v1160 = vrot.slane %v1155, %v1159
        %v1161 = vlaneseq
        %v1162 = vshrl.u32 %v1161, 7
        %v1163 = vsub.s32 1, %v1162
        %v1164 = vrot.slane %v1155, %v1163
        %vm1167 = vcmask 261120
        %v1169 = vsel %vm1167, %v1145, 0
        %1171 = vmatprep.subr.mxu0 0.0
        %1172 = vmatpush1.msra.mxu0 0.0
        %1173 = vmatprep.subr.mxu0 0.0
        %1174 = vmatpush1.msra.mxu0 0.0
        %1175 = vmatprep.subr.mxu0 0.0
        %1176 = vmatpush1.msra.mxu0 0.0
        %1177 = vmatprep.subr.mxu0 0.0
        %1178 = vmatpush1.msra.mxu0 0.0
        %1179 = vmatprep.subr.mxu0 0.0
        %1180 = vmatpush1.msra.mxu0 0.0
        %1181 = vmatprep.subr.mxu0 0.0
        %1182 = vmatpush1.msra.mxu0 0.0
        %1183 = vmatprep.subr.mxu0 0.0
        %1184 = vmatpush1.msra.mxu0 0.0
        %1185 = vmatprep.subr.mxu0 0.0
        %1186 = vmatpush1.msra.mxu0 0.0
        %1187 = vmatprep.subr.mxu0 0.0
        %1188 = vmatpush1.msra.mxu0 0.0
        %1189 = vmatprep.subr.mxu0 0.0
        %1190 = vmatpush1.msra.mxu0 0.0
        %1191 = vmatprep.subr.mxu0 0.0
        %1192 = vmatpush1.msra.mxu0 0.0
        %1193 = vmatprep.subr.mxu0 0.0
        %1194 = vmatpush1.msra.mxu0 0.0
        %1195 = vmatprep.subr.mxu0 %v1154
        %1196 = vmatpush1.msra.mxu0 %v1153
        %1197 = vmatprep.subr.mxu0 %v1152
        %1198 = vmatpush1.msra.mxu0 %v1151
        %1199 = vmatprep.subr.mxu0 %v1150
        %1200 = vmatpush1.msra.mxu0 %v1149
        %1201 = vmatprep.subr.mxu0 %v1148
        %1202 = vmatpush1.msra.mxu0 %v1147
        %1203 = vmatprep.subr.mxu0 0.0
        %1204 = vmatpush2.msra.mxu0 0.0
        %1205 = vmatprep.subr.mxu0 0.0
        %1206 = vmatpush2.msra.mxu0 0.0
        %1207 = vmatprep.subr.mxu0 0.0
        %1208 = vmatpush2.msra.mxu0 0.0
        %1209 = vmatprep.subr.mxu0 0.0
        %1210 = vmatpush2.msra.mxu0 0.0
        %1211 = vmatprep.subr.mxu0 0.0
        %1212 = vmatpush2.msra.mxu0 0.0
        %1213 = vmatprep.subr.mxu0 0.0
        %1214 = vmatpush2.msra.mxu0 0.0
        %1215 = vmatprep.subr.mxu0 0.0
        %1216 = vmatpush2.msra.mxu0 0.0
        %1217 = vmatprep.subr.mxu0 0.0
        %1218 = vmatpush2.msra.mxu0 0.0
        %1219 = vmatprep.subr.mxu0 0.0
        %1220 = vmatpush2.msra.mxu0 0.0
        %1221 = vmatprep.subr.mxu0 0.0
        %1222 = vmatpush2.msra.mxu0 0.0
        %1223 = vmatprep.subr.mxu0 0.0
        %1224 = vmatpush2.msra.mxu0 0.0
        %1225 = vmatprep.subr.mxu0 0.0
        %1226 = vmatpush2.msra.mxu0 0.0
        %1227 = vmatprep.subr.mxu0 0.0
        %1228 = vmatpush2.msra.mxu0 0.0
        %1229 = vmatprep.subr.mxu0 0.0
        %1230 = vmatpush2.msra.mxu0 0.0
        %1231 = vmatprep.subr.mxu0 0.0
        %1232 = vmatpush2.msra.mxu0 0.0
        %1233 = vmatprep.subr.mxu0 0.0
        %1234 = vmatpush2.msra.mxu0 0.0
        %1235 = vmatprep.mubr.f32.mxu0 0.0
        %1236 = vmatmul.mubr.f32.gmra.mxu0 %v1169
        %v1237 = vpop.f32.mrf.mxu0
        %v1238 = vadd.f32 %v1160, %v1237
        %v1239 = vpop.f32.mrf.mxu0
        %v1240 = vadd.f32 %v1164, %v1239
        %1241 = vdwg.mxu0
        %v1242 = vld [vmem:[%s581] sm:$0xff]
        %v1243 = vld [vmem:[%s581 + $0x8] sm:$0xff]
        %v1244 = vld [vmem:[%s581 + $0x10] sm:$0xff]
        %v1245 = vld [vmem:[%s581 + $0x18] sm:$0xff]
        %v1246 = vld [vmem:[%s581 + $0x20] sm:$0xff]
        %v1247 = vld [vmem:[%s581 + $0x28] sm:$0xff]
        %v1248 = vld [vmem:[%s581 + $0x30] sm:$0xff]
        %v1249 = vld [vmem:[%s581 + $0x38] sm:$0xff]
        %v1250 = vld [vmem:[%s581 + $0x40] sm:$0xff]
        %v1251 = vld [vmem:[%s581 + $0x48] sm:$0xff]
        %v1252 = vld [vmem:[%s581 + $0x50] sm:$0xff]
        %v1253 = vld [vmem:[%s581 + $0x58] sm:$0xff]
        %v1254 = vld [vmem:[%s581 + $0x60] sm:$0xff]
        %v1255 = vld [vmem:[%s581 + $0x68] sm:$0xff]
        %v1256 = vld [vmem:[%s581 + $0x70] sm:$0xff]
        %v1257 = vld [vmem:[%s581 + $0x78] sm:$0xff]
        %v1258 = vld [vmem:[%s581 + $0x80] sm:$0xff]
        %v1259 = vld [vmem:[%s581 + $0x88] sm:$0xff]
        %v1260 = vld [vmem:[%s581 + $0x90] sm:$0xff]
        %v1261 = vld [vmem:[%s581 + $0x98] sm:$0xff]
        %v1262 = vld [vmem:[%s581 + $0xa0] sm:$0xff]
        %v1263 = vld [vmem:[%s581 + $0xa8] sm:$0xff]
        %v1264 = vld [vmem:[%s581 + $0xb0] sm:$0xff]
        %v1265 = vld [vmem:[%s581 + $0xb8] sm:$0xff]
        %v1266 = vld [vmem:[%s581 + $0xc0] sm:$0xff]
        %v1267 = vld [vmem:[%s581 + $0xc8] sm:$0xff]
        %v1268 = vld [vmem:[%s581 + $0xd0] sm:$0xff]
        %v1269 = vld [vmem:[%s581 + $0xd8] sm:$0xff]
        %v1270 = vld [vmem:[%s581 + $0xe0] sm:$0xff]
        %v1271 = vld [vmem:[%s581 + $0xe8] sm:$0xff]
        %v1272 = vld [vmem:[%s581 + $0xf0] sm:$0xff]
        %v1273 = vld [vmem:[%s581 + $0xf8] sm:$0xff]
        %v1274 = vld [vmem:[%s581 + $0x100] sm:$0xff]
        %v1275 = vld [vmem:[%s581 + $0x108] sm:$0xff]
        %v1276 = vld [vmem:[%s581 + $0x110] sm:$0xff]
        %v1277 = vld [vmem:[%s581 + $0x118] sm:$0xff]
        %v1278 = vld [vmem:[%s581 + $0x120] sm:$0xff]
        %v1279 = vld [vmem:[%s581 + $0x128] sm:$0xff]
        %v1280 = vld [vmem:[%s581 + $0x130] sm:$0xff]
        %v1281 = vld [vmem:[%s581 + $0x138] sm:$0xff]
        %v1282 = vld [vmem:[%s581 + $0x140] sm:$0xff]
        %v1283 = vld [vmem:[%s581 + $0x148] sm:$0xff]
        %v1284 = vld [vmem:[%s581 + $0x150] sm:$0xff]
        %v1285 = vld [vmem:[%s581 + $0x158] sm:$0xff]
        %v1286 = vld [vmem:[%s581 + $0x160] sm:$0xff]
        %v1287 = vld [vmem:[%s581 + $0x168] sm:$0xff]
        %v1288 = vld [vmem:[%s581 + $0x170] sm:$0xff]
        %v1289 = vld [vmem:[%s581 + $0x178] sm:$0xff]
        %v1290 = vld [vmem:[%s581 + $0x180] sm:$0xff]
        %v1291 = vld [vmem:[%s581 + $0x188] sm:$0xff]
        %v1292 = vld [vmem:[%s581 + $0x190] sm:$0xff]
        %v1293 = vld [vmem:[%s581 + $0x198] sm:$0xff]
        %v1294 = vld [vmem:[%s581 + $0x1a0] sm:$0xff]
        %v1295 = vld [vmem:[%s581 + $0x1a8] sm:$0xff]
        %v1296 = vld [vmem:[%s581 + $0x1b0] sm:$0xff]
        %v1297 = vld [vmem:[%s581 + $0x1b8] sm:$0xff]
        %v1298 = vld [vmem:[%s581 + $0x1c0] sm:$0xff]
        %v1299 = vld [vmem:[%s581 + $0x1c8] sm:$0xff]
        %v1300 = vld [vmem:[%s581 + $0x1d0] sm:$0xff]
        %v1301 = vld [vmem:[%s581 + $0x1d8] sm:$0xff]
        %v1302 = vld [vmem:[%s581 + $0x1e0] sm:$0xff]
        %v1303 = vld [vmem:[%s581 + $0x1e8] sm:$0xff]
        %v1304 = vld [vmem:[%s581 + $0x1f0] sm:$0xff]
        %v1305 = vld [vmem:[%s581 + $0x1f8] sm:$0xff]
        %v1306 = vld [vmem:[%s581 + $0x200] sm:$0xff]
        %v1307 = vld [vmem:[%s581 + $0x208] sm:$0xff]
        %v1308 = vld [vmem:[%s581 + $0x210] sm:$0xff]
        %v1309 = vld [vmem:[%s581 + $0x218] sm:$0xff]
        %v1310 = vld [vmem:[%s581 + $0x220] sm:$0xff]
        %v1311 = vld [vmem:[%s581 + $0x228] sm:$0xff]
        %v1312 = vld [vmem:[%s581 + $0x230] sm:$0xff]
        %v1313 = vld [vmem:[%s581 + $0x238] sm:$0xff]
        %v1314 = vld [vmem:[%s581 + $0x240] sm:$0xff]
        %v1315 = vld [vmem:[%s581 + $0x248] sm:$0xff]
        %v1316 = vld [vmem:[%s581 + $0x250] sm:$0xff]
        %v1317 = vld [vmem:[%s581 + $0x258] sm:$0xff]
        %v1318 = vld [vmem:[%s581 + $0x260] sm:$0xff]
        %v1319 = vld [vmem:[%s581 + $0x268] sm:$0xff]
        %v1320 = vld [vmem:[%s581 + $0x270] sm:$0xff]
        %v1321 = vld [vmem:[%s581 + $0x278] sm:$0xff]
        %v1322 = vld [vmem:[%s581 + $0x280] sm:$0xff]
        %v1323 = vld [vmem:[%s581 + $0x288] sm:$0xff]
        %v1324 = vld [vmem:[%s581 + $0x290] sm:$0xff]
        %v1325 = vld [vmem:[%s581 + $0x298] sm:$0xff]
        %v1326 = vld [vmem:[%s581 + $0x2a0] sm:$0xff]
        %v1327 = vld [vmem:[%s581 + $0x2a8] sm:$0xff]
        %v1328 = vld [vmem:[%s581 + $0x2b0] sm:$0xff]
        %v1329 = vld [vmem:[%s581 + $0x2b8] sm:$0xff]
        %v1330 = vld [vmem:[%s581 + $0x2c0] sm:$0xff]
        %v1331 = vld [vmem:[%s581 + $0x2c8] sm:$0xff]
        %v1332 = vld [vmem:[%s581 + $0x2d0] sm:$0xff]
        %v1333 = vld [vmem:[%s581 + $0x2d8] sm:$0xff]
        %v1334 = vld [vmem:[%s581 + $0x2e0] sm:$0xff]
        %v1335 = vld [vmem:[%s581 + $0x2e8] sm:$0xff]
        %v1336 = vld [vmem:[%s581 + $0x2f0] sm:$0xff]
        %v1337 = vld [vmem:[%s581 + $0x2f8] sm:$0xff]
        %v1338 = vld [vmem:[%s581 + $0x300] sm:$0xff]
        %v1339 = vld [vmem:[%s581 + $0x308] sm:$0xff]
        %v1340 = vld [vmem:[%s581 + $0x310] sm:$0xff]
        %v1341 = vld [vmem:[%s581 + $0x318] sm:$0xff]
        %v1342 = vld [vmem:[%s581 + $0x320] sm:$0xff]
        %v1343 = vld [vmem:[%s581 + $0x328] sm:$0xff]
        %v1344 = vld [vmem:[%s581 + $0x330] sm:$0xff]
        %v1345 = vld [vmem:[%s581 + $0x338] sm:$0xff]
        %v1346 = vld [vmem:[%s581 + $0x340] sm:$0xff]
        %v1347 = vld [vmem:[%s581 + $0x348] sm:$0xff]
        %v1348 = vld [vmem:[%s581 + $0x350] sm:$0xff]
        %v1349 = vld [vmem:[%s581 + $0x358] sm:$0xff]
        %v1350 = vld [vmem:[%s581 + $0x360] sm:$0xff]
        %v1351 = vld [vmem:[%s581 + $0x368] sm:$0xff]
        %v1352 = vld [vmem:[%s581 + $0x370] sm:$0xff]
        %v1353 = vld [vmem:[%s581 + $0x378] sm:$0xff]
        %v1354 = vld [vmem:[%s581 + $0x380] sm:$0xff]
        %v1355 = vld [vmem:[%s581 + $0x388] sm:$0xff]
        %v1356 = vld [vmem:[%s581 + $0x390] sm:$0xff]
        %v1357 = vld [vmem:[%s581 + $0x398] sm:$0xff]
        %v1358 = vld [vmem:[%s581 + $0x3a0] sm:$0xff]
        %v1359 = vld [vmem:[%s581 + $0x3a8] sm:$0xff]
        %v1360 = vld [vmem:[%s581 + $0x3b0] sm:$0xff]
        %v1361 = vld [vmem:[%s581 + $0x3b8] sm:$0xff]
        %v1362 = vld [vmem:[%s581 + $0x3c0] sm:$0xff]
        %v1363 = vld [vmem:[%s581 + $0x3c8] sm:$0xff]
        %v1364 = vld [vmem:[%s581 + $0x3d0] sm:$0xff]
        %v1365 = vld [vmem:[%s581 + $0x3d8] sm:$0xff]
        %v1366 = vld [vmem:[%s581 + $0x3e0] sm:$0xff]
        %v1367 = vld [vmem:[%s581 + $0x3e8] sm:$0xff]
        %v1368 = vld [vmem:[%s581 + $0x3f0] sm:$0xff]
        %v1369 = vld [vmem:[%s581 + $0x3f8] sm:$0xff]
        %v1371 = vcombine.high %v1238, %v1238
        %v1373 = vunpack.c.l.s4 1966171168
        %v1374 = vunpack.c.0.s8 %v1373
        %v1375 = vlaneseq
        %v1376 = vshrl.u32 %v1375, 7
        %v1377 = vsub.s32 %v1374, %v1376
        %v1378 = vrot.slane %v1238, %v1377
        %v1380 = vunpack.c.l.s4 1966171168
        %v1381 = vunpack.c.0.s8 %v1380
        %v1382 = vlaneseq
        %v1383 = vshrl.u32 %v1382, 7
        %v1384 = vsub.s32 %v1381, %v1383
        %v1385 = vrot.slane %v1371, %v1384
        %v1386 = vcombine.high %v1378, %v1378
        %v1387 = vcombine.high %v1385, %v1385
        %v1389 = vunpack.c.l.s4 1966171168
        %v1390 = vunpack.c.0.s8 %v1389
        %v1391 = vlaneseq
        %v1392 = vshrl.u32 %v1391, 7
        %v1393 = vsub.s32 %v1390, %v1392
        %v1394 = vrot.slane %v1378, %v1393
        %v1396 = vunpack.c.l.s4 1966171168
        %v1397 = vunpack.c.0.s8 %v1396
        %v1398 = vlaneseq
        %v1399 = vshrl.u32 %v1398, 7
        %v1400 = vsub.s32 %v1397, %v1399
        %v1401 = vrot.slane %v1385, %v1400
        %v1403 = vunpack.c.l.s4 1966171168
        %v1404 = vunpack.c.0.s8 %v1403
        %v1405 = vlaneseq
        %v1406 = vshrl.u32 %v1405, 7
        %v1407 = vsub.s32 %v1404, %v1406
        %v1408 = vrot.slane %v1386, %v1407
        %v1410 = vunpack.c.l.s4 1966171168
        %v1411 = vunpack.c.0.s8 %v1410
        %v1412 = vlaneseq
        %v1413 = vshrl.u32 %v1412, 7
        %v1414 = vsub.s32 %v1411, %v1413
        %v1415 = vrot.slane %v1387, %v1414
        %v1416 = vcombine.high %v1394, %v1394
        %v1417 = vcombine.high %v1401, %v1401
        %v1418 = vcombine.high %v1408, %v1408
        %v1419 = vcombine.high %v1415, %v1415
        %v1420 = vlaneseq
        %v1421 = vshrl.u32 %v1420, 7
        %v1422 = vsub.s32 0, %v1421
        %v1423 = vrot.slane %v1394, %v1422
        %v1424 = vlaneseq
        %v1425 = vshrl.u32 %v1424, 7
        %v1426 = vsub.s32 0, %v1425
        %v1427 = vrot.slane %v1408, %v1426
        %v1428 = vlaneseq
        %v1429 = vshrl.u32 %v1428, 7
        %v1430 = vsub.s32 0, %v1429
        %v1431 = vrot.slane %v1416, %v1430
        %v1432 = vlaneseq
        %v1433 = vshrl.u32 %v1432, 7
        %v1434 = vsub.s32 0, %v1433
        %v1435 = vrot.slane %v1418, %v1434
        %v1436 = vlaneseq
        %v1437 = vshrl.u32 %v1436, 7
        %v1438 = vsub.s32 0, %v1437
        %v1439 = vrot.slane %v1401, %v1438
        %v1440 = vlaneseq
        %v1441 = vshrl.u32 %v1440, 7
        %v1442 = vsub.s32 0, %v1441
        %v1443 = vrot.slane %v1415, %v1442
        %v1444 = vlaneseq
        %v1445 = vshrl.u32 %v1444, 7
        %v1446 = vsub.s32 0, %v1445
        %v1447 = vrot.slane %v1417, %v1446
        %v1448 = vlaneseq
        %v1449 = vshrl.u32 %v1448, 7
        %v1450 = vsub.s32 0, %v1449
        %v1451 = vrot.slane %v1419, %v1450
        %v1460 = vadd.f32 %v1242, %v1423
        %v1461 = vadd.f32 %v1243, %v1423
        %v1462 = vadd.f32 %v1244, %v1423
        %v1463 = vadd.f32 %v1245, %v1423
        %v1464 = vadd.f32 %v1246, %v1423
        %v1465 = vadd.f32 %v1247, %v1423
        %v1466 = vadd.f32 %v1248, %v1423
        %v1467 = vadd.f32 %v1249, %v1423
        %v1468 = vadd.f32 %v1250, %v1423
        %v1469 = vadd.f32 %v1251, %v1423
        %v1470 = vadd.f32 %v1252, %v1423
        %v1471 = vadd.f32 %v1253, %v1423
        %v1472 = vadd.f32 %v1254, %v1423
        %v1473 = vadd.f32 %v1255, %v1423
        %v1474 = vadd.f32 %v1256, %v1423
        %v1475 = vadd.f32 %v1257, %v1423
        %v1476 = vadd.f32 %v1258, %v1427
        %v1477 = vadd.f32 %v1259, %v1427
        %v1478 = vadd.f32 %v1260, %v1427
        %v1479 = vadd.f32 %v1261, %v1427
        %v1480 = vadd.f32 %v1262, %v1427
        %v1481 = vadd.f32 %v1263, %v1427
        %v1482 = vadd.f32 %v1264, %v1427
        %v1483 = vadd.f32 %v1265, %v1427
        %v1484 = vadd.f32 %v1266, %v1427
        %v1485 = vadd.f32 %v1267, %v1427
        %v1486 = vadd.f32 %v1268, %v1427
        %v1487 = vadd.f32 %v1269, %v1427
        %v1488 = vadd.f32 %v1270, %v1427
        %v1489 = vadd.f32 %v1271, %v1427
        %v1490 = vadd.f32 %v1272, %v1427
        %v1491 = vadd.f32 %v1273, %v1427
        %v1492 = vadd.f32 %v1274, %v1431
        %v1493 = vadd.f32 %v1275, %v1431
        %v1494 = vadd.f32 %v1276, %v1431
        %v1495 = vadd.f32 %v1277, %v1431
        %v1496 = vadd.f32 %v1278, %v1431
        %v1497 = vadd.f32 %v1279, %v1431
        %v1498 = vadd.f32 %v1280, %v1431
        %v1499 = vadd.f32 %v1281, %v1431
        %v1500 = vadd.f32 %v1282, %v1431
        %v1501 = vadd.f32 %v1283, %v1431
        %v1502 = vadd.f32 %v1284, %v1431
        %v1503 = vadd.f32 %v1285, %v1431
        %v1504 = vadd.f32 %v1286, %v1431
        %v1505 = vadd.f32 %v1287, %v1431
        %v1506 = vadd.f32 %v1288, %v1431
        %v1507 = vadd.f32 %v1289, %v1431
        %v1508 = vadd.f32 %v1290, %v1435
        %v1509 = vadd.f32 %v1291, %v1435
        %v1510 = vadd.f32 %v1292, %v1435
        %v1511 = vadd.f32 %v1293, %v1435
        %v1512 = vadd.f32 %v1294, %v1435
        %v1513 = vadd.f32 %v1295, %v1435
        %v1514 = vadd.f32 %v1296, %v1435
        %v1515 = vadd.f32 %v1297, %v1435
        %v1516 = vadd.f32 %v1298, %v1435
        %v1517 = vadd.f32 %v1299, %v1435
        %v1518 = vadd.f32 %v1300, %v1435
        %v1519 = vadd.f32 %v1301, %v1435
        %v1520 = vadd.f32 %v1302, %v1435
        %v1521 = vadd.f32 %v1303, %v1435
        %v1522 = vadd.f32 %v1304, %v1435
        %v1523 = vadd.f32 %v1305, %v1435
        %v1524 = vadd.f32 %v1306, %v1439
        %v1525 = vadd.f32 %v1307, %v1439
        %v1526 = vadd.f32 %v1308, %v1439
        %v1527 = vadd.f32 %v1309, %v1439
        %v1528 = vadd.f32 %v1310, %v1439
        %v1529 = vadd.f32 %v1311, %v1439
        %v1530 = vadd.f32 %v1312, %v1439
        %v1531 = vadd.f32 %v1313, %v1439
        %v1532 = vadd.f32 %v1314, %v1439
        %v1533 = vadd.f32 %v1315, %v1439
        %v1534 = vadd.f32 %v1316, %v1439
        %v1535 = vadd.f32 %v1317, %v1439
        %v1536 = vadd.f32 %v1318, %v1439
        %v1537 = vadd.f32 %v1319, %v1439
        %v1538 = vadd.f32 %v1320, %v1439
        %v1539 = vadd.f32 %v1321, %v1439
        %v1540 = vadd.f32 %v1322, %v1443
        %v1541 = vadd.f32 %v1323, %v1443
        %v1542 = vadd.f32 %v1324, %v1443
        %v1543 = vadd.f32 %v1325, %v1443
        %v1544 = vadd.f32 %v1326, %v1443
        %v1545 = vadd.f32 %v1327, %v1443
        %v1546 = vadd.f32 %v1328, %v1443
        %v1547 = vadd.f32 %v1329, %v1443
        %v1548 = vadd.f32 %v1330, %v1443
        %v1549 = vadd.f32 %v1331, %v1443
        %v1550 = vadd.f32 %v1332, %v1443
        %v1551 = vadd.f32 %v1333, %v1443
        %v1552 = vadd.f32 %v1334, %v1443
        %v1553 = vadd.f32 %v1335, %v1443
        %v1554 = vadd.f32 %v1336, %v1443
        %v1555 = vadd.f32 %v1337, %v1443
        %v1556 = vadd.f32 %v1338, %v1447
        %v1557 = vadd.f32 %v1339, %v1447
        %v1558 = vadd.f32 %v1340, %v1447
        %v1559 = vadd.f32 %v1341, %v1447
        %v1560 = vadd.f32 %v1342, %v1447
        %v1561 = vadd.f32 %v1343, %v1447
        %v1562 = vadd.f32 %v1344, %v1447
        %v1563 = vadd.f32 %v1345, %v1447
        %v1564 = vadd.f32 %v1346, %v1447
        %v1565 = vadd.f32 %v1347, %v1447
        %v1566 = vadd.f32 %v1348, %v1447
        %v1567 = vadd.f32 %v1349, %v1447
        %v1568 = vadd.f32 %v1350, %v1447
        %v1569 = vadd.f32 %v1351, %v1447
        %v1570 = vadd.f32 %v1352, %v1447
        %v1571 = vadd.f32 %v1353, %v1447
        %v1572 = vadd.f32 %v1354, %v1451
        %v1573 = vadd.f32 %v1355, %v1451
        %v1574 = vadd.f32 %v1356, %v1451
        %v1575 = vadd.f32 %v1357, %v1451
        %v1576 = vadd.f32 %v1358, %v1451
        %v1577 = vadd.f32 %v1359, %v1451
        %v1578 = vadd.f32 %v1360, %v1451
        %v1579 = vadd.f32 %v1361, %v1451
        %v1580 = vadd.f32 %v1362, %v1451
        %v1581 = vadd.f32 %v1363, %v1451
        %v1582 = vadd.f32 %v1364, %v1451
        %v1583 = vadd.f32 %v1365, %v1451
        %v1584 = vadd.f32 %v1366, %v1451
        %v1585 = vadd.f32 %v1367, %v1451
        %v1586 = vadd.f32 %v1368, %v1451
        %v1587 = vadd.f32 %v1369, %v1451
        %v1588 = vmax.f32 %v1460, 0.0
        %v1589 = vmax.f32 %v1461, 0.0
        %v1590 = vmax.f32 %v1462, 0.0
        %v1591 = vmax.f32 %v1463, 0.0
        %v1592 = vmax.f32 %v1464, 0.0
        %v1593 = vmax.f32 %v1465, 0.0
        %v1594 = vmax.f32 %v1466, 0.0
        %v1595 = vmax.f32 %v1467, 0.0
        %v1596 = vmax.f32 %v1468, 0.0
        %v1597 = vmax.f32 %v1469, 0.0
        %v1598 = vmax.f32 %v1470, 0.0
        %v1599 = vmax.f32 %v1471, 0.0
        %v1600 = vmax.f32 %v1472, 0.0
        %v1601 = vmax.f32 %v1473, 0.0
        %v1602 = vmax.f32 %v1474, 0.0
        %v1603 = vmax.f32 %v1475, 0.0
        %v1604 = vmax.f32 %v1476, 0.0
        %v1605 = vmax.f32 %v1477, 0.0
        %v1606 = vmax.f32 %v1478, 0.0
        %v1607 = vmax.f32 %v1479, 0.0
        %v1608 = vmax.f32 %v1480, 0.0
        %v1609 = vmax.f32 %v1481, 0.0
        %v1610 = vmax.f32 %v1482, 0.0
        %v1611 = vmax.f32 %v1483, 0.0
        %v1612 = vmax.f32 %v1484, 0.0
        %v1613 = vmax.f32 %v1485, 0.0
        %v1614 = vmax.f32 %v1486, 0.0
        %v1615 = vmax.f32 %v1487, 0.0
        %v1616 = vmax.f32 %v1488, 0.0
        %v1617 = vmax.f32 %v1489, 0.0
        %v1618 = vmax.f32 %v1490, 0.0
        %v1619 = vmax.f32 %v1491, 0.0
        %v1620 = vmax.f32 %v1492, 0.0
        %v1621 = vmax.f32 %v1493, 0.0
        %v1622 = vmax.f32 %v1494, 0.0
        %v1623 = vmax.f32 %v1495, 0.0
        %v1624 = vmax.f32 %v1496, 0.0
        %v1625 = vmax.f32 %v1497, 0.0
        %v1626 = vmax.f32 %v1498, 0.0
        %v1627 = vmax.f32 %v1499, 0.0
        %v1628 = vmax.f32 %v1500, 0.0
        %v1629 = vmax.f32 %v1501, 0.0
        %v1630 = vmax.f32 %v1502, 0.0
        %v1631 = vmax.f32 %v1503, 0.0
        %v1632 = vmax.f32 %v1504, 0.0
        %v1633 = vmax.f32 %v1505, 0.0
        %v1634 = vmax.f32 %v1506, 0.0
        %v1635 = vmax.f32 %v1507, 0.0
        %v1636 = vmax.f32 %v1508, 0.0
        %v1637 = vmax.f32 %v1509, 0.0
        %v1638 = vmax.f32 %v1510, 0.0
        %v1639 = vmax.f32 %v1511, 0.0
        %v1640 = vmax.f32 %v1512, 0.0
        %v1641 = vmax.f32 %v1513, 0.0
        %v1642 = vmax.f32 %v1514, 0.0
        %v1643 = vmax.f32 %v1515, 0.0
        %v1644 = vmax.f32 %v1516, 0.0
        %v1645 = vmax.f32 %v1517, 0.0
        %v1646 = vmax.f32 %v1518, 0.0
        %v1647 = vmax.f32 %v1519, 0.0
        %v1648 = vmax.f32 %v1520, 0.0
        %v1649 = vmax.f32 %v1521, 0.0
        %v1650 = vmax.f32 %v1522, 0.0
        %v1651 = vmax.f32 %v1523, 0.0
        %v1652 = vmax.f32 %v1524, 0.0
        %v1653 = vmax.f32 %v1525, 0.0
        %v1654 = vmax.f32 %v1526, 0.0
        %v1655 = vmax.f32 %v1527, 0.0
        %v1656 = vmax.f32 %v1528, 0.0
        %v1657 = vmax.f32 %v1529, 0.0
        %v1658 = vmax.f32 %v1530, 0.0
        %v1659 = vmax.f32 %v1531, 0.0
        %v1660 = vmax.f32 %v1532, 0.0
        %v1661 = vmax.f32 %v1533, 0.0
        %v1662 = vmax.f32 %v1534, 0.0
        %v1663 = vmax.f32 %v1535, 0.0
        %v1664 = vmax.f32 %v1536, 0.0
        %v1665 = vmax.f32 %v1537, 0.0
        %v1666 = vmax.f32 %v1538, 0.0
        %v1667 = vmax.f32 %v1539, 0.0
        %v1668 = vmax.f32 %v1540, 0.0
        %v1669 = vmax.f32 %v1541, 0.0
        %v1670 = vmax.f32 %v1542, 0.0
        %v1671 = vmax.f32 %v1543, 0.0
        %v1672 = vmax.f32 %v1544, 0.0
        %v1673 = vmax.f32 %v1545, 0.0
        %v1674 = vmax.f32 %v1546, 0.0
        %v1675 = vmax.f32 %v1547, 0.0
        %v1676 = vmax.f32 %v1548, 0.0
        %v1677 = vmax.f32 %v1549, 0.0
        %v1678 = vmax.f32 %v1550, 0.0
        %v1679 = vmax.f32 %v1551, 0.0
        %v1680 = vmax.f32 %v1552, 0.0
        %v1681 = vmax.f32 %v1553, 0.0
        %v1682 = vmax.f32 %v1554, 0.0
        %v1683 = vmax.f32 %v1555, 0.0
        %v1684 = vmax.f32 %v1556, 0.0
        %v1685 = vmax.f32 %v1557, 0.0
        %v1686 = vmax.f32 %v1558, 0.0
        %v1687 = vmax.f32 %v1559, 0.0
        %v1688 = vmax.f32 %v1560, 0.0
        %v1689 = vmax.f32 %v1561, 0.0
        %v1690 = vmax.f32 %v1562, 0.0
        %v1691 = vmax.f32 %v1563, 0.0
        %v1692 = vmax.f32 %v1564, 0.0
        %v1693 = vmax.f32 %v1565, 0.0
        %v1694 = vmax.f32 %v1566, 0.0
        %v1695 = vmax.f32 %v1567, 0.0
        %v1696 = vmax.f32 %v1568, 0.0
        %v1697 = vmax.f32 %v1569, 0.0
        %v1698 = vmax.f32 %v1570, 0.0
        %v1699 = vmax.f32 %v1571, 0.0
        %v1700 = vmax.f32 %v1572, 0.0
        %v1701 = vmax.f32 %v1573, 0.0
        %v1702 = vmax.f32 %v1574, 0.0
        %v1703 = vmax.f32 %v1575, 0.0
        %v1704 = vmax.f32 %v1576, 0.0
        %v1705 = vmax.f32 %v1577, 0.0
        %v1706 = vmax.f32 %v1578, 0.0
        %v1707 = vmax.f32 %v1579, 0.0
        %v1708 = vmax.f32 %v1580, 0.0
        %v1709 = vmax.f32 %v1581, 0.0
        %v1710 = vmax.f32 %v1582, 0.0
        %v1711 = vmax.f32 %v1583, 0.0
        %v1712 = vmax.f32 %v1584, 0.0
        %v1713 = vmax.f32 %v1585, 0.0
        %v1714 = vmax.f32 %v1586, 0.0
        %v1715 = vmax.f32 %v1587, 0.0
        %v1716 = vld [vmem:[%s4] sm:$0x1]
        %v1718 = vlaneseq
        %v1719 = vshrl.u32 %v1718, 7
        %v1720 = vsub.s32 0, %v1719
        %v1721 = vrot.slane %v1716, %v1720
        %v1723 = vmul.f32 %v1588, %v1721
        %v1724 = vmul.f32 %v1589, %v1721
        %v1725 = vmul.f32 %v1590, %v1721
        %v1726 = vmul.f32 %v1591, %v1721
        %v1727 = vmul.f32 %v1592, %v1721
        %v1728 = vmul.f32 %v1593, %v1721
        %v1729 = vmul.f32 %v1594, %v1721
        %v1730 = vmul.f32 %v1595, %v1721
        %v1731 = vmul.f32 %v1596, %v1721
        %v1732 = vmul.f32 %v1597, %v1721
        %v1733 = vmul.f32 %v1598, %v1721
        %v1734 = vmul.f32 %v1599, %v1721
        %v1735 = vmul.f32 %v1600, %v1721
        %v1736 = vmul.f32 %v1601, %v1721
        %v1737 = vmul.f32 %v1602, %v1721
        %v1738 = vmul.f32 %v1603, %v1721
        %v1739 = vmul.f32 %v1604, %v1721
        %v1740 = vmul.f32 %v1605, %v1721
        %v1741 = vmul.f32 %v1606, %v1721
        %v1742 = vmul.f32 %v1607, %v1721
        %v1743 = vmul.f32 %v1608, %v1721
        %v1744 = vmul.f32 %v1609, %v1721
        %v1745 = vmul.f32 %v1610, %v1721
        %v1746 = vmul.f32 %v1611, %v1721
        %v1747 = vmul.f32 %v1612, %v1721
        %v1748 = vmul.f32 %v1613, %v1721
        %v1749 = vmul.f32 %v1614, %v1721
        %v1750 = vmul.f32 %v1615, %v1721
        %v1751 = vmul.f32 %v1616, %v1721
        %v1752 = vmul.f32 %v1617, %v1721
        %v1753 = vmul.f32 %v1618, %v1721
        %v1754 = vmul.f32 %v1619, %v1721
        %v1755 = vmul.f32 %v1620, %v1721
        %v1756 = vmul.f32 %v1621, %v1721
        %v1757 = vmul.f32 %v1622, %v1721
        %v1758 = vmul.f32 %v1623, %v1721
        %v1759 = vmul.f32 %v1624, %v1721
        %v1760 = vmul.f32 %v1625, %v1721
        %v1761 = vmul.f32 %v1626, %v1721
        %v1762 = vmul.f32 %v1627, %v1721
        %v1763 = vmul.f32 %v1628, %v1721
        %v1764 = vmul.f32 %v1629, %v1721
        %v1765 = vmul.f32 %v1630, %v1721
        %v1766 = vmul.f32 %v1631, %v1721
        %v1767 = vmul.f32 %v1632, %v1721
        %v1768 = vmul.f32 %v1633, %v1721
        %v1769 = vmul.f32 %v1634, %v1721
        %v1770 = vmul.f32 %v1635, %v1721
        %v1771 = vmul.f32 %v1636, %v1721
        %v1772 = vmul.f32 %v1637, %v1721
        %v1773 = vmul.f32 %v1638, %v1721
        %v1774 = vmul.f32 %v1639, %v1721
        %v1775 = vmul.f32 %v1640, %v1721
        %v1776 = vmul.f32 %v1641, %v1721
        %v1777 = vmul.f32 %v1642, %v1721
        %v1778 = vmul.f32 %v1643, %v1721
        %v1779 = vmul.f32 %v1644, %v1721
        %v1780 = vmul.f32 %v1645, %v1721
        %v1781 = vmul.f32 %v1646, %v1721
        %v1782 = vmul.f32 %v1647, %v1721
        %v1783 = vmul.f32 %v1648, %v1721
        %v1784 = vmul.f32 %v1649, %v1721
        %v1785 = vmul.f32 %v1650, %v1721
        %v1786 = vmul.f32 %v1651, %v1721
        %v1787 = vmul.f32 %v1652, %v1721
        %v1788 = vmul.f32 %v1653, %v1721
        %v1789 = vmul.f32 %v1654, %v1721
        %v1790 = vmul.f32 %v1655, %v1721
        %v1791 = vmul.f32 %v1656, %v1721
        %v1792 = vmul.f32 %v1657, %v1721
        %v1793 = vmul.f32 %v1658, %v1721
        %v1794 = vmul.f32 %v1659, %v1721
        %v1795 = vmul.f32 %v1660, %v1721
        %v1796 = vmul.f32 %v1661, %v1721
        %v1797 = vmul.f32 %v1662, %v1721
        %v1798 = vmul.f32 %v1663, %v1721
        %v1799 = vmul.f32 %v1664, %v1721
        %v1800 = vmul.f32 %v1665, %v1721
        %v1801 = vmul.f32 %v1666, %v1721
        %v1802 = vmul.f32 %v1667, %v1721
        %v1803 = vmul.f32 %v1668, %v1721
        %v1804 = vmul.f32 %v1669, %v1721
        %v1805 = vmul.f32 %v1670, %v1721
        %v1806 = vmul.f32 %v1671, %v1721
        %v1807 = vmul.f32 %v1672, %v1721
        %v1808 = vmul.f32 %v1673, %v1721
        %v1809 = vmul.f32 %v1674, %v1721
        %v1810 = vmul.f32 %v1675, %v1721
        %v1811 = vmul.f32 %v1676, %v1721
        %v1812 = vmul.f32 %v1677, %v1721
        %v1813 = vmul.f32 %v1678, %v1721
        %v1814 = vmul.f32 %v1679, %v1721
        %v1815 = vmul.f32 %v1680, %v1721
        %v1816 = vmul.f32 %v1681, %v1721
        %v1817 = vmul.f32 %v1682, %v1721
        %v1818 = vmul.f32 %v1683, %v1721
        %v1819 = vmul.f32 %v1684, %v1721
        %v1820 = vmul.f32 %v1685, %v1721
        %v1821 = vmul.f32 %v1686, %v1721
        %v1822 = vmul.f32 %v1687, %v1721
        %v1823 = vmul.f32 %v1688, %v1721
        %v1824 = vmul.f32 %v1689, %v1721
        %v1825 = vmul.f32 %v1690, %v1721
        %v1826 = vmul.f32 %v1691, %v1721
        %v1827 = vmul.f32 %v1692, %v1721
        %v1828 = vmul.f32 %v1693, %v1721
        %v1829 = vmul.f32 %v1694, %v1721
        %v1830 = vmul.f32 %v1695, %v1721
        %v1831 = vmul.f32 %v1696, %v1721
        %v1832 = vmul.f32 %v1697, %v1721
        %v1833 = vmul.f32 %v1698, %v1721
        %v1834 = vmul.f32 %v1699, %v1721
        %v1835 = vmul.f32 %v1700, %v1721
        %v1836 = vmul.f32 %v1701, %v1721
        %v1837 = vmul.f32 %v1702, %v1721
        %v1838 = vmul.f32 %v1703, %v1721
        %v1839 = vmul.f32 %v1704, %v1721
        %v1840 = vmul.f32 %v1705, %v1721
        %v1841 = vmul.f32 %v1706, %v1721
        %v1842 = vmul.f32 %v1707, %v1721
        %v1843 = vmul.f32 %v1708, %v1721
        %v1844 = vmul.f32 %v1709, %v1721
        %v1845 = vmul.f32 %v1710, %v1721
        %v1846 = vmul.f32 %v1711, %v1721
        %v1847 = vmul.f32 %v1712, %v1721
        %v1848 = vmul.f32 %v1713, %v1721
        %v1849 = vmul.f32 %v1714, %v1721
        %v1850 = vmul.f32 %v1715, %v1721
        %v1851 = vsel %vm1167, %v1723, 0.0
        %1852 = vadd.xlane.f32.xlu0 %v1851
        %v1853 = vpop.xlane.xlu0 %1852
        %v1854 = vsel %vm1167, %v1724, 0.0
        %1855 = vadd.xlane.f32.xlu0 %v1854
        %v1856 = vpop.xlane.xlu0 %1855
        %v1857 = vsel %vm1167, %v1725, 0.0
        %1858 = vadd.xlane.f32.xlu0 %v1857
        %v1859 = vpop.xlane.xlu0 %1858
        %v1860 = vsel %vm1167, %v1726, 0.0
        %1861 = vadd.xlane.f32.xlu0 %v1860
        %v1862 = vpop.xlane.xlu0 %1861
        %v1863 = vsel %vm1167, %v1727, 0.0
        %1864 = vadd.xlane.f32.xlu0 %v1863
        %v1865 = vpop.xlane.xlu0 %1864
        %v1866 = vsel %vm1167, %v1728, 0.0
        %1867 = vadd.xlane.f32.xlu0 %v1866
        %v1868 = vpop.xlane.xlu0 %1867
        %v1869 = vsel %vm1167, %v1729, 0.0
        %1870 = vadd.xlane.f32.xlu0 %v1869
        %v1871 = vpop.xlane.xlu0 %1870
        %v1872 = vsel %vm1167, %v1730, 0.0
        %1873 = vadd.xlane.f32.xlu0 %v1872
        %v1874 = vpop.xlane.xlu0 %1873
        %v1875 = vsel %vm1167, %v1731, 0.0
        %1876 = vadd.xlane.f32.xlu0 %v1875
        %v1877 = vpop.xlane.xlu0 %1876
        %v1878 = vsel %vm1167, %v1732, 0.0
        %1879 = vadd.xlane.f32.xlu0 %v1878
        %v1880 = vpop.xlane.xlu0 %1879
        %v1881 = vsel %vm1167, %v1733, 0.0
        %1882 = vadd.xlane.f32.xlu0 %v1881
        %v1883 = vpop.xlane.xlu0 %1882
        %v1884 = vsel %vm1167, %v1734, 0.0
        %1885 = vadd.xlane.f32.xlu0 %v1884
        %v1886 = vpop.xlane.xlu0 %1885
        %v1887 = vsel %vm1167, %v1735, 0.0
        %1888 = vadd.xlane.f32.xlu0 %v1887
        %v1889 = vpop.xlane.xlu0 %1888
        %v1890 = vsel %vm1167, %v1736, 0.0
        %1891 = vadd.xlane.f32.xlu0 %v1890
        %v1892 = vpop.xlane.xlu0 %1891
        %v1893 = vsel %vm1167, %v1737, 0.0
        %1894 = vadd.xlane.f32.xlu0 %v1893
        %v1895 = vpop.xlane.xlu0 %1894
        %v1896 = vsel %vm1167, %v1738, 0.0
        %1897 = vadd.xlane.f32.xlu0 %v1896
        %v1898 = vpop.xlane.xlu0 %1897
        %v1899 = vsel %vm1167, %v1739, 0.0
        %1900 = vadd.xlane.f32.xlu0 %v1899
        %v1901 = vpop.xlane.xlu0 %1900
        %v1902 = vsel %vm1167, %v1740, 0.0
        %1903 = vadd.xlane.f32.xlu0 %v1902
        %v1904 = vpop.xlane.xlu0 %1903
        %v1905 = vsel %vm1167, %v1741, 0.0
        %1906 = vadd.xlane.f32.xlu0 %v1905
        %v1907 = vpop.xlane.xlu0 %1906
        %v1908 = vsel %vm1167, %v1742, 0.0
        %1909 = vadd.xlane.f32.xlu0 %v1908
        %v1910 = vpop.xlane.xlu0 %1909
        %v1911 = vsel %vm1167, %v1743, 0.0
        %1912 = vadd.xlane.f32.xlu0 %v1911
        %v1913 = vpop.xlane.xlu0 %1912
        %v1914 = vsel %vm1167, %v1744, 0.0
        %1915 = vadd.xlane.f32.xlu0 %v1914
        %v1916 = vpop.xlane.xlu0 %1915
        %v1917 = vsel %vm1167, %v1745, 0.0
        %1918 = vadd.xlane.f32.xlu0 %v1917
        %v1919 = vpop.xlane.xlu0 %1918
        %v1920 = vsel %vm1167, %v1746, 0.0
        %1921 = vadd.xlane.f32.xlu0 %v1920
        %v1922 = vpop.xlane.xlu0 %1921
        %v1923 = vsel %vm1167, %v1747, 0.0
        %1924 = vadd.xlane.f32.xlu0 %v1923
        %v1925 = vpop.xlane.xlu0 %1924
        %v1926 = vsel %vm1167, %v1748, 0.0
        %1927 = vadd.xlane.f32.xlu0 %v1926
        %v1928 = vpop.xlane.xlu0 %1927
        %v1929 = vsel %vm1167, %v1749, 0.0
        %1930 = vadd.xlane.f32.xlu0 %v1929
        %v1931 = vpop.xlane.xlu0 %1930
        %v1932 = vsel %vm1167, %v1750, 0.0
        %1933 = vadd.xlane.f32.xlu0 %v1932
        %v1934 = vpop.xlane.xlu0 %1933
        %v1935 = vsel %vm1167, %v1751, 0.0
        %1936 = vadd.xlane.f32.xlu0 %v1935
        %v1937 = vpop.xlane.xlu0 %1936
        %v1938 = vsel %vm1167, %v1752, 0.0
        %1939 = vadd.xlane.f32.xlu0 %v1938
        %v1940 = vpop.xlane.xlu0 %1939
        %v1941 = vsel %vm1167, %v1753, 0.0
        %1942 = vadd.xlane.f32.xlu0 %v1941
        %v1943 = vpop.xlane.xlu0 %1942
        %v1944 = vsel %vm1167, %v1754, 0.0
        %1945 = vadd.xlane.f32.xlu0 %v1944
        %v1946 = vpop.xlane.xlu0 %1945
        %v1947 = vsel %vm1167, %v1755, 0.0
        %1948 = vadd.xlane.f32.xlu0 %v1947
        %v1949 = vpop.xlane.xlu0 %1948
        %v1950 = vsel %vm1167, %v1756, 0.0
        %1951 = vadd.xlane.f32.xlu0 %v1950
        %v1952 = vpop.xlane.xlu0 %1951
        %v1953 = vsel %vm1167, %v1757, 0.0
        %1954 = vadd.xlane.f32.xlu0 %v1953
        %v1955 = vpop.xlane.xlu0 %1954
        %v1956 = vsel %vm1167, %v1758, 0.0
        %1957 = vadd.xlane.f32.xlu0 %v1956
        %v1958 = vpop.xlane.xlu0 %1957
        %v1959 = vsel %vm1167, %v1759, 0.0
        %1960 = vadd.xlane.f32.xlu0 %v1959
        %v1961 = vpop.xlane.xlu0 %1960
        %v1962 = vsel %vm1167, %v1760, 0.0
        %1963 = vadd.xlane.f32.xlu0 %v1962
        %v1964 = vpop.xlane.xlu0 %1963
        %v1965 = vsel %vm1167, %v1761, 0.0
        %1966 = vadd.xlane.f32.xlu0 %v1965
        %v1967 = vpop.xlane.xlu0 %1966
        %v1968 = vsel %vm1167, %v1762, 0.0
        %1969 = vadd.xlane.f32.xlu0 %v1968
        %v1970 = vpop.xlane.xlu0 %1969
        %v1971 = vsel %vm1167, %v1763, 0.0
        %1972 = vadd.xlane.f32.xlu0 %v1971
        %v1973 = vpop.xlane.xlu0 %1972
        %v1974 = vsel %vm1167, %v1764, 0.0
        %1975 = vadd.xlane.f32.xlu0 %v1974
        %v1976 = vpop.xlane.xlu0 %1975
        %v1977 = vsel %vm1167, %v1765, 0.0
        %1978 = vadd.xlane.f32.xlu0 %v1977
        %v1979 = vpop.xlane.xlu0 %1978
        %v1980 = vsel %vm1167, %v1766, 0.0
        %1981 = vadd.xlane.f32.xlu0 %v1980
        %v1982 = vpop.xlane.xlu0 %1981
        %v1983 = vsel %vm1167, %v1767, 0.0
        %1984 = vadd.xlane.f32.xlu0 %v1983
        %v1985 = vpop.xlane.xlu0 %1984
        %v1986 = vsel %vm1167, %v1768, 0.0
        %1987 = vadd.xlane.f32.xlu0 %v1986
        %v1988 = vpop.xlane.xlu0 %1987
        %v1989 = vsel %vm1167, %v1769, 0.0
        %1990 = vadd.xlane.f32.xlu0 %v1989
        %v1991 = vpop.xlane.xlu0 %1990
        %v1992 = vsel %vm1167, %v1770, 0.0
        %1993 = vadd.xlane.f32.xlu0 %v1992
        %v1994 = vpop.xlane.xlu0 %1993
        %v1995 = vsel %vm1167, %v1771, 0.0
        %1996 = vadd.xlane.f32.xlu0 %v1995
        %v1997 = vpop.xlane.xlu0 %1996
        %v1998 = vsel %vm1167, %v1772, 0.0
        %1999 = vadd.xlane.f32.xlu0 %v1998
        %v2000 = vpop.xlane.xlu0 %1999
        %v2001 = vsel %vm1167, %v1773, 0.0
        %2002 = vadd.xlane.f32.xlu0 %v2001
        %v2003 = vpop.xlane.xlu0 %2002
        %v2004 = vsel %vm1167, %v1774, 0.0
        %2005 = vadd.xlane.f32.xlu0 %v2004
        %v2006 = vpop.xlane.xlu0 %2005
        %v2007 = vsel %vm1167, %v1775, 0.0
        %2008 = vadd.xlane.f32.xlu0 %v2007
        %v2009 = vpop.xlane.xlu0 %2008
        %v2010 = vsel %vm1167, %v1776, 0.0
        %2011 = vadd.xlane.f32.xlu0 %v2010
        %v2012 = vpop.xlane.xlu0 %2011
        %v2013 = vsel %vm1167, %v1777, 0.0
        %2014 = vadd.xlane.f32.xlu0 %v2013
        %v2015 = vpop.xlane.xlu0 %2014
        %v2016 = vsel %vm1167, %v1778, 0.0
        %2017 = vadd.xlane.f32.xlu0 %v2016
        %v2018 = vpop.xlane.xlu0 %2017
        %v2019 = vsel %vm1167, %v1779, 0.0
        %2020 = vadd.xlane.f32.xlu0 %v2019
        %v2021 = vpop.xlane.xlu0 %2020
        %v2022 = vsel %vm1167, %v1780, 0.0
        %2023 = vadd.xlane.f32.xlu0 %v2022
        %v2024 = vpop.xlane.xlu0 %2023
        %v2025 = vsel %vm1167, %v1781, 0.0
        %2026 = vadd.xlane.f32.xlu0 %v2025
        %v2027 = vpop.xlane.xlu0 %2026
        %v2028 = vsel %vm1167, %v1782, 0.0
        %2029 = vadd.xlane.f32.xlu0 %v2028
        %v2030 = vpop.xlane.xlu0 %2029
        %v2031 = vsel %vm1167, %v1783, 0.0
        %2032 = vadd.xlane.f32.xlu0 %v2031
        %v2033 = vpop.xlane.xlu0 %2032
        %v2034 = vsel %vm1167, %v1784, 0.0
        %2035 = vadd.xlane.f32.xlu0 %v2034
        %v2036 = vpop.xlane.xlu0 %2035
        %v2037 = vsel %vm1167, %v1785, 0.0
        %2038 = vadd.xlane.f32.xlu0 %v2037
        %v2039 = vpop.xlane.xlu0 %2038
        %v2040 = vsel %vm1167, %v1786, 0.0
        %2041 = vadd.xlane.f32.xlu0 %v2040
        %v2042 = vpop.xlane.xlu0 %2041
        %v2043 = vsel %vm1167, %v1787, 0.0
        %2044 = vadd.xlane.f32.xlu0 %v2043
        %v2045 = vpop.xlane.xlu0 %2044
        %v2046 = vsel %vm1167, %v1788, 0.0
        %2047 = vadd.xlane.f32.xlu0 %v2046
        %v2048 = vpop.xlane.xlu0 %2047
        %v2049 = vsel %vm1167, %v1789, 0.0
        %2050 = vadd.xlane.f32.xlu0 %v2049
        %v2051 = vpop.xlane.xlu0 %2050
        %v2052 = vsel %vm1167, %v1790, 0.0
        %2053 = vadd.xlane.f32.xlu0 %v2052
        %v2054 = vpop.xlane.xlu0 %2053
        %v2055 = vsel %vm1167, %v1791, 0.0
        %2056 = vadd.xlane.f32.xlu0 %v2055
        %v2057 = vpop.xlane.xlu0 %2056
        %v2058 = vsel %vm1167, %v1792, 0.0
        %2059 = vadd.xlane.f32.xlu0 %v2058
        %v2060 = vpop.xlane.xlu0 %2059
        %v2061 = vsel %vm1167, %v1793, 0.0
        %2062 = vadd.xlane.f32.xlu0 %v2061
        %v2063 = vpop.xlane.xlu0 %2062
        %v2064 = vsel %vm1167, %v1794, 0.0
        %2065 = vadd.xlane.f32.xlu0 %v2064
        %v2066 = vpop.xlane.xlu0 %2065
        %v2067 = vsel %vm1167, %v1795, 0.0
        %2068 = vadd.xlane.f32.xlu0 %v2067
        %v2069 = vpop.xlane.xlu0 %2068
        %v2070 = vsel %vm1167, %v1796, 0.0
        %2071 = vadd.xlane.f32.xlu0 %v2070
        %v2072 = vpop.xlane.xlu0 %2071
        %v2073 = vsel %vm1167, %v1797, 0.0
        %2074 = vadd.xlane.f32.xlu0 %v2073
        %v2075 = vpop.xlane.xlu0 %2074
        %v2076 = vsel %vm1167, %v1798, 0.0
        %2077 = vadd.xlane.f32.xlu0 %v2076
        %v2078 = vpop.xlane.xlu0 %2077
        %v2079 = vsel %vm1167, %v1799, 0.0
        %2080 = vadd.xlane.f32.xlu0 %v2079
        %v2081 = vpop.xlane.xlu0 %2080
        %v2082 = vsel %vm1167, %v1800, 0.0
        %2083 = vadd.xlane.f32.xlu0 %v2082
        %v2084 = vpop.xlane.xlu0 %2083
        %v2085 = vsel %vm1167, %v1801, 0.0
        %2086 = vadd.xlane.f32.xlu0 %v2085
        %v2087 = vpop.xlane.xlu0 %2086
        %v2088 = vsel %vm1167, %v1802, 0.0
        %2089 = vadd.xlane.f32.xlu0 %v2088
        %v2090 = vpop.xlane.xlu0 %2089
        %v2091 = vsel %vm1167, %v1803, 0.0
        %2092 = vadd.xlane.f32.xlu0 %v2091
        %v2093 = vpop.xlane.xlu0 %2092
        %v2094 = vsel %vm1167, %v1804, 0.0
        %2095 = vadd.xlane.f32.xlu0 %v2094
        %v2096 = vpop.xlane.xlu0 %2095
        %v2097 = vsel %vm1167, %v1805, 0.0
        %2098 = vadd.xlane.f32.xlu0 %v2097
        %v2099 = vpop.xlane.xlu0 %2098
        %v2100 = vsel %vm1167, %v1806, 0.0
        %2101 = vadd.xlane.f32.xlu0 %v2100
        %v2102 = vpop.xlane.xlu0 %2101
        %v2103 = vsel %vm1167, %v1807, 0.0
        %2104 = vadd.xlane.f32.xlu0 %v2103
        %v2105 = vpop.xlane.xlu0 %2104
        %v2106 = vsel %vm1167, %v1808, 0.0
        %2107 = vadd.xlane.f32.xlu0 %v2106
        %v2108 = vpop.xlane.xlu0 %2107
        %v2109 = vsel %vm1167, %v1809, 0.0
        %2110 = vadd.xlane.f32.xlu0 %v2109
        %v2111 = vpop.xlane.xlu0 %2110
        %v2112 = vsel %vm1167, %v1810, 0.0
        %2113 = vadd.xlane.f32.xlu0 %v2112
        %v2114 = vpop.xlane.xlu0 %2113
        %v2115 = vsel %vm1167, %v1811, 0.0
        %2116 = vadd.xlane.f32.xlu0 %v2115
        %v2117 = vpop.xlane.xlu0 %2116
        %v2118 = vsel %vm1167, %v1812, 0.0
        %2119 = vadd.xlane.f32.xlu0 %v2118
        %v2120 = vpop.xlane.xlu0 %2119
        %v2121 = vsel %vm1167, %v1813, 0.0
        %2122 = vadd.xlane.f32.xlu0 %v2121
        %v2123 = vpop.xlane.xlu0 %2122
        %v2124 = vsel %vm1167, %v1814, 0.0
        %2125 = vadd.xlane.f32.xlu0 %v2124
        %v2126 = vpop.xlane.xlu0 %2125
        %v2127 = vsel %vm1167, %v1815, 0.0
        %2128 = vadd.xlane.f32.xlu0 %v2127
        %v2129 = vpop.xlane.xlu0 %2128
        %v2130 = vsel %vm1167, %v1816, 0.0
        %2131 = vadd.xlane.f32.xlu0 %v2130
        %v2132 = vpop.xlane.xlu0 %2131
        %v2133 = vsel %vm1167, %v1817, 0.0
        %2134 = vadd.xlane.f32.xlu0 %v2133
        %v2135 = vpop.xlane.xlu0 %2134
        %v2136 = vsel %vm1167, %v1818, 0.0
        %2137 = vadd.xlane.f32.xlu0 %v2136
        %v2138 = vpop.xlane.xlu0 %2137
        %v2139 = vsel %vm1167, %v1819, 0.0
        %2140 = vadd.xlane.f32.xlu0 %v2139
        %v2141 = vpop.xlane.xlu0 %2140
        %v2142 = vsel %vm1167, %v1820, 0.0
        %2143 = vadd.xlane.f32.xlu0 %v2142
        %v2144 = vpop.xlane.xlu0 %2143
        %v2145 = vsel %vm1167, %v1821, 0.0
        %2146 = vadd.xlane.f32.xlu0 %v2145
        %v2147 = vpop.xlane.xlu0 %2146
        %v2148 = vsel %vm1167, %v1822, 0.0
        %2149 = vadd.xlane.f32.xlu0 %v2148
        %v2150 = vpop.xlane.xlu0 %2149
        %v2151 = vsel %vm1167, %v1823, 0.0
        %2152 = vadd.xlane.f32.xlu0 %v2151
        %v2153 = vpop.xlane.xlu0 %2152
        %v2154 = vsel %vm1167, %v1824, 0.0
        %2155 = vadd.xlane.f32.xlu0 %v2154
        %v2156 = vpop.xlane.xlu0 %2155
        %v2157 = vsel %vm1167, %v1825, 0.0
        %2158 = vadd.xlane.f32.xlu0 %v2157
        %v2159 = vpop.xlane.xlu0 %2158
        %v2160 = vsel %vm1167, %v1826, 0.0
        %2161 = vadd.xlane.f32.xlu0 %v2160
        %v2162 = vpop.xlane.xlu0 %2161
        %v2163 = vsel %vm1167, %v1827, 0.0
        %2164 = vadd.xlane.f32.xlu0 %v2163
        %v2165 = vpop.xlane.xlu0 %2164
        %v2166 = vsel %vm1167, %v1828, 0.0
        %2167 = vadd.xlane.f32.xlu0 %v2166
        %v2168 = vpop.xlane.xlu0 %2167
        %v2169 = vsel %vm1167, %v1829, 0.0
        %2170 = vadd.xlane.f32.xlu0 %v2169
        %v2171 = vpop.xlane.xlu0 %2170
        %v2172 = vsel %vm1167, %v1830, 0.0
        %2173 = vadd.xlane.f32.xlu0 %v2172
        %v2174 = vpop.xlane.xlu0 %2173
        %v2175 = vsel %vm1167, %v1831, 0.0
        %2176 = vadd.xlane.f32.xlu0 %v2175
        %v2177 = vpop.xlane.xlu0 %2176
        %v2178 = vsel %vm1167, %v1832, 0.0
        %2179 = vadd.xlane.f32.xlu0 %v2178
        %v2180 = vpop.xlane.xlu0 %2179
        %v2181 = vsel %vm1167, %v1833, 0.0
        %2182 = vadd.xlane.f32.xlu0 %v2181
        %v2183 = vpop.xlane.xlu0 %2182
        %v2184 = vsel %vm1167, %v1834, 0.0
        %2185 = vadd.xlane.f32.xlu0 %v2184
        %v2186 = vpop.xlane.xlu0 %2185
        %v2187 = vsel %vm1167, %v1835, 0.0
        %2188 = vadd.xlane.f32.xlu0 %v2187
        %v2189 = vpop.xlane.xlu0 %2188
        %v2190 = vsel %vm1167, %v1836, 0.0
        %2191 = vadd.xlane.f32.xlu0 %v2190
        %v2192 = vpop.xlane.xlu0 %2191
        %v2193 = vsel %vm1167, %v1837, 0.0
        %2194 = vadd.xlane.f32.xlu0 %v2193
        %v2195 = vpop.xlane.xlu0 %2194
        %v2196 = vsel %vm1167, %v1838, 0.0
        %2197 = vadd.xlane.f32.xlu0 %v2196
        %v2198 = vpop.xlane.xlu0 %2197
        %v2199 = vsel %vm1167, %v1839, 0.0
        %2200 = vadd.xlane.f32.xlu0 %v2199
        %v2201 = vpop.xlane.xlu0 %2200
        %v2202 = vsel %vm1167, %v1840, 0.0
        %2203 = vadd.xlane.f32.xlu0 %v2202
        %v2204 = vpop.xlane.xlu0 %2203
        %v2205 = vsel %vm1167, %v1841, 0.0
        %2206 = vadd.xlane.f32.xlu0 %v2205
        %v2207 = vpop.xlane.xlu0 %2206
        %v2208 = vsel %vm1167, %v1842, 0.0
        %2209 = vadd.xlane.f32.xlu0 %v2208
        %v2210 = vpop.xlane.xlu0 %2209
        %v2211 = vsel %vm1167, %v1843, 0.0
        %2212 = vadd.xlane.f32.xlu0 %v2211
        %v2213 = vpop.xlane.xlu0 %2212
        %v2214 = vsel %vm1167, %v1844, 0.0
        %2215 = vadd.xlane.f32.xlu0 %v2214
        %v2216 = vpop.xlane.xlu0 %2215
        %v2217 = vsel %vm1167, %v1845, 0.0
        %2218 = vadd.xlane.f32.xlu0 %v2217
        %v2219 = vpop.xlane.xlu0 %2218
        %v2220 = vsel %vm1167, %v1846, 0.0
        %2221 = vadd.xlane.f32.xlu0 %v2220
        %v2222 = vpop.xlane.xlu0 %2221
        %v2223 = vsel %vm1167, %v1847, 0.0
        %2224 = vadd.xlane.f32.xlu0 %v2223
        %v2225 = vpop.xlane.xlu0 %2224
        %v2226 = vsel %vm1167, %v1848, 0.0
        %2227 = vadd.xlane.f32.xlu0 %v2226
        %v2228 = vpop.xlane.xlu0 %2227
        %v2229 = vsel %vm1167, %v1849, 0.0
        %2230 = vadd.xlane.f32.xlu0 %v2229
        %v2231 = vpop.xlane.xlu0 %2230
        %v2232 = vsel %vm1167, %v1850, 0.0
        %2233 = vadd.xlane.f32.xlu0 %v2232
        %v2234 = vpop.xlane.xlu0 %2233
        %v2235 = vld [vmem:[#allocation4] sm:$0x1]
        %v2237 = vlaneseq
        %v2238 = vshrl.u32 %v2237, 7
        %v2239 = vsub.s32 0, %v2238
        %v2240 = vrot.slane %v2235, %v2239
        %2241 = vset.pattern.permute.xlu0 0
        %2242 = vperm.xlu0 %2241, %v2240
        %v2243 = vpop.permute.xlu0 %2242
        %v2245 = vadd.f32 %v1853, %v2243
        %v2246 = vadd.f32 %v1856, %v2243
        %v2247 = vadd.f32 %v1859, %v2243
        %v2248 = vadd.f32 %v1862, %v2243
        %v2249 = vadd.f32 %v1865, %v2243
        %v2250 = vadd.f32 %v1868, %v2243
        %v2251 = vadd.f32 %v1871, %v2243
        %v2252 = vadd.f32 %v1874, %v2243
        %v2253 = vadd.f32 %v1877, %v2243
        %v2254 = vadd.f32 %v1880, %v2243
        %v2255 = vadd.f32 %v1883, %v2243
        %v2256 = vadd.f32 %v1886, %v2243
        %v2257 = vadd.f32 %v1889, %v2243
        %v2258 = vadd.f32 %v1892, %v2243
        %v2259 = vadd.f32 %v1895, %v2243
        %v2260 = vadd.f32 %v1898, %v2243
        %v2261 = vadd.f32 %v1901, %v2243
        %v2262 = vadd.f32 %v1904, %v2243
        %v2263 = vadd.f32 %v1907, %v2243
        %v2264 = vadd.f32 %v1910, %v2243
        %v2265 = vadd.f32 %v1913, %v2243
        %v2266 = vadd.f32 %v1916, %v2243
        %v2267 = vadd.f32 %v1919, %v2243
        %v2268 = vadd.f32 %v1922, %v2243
        %v2269 = vadd.f32 %v1925, %v2243
        %v2270 = vadd.f32 %v1928, %v2243
        %v2271 = vadd.f32 %v1931, %v2243
        %v2272 = vadd.f32 %v1934, %v2243
        %v2273 = vadd.f32 %v1937, %v2243
        %v2274 = vadd.f32 %v1940, %v2243
        %v2275 = vadd.f32 %v1943, %v2243
        %v2276 = vadd.f32 %v1946, %v2243
        %v2277 = vadd.f32 %v1949, %v2243
        %v2278 = vadd.f32 %v1952, %v2243
        %v2279 = vadd.f32 %v1955, %v2243
        %v2280 = vadd.f32 %v1958, %v2243
        %v2281 = vadd.f32 %v1961, %v2243
        %v2282 = vadd.f32 %v1964, %v2243
        %v2283 = vadd.f32 %v1967, %v2243
        %v2284 = vadd.f32 %v1970, %v2243
        %v2285 = vadd.f32 %v1973, %v2243
        %v2286 = vadd.f32 %v1976, %v2243
        %v2287 = vadd.f32 %v1979, %v2243
        %v2288 = vadd.f32 %v1982, %v2243
        %v2289 = vadd.f32 %v1985, %v2243
        %v2290 = vadd.f32 %v1988, %v2243
        %v2291 = vadd.f32 %v1991, %v2243
        %v2292 = vadd.f32 %v1994, %v2243
        %v2293 = vadd.f32 %v1997, %v2243
        %v2294 = vadd.f32 %v2000, %v2243
        %v2295 = vadd.f32 %v2003, %v2243
        %v2296 = vadd.f32 %v2006, %v2243
        %v2297 = vadd.f32 %v2009, %v2243
        %v2298 = vadd.f32 %v2012, %v2243
        %v2299 = vadd.f32 %v2015, %v2243
        %v2300 = vadd.f32 %v2018, %v2243
        %v2301 = vadd.f32 %v2021, %v2243
        %v2302 = vadd.f32 %v2024, %v2243
        %v2303 = vadd.f32 %v2027, %v2243
        %v2304 = vadd.f32 %v2030, %v2243
        %v2305 = vadd.f32 %v2033, %v2243
        %v2306 = vadd.f32 %v2036, %v2243
        %v2307 = vadd.f32 %v2039, %v2243
        %v2308 = vadd.f32 %v2042, %v2243
        %v2309 = vadd.f32 %v2045, %v2243
        %v2310 = vadd.f32 %v2048, %v2243
        %v2311 = vadd.f32 %v2051, %v2243
        %v2312 = vadd.f32 %v2054, %v2243
        %v2313 = vadd.f32 %v2057, %v2243
        %v2314 = vadd.f32 %v2060, %v2243
        %v2315 = vadd.f32 %v2063, %v2243
        %v2316 = vadd.f32 %v2066, %v2243
        %v2317 = vadd.f32 %v2069, %v2243
        %v2318 = vadd.f32 %v2072, %v2243
        %v2319 = vadd.f32 %v2075, %v2243
        %v2320 = vadd.f32 %v2078, %v2243
        %v2321 = vadd.f32 %v2081, %v2243
        %v2322 = vadd.f32 %v2084, %v2243
        %v2323 = vadd.f32 %v2087, %v2243
        %v2324 = vadd.f32 %v2090, %v2243
        %v2325 = vadd.f32 %v2093, %v2243
        %v2326 = vadd.f32 %v2096, %v2243
        %v2327 = vadd.f32 %v2099, %v2243
        %v2328 = vadd.f32 %v2102, %v2243
        %v2329 = vadd.f32 %v2105, %v2243
        %v2330 = vadd.f32 %v2108, %v2243
        %v2331 = vadd.f32 %v2111, %v2243
        %v2332 = vadd.f32 %v2114, %v2243
        %v2333 = vadd.f32 %v2117, %v2243
        %v2334 = vadd.f32 %v2120, %v2243
        %v2335 = vadd.f32 %v2123, %v2243
        %v2336 = vadd.f32 %v2126, %v2243
        %v2337 = vadd.f32 %v2129, %v2243
        %v2338 = vadd.f32 %v2132, %v2243
        %v2339 = vadd.f32 %v2135, %v2243
        %v2340 = vadd.f32 %v2138, %v2243
        %v2341 = vadd.f32 %v2141, %v2243
        %v2342 = vadd.f32 %v2144, %v2243
        %v2343 = vadd.f32 %v2147, %v2243
        %v2344 = vadd.f32 %v2150, %v2243
        %v2345 = vadd.f32 %v2153, %v2243
        %v2346 = vadd.f32 %v2156, %v2243
        %v2347 = vadd.f32 %v2159, %v2243
        %v2348 = vadd.f32 %v2162, %v2243
        %v2349 = vadd.f32 %v2165, %v2243
        %v2350 = vadd.f32 %v2168, %v2243
        %v2351 = vadd.f32 %v2171, %v2243
        %v2352 = vadd.f32 %v2174, %v2243
        %v2353 = vadd.f32 %v2177, %v2243
        %v2354 = vadd.f32 %v2180, %v2243
        %v2355 = vadd.f32 %v2183, %v2243
        %v2356 = vadd.f32 %v2186, %v2243
        %v2357 = vadd.f32 %v2189, %v2243
        %v2358 = vadd.f32 %v2192, %v2243
        %v2359 = vadd.f32 %v2195, %v2243
        %v2360 = vadd.f32 %v2198, %v2243
        %v2361 = vadd.f32 %v2201, %v2243
        %v2362 = vadd.f32 %v2204, %v2243
        %v2363 = vadd.f32 %v2207, %v2243
        %v2364 = vadd.f32 %v2210, %v2243
        %v2365 = vadd.f32 %v2213, %v2243
        %v2366 = vadd.f32 %v2216, %v2243
        %v2367 = vadd.f32 %v2219, %v2243
        %v2368 = vadd.f32 %v2222, %v2243
        %v2369 = vadd.f32 %v2225, %v2243
        %v2370 = vadd.f32 %v2228, %v2243
        %v2371 = vadd.f32 %v2231, %v2243
        %v2372 = vadd.f32 %v2234, %v2243
        %v2373 = vlaneseq
        %v2374 = vand.u32 %v2373, 127
        %vm2375 = vcmp.lt.s32.totalorder %v2374, 16
        %v2504 = vlaneseq
        %v2505 = vshrl.u32 %v2504, 7
        %v2506 = vsub.s32 %v2374, %v2505
        %v2507 = vrot.slane %v2245, %v2506
        %v2508 = vadd.s32 %v2374, 4294967288
        %v2509 = vlaneseq
        %v2510 = vshrl.u32 %v2509, 7
        %v2511 = vsub.s32 %v2508, %v2510
        %v2512 = vrot.slane %v2246, %v2511
        %vm2513 = vcmask 130112
        %v2514 = vsel %vm2513, %v2512, %v2507
        %v2515 = vadd.s32 %v2374, 4294967280
        %v2516 = vlaneseq
        %v2517 = vshrl.u32 %v2516, 7
        %v2518 = vsub.s32 %v2515, %v2517
        %v2519 = vrot.slane %v2247, %v2518
        %vm2520 = vcmask 195712
        %v2521 = vsel %vm2520, %v2519, %v2514
        %v2522 = vadd.s32 %v2374, 4294967272
        %v2523 = vlaneseq
        %v2524 = vshrl.u32 %v2523, 7
        %v2525 = vsub.s32 %v2522, %v2524
        %v2526 = vrot.slane %v2248, %v2525
        %vm2527 = vcmask 261312
        %v2528 = vsel %vm2527, %v2526, %v2521
        %v2529 = vadd.s32 %v2374, 4294967264
        %v2530 = vlaneseq
        %v2531 = vshrl.u32 %v2530, 7
        %v2532 = vsub.s32 %v2529, %v2531
        %v2533 = vrot.slane %v2249, %v2532
        %vm2534 = vcmask 326912
        %v2535 = vsel %vm2534, %v2533, %v2528
        %v2536 = vadd.s32 %v2374, 4294967256
        %v2537 = vlaneseq
        %v2538 = vshrl.u32 %v2537, 7
        %v2539 = vsub.s32 %v2536, %v2538
        %v2540 = vrot.slane %v2250, %v2539
        %vm2541 = vcmask 392512
        %v2542 = vsel %vm2541, %v2540, %v2535
        %v2543 = vadd.s32 %v2374, 4294967248
        %v2544 = vlaneseq
        %v2545 = vshrl.u32 %v2544, 7
        %v2546 = vsub.s32 %v2543, %v2545
        %v2547 = vrot.slane %v2251, %v2546
        %vm2548 = vcmask 458112
        %v2549 = vsel %vm2548, %v2547, %v2542
        %v2550 = vadd.s32 %v2374, 4294967240
        %v2551 = vlaneseq
        %v2552 = vshrl.u32 %v2551, 7
        %v2553 = vsub.s32 %v2550, %v2552
        %v2554 = vrot.slane %v2252, %v2553
        %vm2555 = vcmask 523712
        %v2556 = vsel %vm2555, %v2554, %v2549
        %v2557 = vadd.s32 %v2374, 4294967232
        %v2558 = vlaneseq
        %v2559 = vshrl.u32 %v2558, 7
        %v2560 = vsub.s32 %v2557, %v2559
        %v2561 = vrot.slane %v2253, %v2560
        %vm2562 = vcmask 589312
        %v2563 = vsel %vm2562, %v2561, %v2556
        %v2564 = vadd.s32 %v2374, 4294967224
        %v2565 = vlaneseq
        %v2566 = vshrl.u32 %v2565, 7
        %v2567 = vsub.s32 %v2564, %v2566
        %v2568 = vrot.slane %v2254, %v2567
        %vm2569 = vcmask 654912
        %v2570 = vsel %vm2569, %v2568, %v2563
        %v2571 = vadd.s32 %v2374, 4294967216
        %v2572 = vlaneseq
        %v2573 = vshrl.u32 %v2572, 7
        %v2574 = vsub.s32 %v2571, %v2573
        %v2575 = vrot.slane %v2255, %v2574
        %vm2576 = vcmask 720512
        %v2577 = vsel %vm2576, %v2575, %v2570
        %v2578 = vadd.s32 %v2374, 4294967208
        %v2579 = vlaneseq
        %v2580 = vshrl.u32 %v2579, 7
        %v2581 = vsub.s32 %v2578, %v2580
        %v2582 = vrot.slane %v2256, %v2581
        %vm2583 = vcmask 786112
        %v2584 = vsel %vm2583, %v2582, %v2577
        %v2585 = vadd.s32 %v2374, 4294967200
        %v2586 = vlaneseq
        %v2587 = vshrl.u32 %v2586, 7
        %v2588 = vsub.s32 %v2585, %v2587
        %v2589 = vrot.slane %v2257, %v2588
        %vm2590 = vcmask 851712
        %v2591 = vsel %vm2590, %v2589, %v2584
        %v2592 = vadd.s32 %v2374, 4294967192
        %v2593 = vlaneseq
        %v2594 = vshrl.u32 %v2593, 7
        %v2595 = vsub.s32 %v2592, %v2594
        %v2596 = vrot.slane %v2258, %v2595
        %vm2597 = vcmask 917312
        %v2598 = vsel %vm2597, %v2596, %v2591
        %v2599 = vadd.s32 %v2374, 4294967184
        %v2600 = vlaneseq
        %v2601 = vshrl.u32 %v2600, 7
        %v2602 = vsub.s32 %v2599, %v2601
        %v2603 = vrot.slane %v2259, %v2602
        %vm2604 = vcmask 982912
        %v2605 = vsel %vm2604, %v2603, %v2598
        %v2606 = vadd.s32 %v2374, 4294967176
        %v2607 = vlaneseq
        %v2608 = vshrl.u32 %v2607, 7
        %v2609 = vsub.s32 %v2606, %v2608
        %v2610 = vrot.slane %v2260, %v2609
        %vm2611 = vcmask 1048512
        %v2612 = vsel %vm2611, %v2610, %v2605
        %v2613 = vlaneseq
        %v2614 = vshrl.u32 %v2613, 7
        %v2615 = vsub.s32 %v2374, %v2614
        %v2616 = vrot.slane %v2261, %v2615
        %v2617 = vlaneseq
        %v2618 = vshrl.u32 %v2617, 7
        %v2619 = vsub.s32 %v2508, %v2618
        %v2620 = vrot.slane %v2262, %v2619
        %v2621 = vsel %vm2513, %v2620, %v2616
        %v2622 = vlaneseq
        %v2623 = vshrl.u32 %v2622, 7
        %v2624 = vsub.s32 %v2515, %v2623
        %v2625 = vrot.slane %v2263, %v2624
        %v2626 = vsel %vm2520, %v2625, %v2621
        %v2627 = vlaneseq
        %v2628 = vshrl.u32 %v2627, 7
        %v2629 = vsub.s32 %v2522, %v2628
        %v2630 = vrot.slane %v2264, %v2629
        %v2631 = vsel %vm2527, %v2630, %v2626
        %v2632 = vlaneseq
        %v2633 = vshrl.u32 %v2632, 7
        %v2634 = vsub.s32 %v2529, %v2633
        %v2635 = vrot.slane %v2265, %v2634
        %v2636 = vsel %vm2534, %v2635, %v2631
        %v2637 = vlaneseq
        %v2638 = vshrl.u32 %v2637, 7
        %v2639 = vsub.s32 %v2536, %v2638
        %v2640 = vrot.slane %v2266, %v2639
        %v2641 = vsel %vm2541, %v2640, %v2636
        %v2642 = vlaneseq
        %v2643 = vshrl.u32 %v2642, 7
        %v2644 = vsub.s32 %v2543, %v2643
        %v2645 = vrot.slane %v2267, %v2644
        %v2646 = vsel %vm2548, %v2645, %v2641
        %v2647 = vlaneseq
        %v2648 = vshrl.u32 %v2647, 7
        %v2649 = vsub.s32 %v2550, %v2648
        %v2650 = vrot.slane %v2268, %v2649
        %v2651 = vsel %vm2555, %v2650, %v2646
        %v2652 = vlaneseq
        %v2653 = vshrl.u32 %v2652, 7
        %v2654 = vsub.s32 %v2557, %v2653
        %v2655 = vrot.slane %v2269, %v2654
        %v2656 = vsel %vm2562, %v2655, %v2651
        %v2657 = vlaneseq
        %v2658 = vshrl.u32 %v2657, 7
        %v2659 = vsub.s32 %v2564, %v2658
        %v2660 = vrot.slane %v2270, %v2659
        %v2661 = vsel %vm2569, %v2660, %v2656
        %v2662 = vlaneseq
        %v2663 = vshrl.u32 %v2662, 7
        %v2664 = vsub.s32 %v2571, %v2663
        %v2665 = vrot.slane %v2271, %v2664
        %v2666 = vsel %vm2576, %v2665, %v2661
        %v2667 = vlaneseq
        %v2668 = vshrl.u32 %v2667, 7
        %v2669 = vsub.s32 %v2578, %v2668
        %v2670 = vrot.slane %v2272, %v2669
        %v2671 = vsel %vm2583, %v2670, %v2666
        %v2672 = vlaneseq
        %v2673 = vshrl.u32 %v2672, 7
        %v2674 = vsub.s32 %v2585, %v2673
        %v2675 = vrot.slane %v2273, %v2674
        %v2676 = vsel %vm2590, %v2675, %v2671
        %v2677 = vlaneseq
        %v2678 = vshrl.u32 %v2677, 7
        %v2679 = vsub.s32 %v2592, %v2678
        %v2680 = vrot.slane %v2274, %v2679
        %v2681 = vsel %vm2597, %v2680, %v2676
        %v2682 = vlaneseq
        %v2683 = vshrl.u32 %v2682, 7
        %v2684 = vsub.s32 %v2599, %v2683
        %v2685 = vrot.slane %v2275, %v2684
        %v2686 = vsel %vm2604, %v2685, %v2681
        %v2687 = vlaneseq
        %v2688 = vshrl.u32 %v2687, 7
        %v2689 = vsub.s32 %v2606, %v2688
        %v2690 = vrot.slane %v2276, %v2689
        %v2691 = vsel %vm2611, %v2690, %v2686
        %v2692 = vlaneseq
        %v2693 = vshrl.u32 %v2692, 7
        %v2694 = vsub.s32 %v2374, %v2693
        %v2695 = vrot.slane %v2277, %v2694
        %v2696 = vlaneseq
        %v2697 = vshrl.u32 %v2696, 7
        %v2698 = vsub.s32 %v2508, %v2697
        %v2699 = vrot.slane %v2278, %v2698
        %v2700 = vsel %vm2513, %v2699, %v2695
        %v2701 = vlaneseq
        %v2702 = vshrl.u32 %v2701, 7
        %v2703 = vsub.s32 %v2515, %v2702
        %v2704 = vrot.slane %v2279, %v2703
        %v2705 = vsel %vm2520, %v2704, %v2700
        %v2706 = vlaneseq
        %v2707 = vshrl.u32 %v2706, 7
        %v2708 = vsub.s32 %v2522, %v2707
        %v2709 = vrot.slane %v2280, %v2708
        %v2710 = vsel %vm2527, %v2709, %v2705
        %v2711 = vlaneseq
        %v2712 = vshrl.u32 %v2711, 7
        %v2713 = vsub.s32 %v2529, %v2712
        %v2714 = vrot.slane %v2281, %v2713
        %v2715 = vsel %vm2534, %v2714, %v2710
        %v2716 = vlaneseq
        %v2717 = vshrl.u32 %v2716, 7
        %v2718 = vsub.s32 %v2536, %v2717
        %v2719 = vrot.slane %v2282, %v2718
        %v2720 = vsel %vm2541, %v2719, %v2715
        %v2721 = vlaneseq
        %v2722 = vshrl.u32 %v2721, 7
        %v2723 = vsub.s32 %v2543, %v2722
        %v2724 = vrot.slane %v2283, %v2723
        %v2725 = vsel %vm2548, %v2724, %v2720
        %v2726 = vlaneseq
        %v2727 = vshrl.u32 %v2726, 7
        %v2728 = vsub.s32 %v2550, %v2727
        %v2729 = vrot.slane %v2284, %v2728
        %v2730 = vsel %vm2555, %v2729, %v2725
        %v2731 = vlaneseq
        %v2732 = vshrl.u32 %v2731, 7
        %v2733 = vsub.s32 %v2557, %v2732
        %v2734 = vrot.slane %v2285, %v2733
        %v2735 = vsel %vm2562, %v2734, %v2730
        %v2736 = vlaneseq
        %v2737 = vshrl.u32 %v2736, 7
        %v2738 = vsub.s32 %v2564, %v2737
        %v2739 = vrot.slane %v2286, %v2738
        %v2740 = vsel %vm2569, %v2739, %v2735
        %v2741 = vlaneseq
        %v2742 = vshrl.u32 %v2741, 7
        %v2743 = vsub.s32 %v2571, %v2742
        %v2744 = vrot.slane %v2287, %v2743
        %v2745 = vsel %vm2576, %v2744, %v2740
        %v2746 = vlaneseq
        %v2747 = vshrl.u32 %v2746, 7
        %v2748 = vsub.s32 %v2578, %v2747
        %v2749 = vrot.slane %v2288, %v2748
        %v2750 = vsel %vm2583, %v2749, %v2745
        %v2751 = vlaneseq
        %v2752 = vshrl.u32 %v2751, 7
        %v2753 = vsub.s32 %v2585, %v2752
        %v2754 = vrot.slane %v2289, %v2753
        %v2755 = vsel %vm2590, %v2754, %v2750
        %v2756 = vlaneseq
        %v2757 = vshrl.u32 %v2756, 7
        %v2758 = vsub.s32 %v2592, %v2757
        %v2759 = vrot.slane %v2290, %v2758
        %v2760 = vsel %vm2597, %v2759, %v2755
        %v2761 = vlaneseq
        %v2762 = vshrl.u32 %v2761, 7
        %v2763 = vsub.s32 %v2599, %v2762
        %v2764 = vrot.slane %v2291, %v2763
        %v2765 = vsel %vm2604, %v2764, %v2760
        %v2766 = vlaneseq
        %v2767 = vshrl.u32 %v2766, 7
        %v2768 = vsub.s32 %v2606, %v2767
        %v2769 = vrot.slane %v2292, %v2768
        %v2770 = vsel %vm2611, %v2769, %v2765
        %v2771 = vlaneseq
        %v2772 = vshrl.u32 %v2771, 7
        %v2773 = vsub.s32 %v2374, %v2772
        %v2774 = vrot.slane %v2293, %v2773
        %v2775 = vlaneseq
        %v2776 = vshrl.u32 %v2775, 7
        %v2777 = vsub.s32 %v2508, %v2776
        %v2778 = vrot.slane %v2294, %v2777
        %v2779 = vsel %vm2513, %v2778, %v2774
        %v2780 = vlaneseq
        %v2781 = vshrl.u32 %v2780, 7
        %v2782 = vsub.s32 %v2515, %v2781
        %v2783 = vrot.slane %v2295, %v2782
        %v2784 = vsel %vm2520, %v2783, %v2779
        %v2785 = vlaneseq
        %v2786 = vshrl.u32 %v2785, 7
        %v2787 = vsub.s32 %v2522, %v2786
        %v2788 = vrot.slane %v2296, %v2787
        %v2789 = vsel %vm2527, %v2788, %v2784
        %v2790 = vlaneseq
        %v2791 = vshrl.u32 %v2790, 7
        %v2792 = vsub.s32 %v2529, %v2791
        %v2793 = vrot.slane %v2297, %v2792
        %v2794 = vsel %vm2534, %v2793, %v2789
        %v2795 = vlaneseq
        %v2796 = vshrl.u32 %v2795, 7
        %v2797 = vsub.s32 %v2536, %v2796
        %v2798 = vrot.slane %v2298, %v2797
        %v2799 = vsel %vm2541, %v2798, %v2794
        %v2800 = vlaneseq
        %v2801 = vshrl.u32 %v2800, 7
        %v2802 = vsub.s32 %v2543, %v2801
        %v2803 = vrot.slane %v2299, %v2802
        %v2804 = vsel %vm2548, %v2803, %v2799
        %v2805 = vlaneseq
        %v2806 = vshrl.u32 %v2805, 7
        %v2807 = vsub.s32 %v2550, %v2806
        %v2808 = vrot.slane %v2300, %v2807
        %v2809 = vsel %vm2555, %v2808, %v2804
        %v2810 = vlaneseq
        %v2811 = vshrl.u32 %v2810, 7
        %v2812 = vsub.s32 %v2557, %v2811
        %v2813 = vrot.slane %v2301, %v2812
        %v2814 = vsel %vm2562, %v2813, %v2809
        %v2815 = vlaneseq
        %v2816 = vshrl.u32 %v2815, 7
        %v2817 = vsub.s32 %v2564, %v2816
        %v2818 = vrot.slane %v2302, %v2817
        %v2819 = vsel %vm2569, %v2818, %v2814
        %v2820 = vlaneseq
        %v2821 = vshrl.u32 %v2820, 7
        %v2822 = vsub.s32 %v2571, %v2821
        %v2823 = vrot.slane %v2303, %v2822
        %v2824 = vsel %vm2576, %v2823, %v2819
        %v2825 = vlaneseq
        %v2826 = vshrl.u32 %v2825, 7
        %v2827 = vsub.s32 %v2578, %v2826
        %v2828 = vrot.slane %v2304, %v2827
        %v2829 = vsel %vm2583, %v2828, %v2824
        %v2830 = vlaneseq
        %v2831 = vshrl.u32 %v2830, 7
        %v2832 = vsub.s32 %v2585, %v2831
        %v2833 = vrot.slane %v2305, %v2832
        %v2834 = vsel %vm2590, %v2833, %v2829
        %v2835 = vlaneseq
        %v2836 = vshrl.u32 %v2835, 7
        %v2837 = vsub.s32 %v2592, %v2836
        %v2838 = vrot.slane %v2306, %v2837
        %v2839 = vsel %vm2597, %v2838, %v2834
        %v2840 = vlaneseq
        %v2841 = vshrl.u32 %v2840, 7
        %v2842 = vsub.s32 %v2599, %v2841
        %v2843 = vrot.slane %v2307, %v2842
        %v2844 = vsel %vm2604, %v2843, %v2839
        %v2845 = vlaneseq
        %v2846 = vshrl.u32 %v2845, 7
        %v2847 = vsub.s32 %v2606, %v2846
        %v2848 = vrot.slane %v2308, %v2847
        %v2849 = vsel %vm2611, %v2848, %v2844
        %v2850 = vlaneseq
        %v2851 = vshrl.u32 %v2850, 7
        %v2852 = vsub.s32 %v2374, %v2851
        %v2853 = vrot.slane %v2309, %v2852
        %v2854 = vlaneseq
        %v2855 = vshrl.u32 %v2854, 7
        %v2856 = vsub.s32 %v2508, %v2855
        %v2857 = vrot.slane %v2310, %v2856
        %v2858 = vsel %vm2513, %v2857, %v2853
        %v2859 = vlaneseq
        %v2860 = vshrl.u32 %v2859, 7
        %v2861 = vsub.s32 %v2515, %v2860
        %v2862 = vrot.slane %v2311, %v2861
        %v2863 = vsel %vm2520, %v2862, %v2858
        %v2864 = vlaneseq
        %v2865 = vshrl.u32 %v2864, 7
        %v2866 = vsub.s32 %v2522, %v2865
        %v2867 = vrot.slane %v2312, %v2866
        %v2868 = vsel %vm2527, %v2867, %v2863
        %v2869 = vlaneseq
        %v2870 = vshrl.u32 %v2869, 7
        %v2871 = vsub.s32 %v2529, %v2870
        %v2872 = vrot.slane %v2313, %v2871
        %v2873 = vsel %vm2534, %v2872, %v2868
        %v2874 = vlaneseq
        %v2875 = vshrl.u32 %v2874, 7
        %v2876 = vsub.s32 %v2536, %v2875
        %v2877 = vrot.slane %v2314, %v2876
        %v2878 = vsel %vm2541, %v2877, %v2873
        %v2879 = vlaneseq
        %v2880 = vshrl.u32 %v2879, 7
        %v2881 = vsub.s32 %v2543, %v2880
        %v2882 = vrot.slane %v2315, %v2881
        %v2883 = vsel %vm2548, %v2882, %v2878
        %v2884 = vlaneseq
        %v2885 = vshrl.u32 %v2884, 7
        %v2886 = vsub.s32 %v2550, %v2885
        %v2887 = vrot.slane %v2316, %v2886
        %v2888 = vsel %vm2555, %v2887, %v2883
        %v2889 = vlaneseq
        %v2890 = vshrl.u32 %v2889, 7
        %v2891 = vsub.s32 %v2557, %v2890
        %v2892 = vrot.slane %v2317, %v2891
        %v2893 = vsel %vm2562, %v2892, %v2888
        %v2894 = vlaneseq
        %v2895 = vshrl.u32 %v2894, 7
        %v2896 = vsub.s32 %v2564, %v2895
        %v2897 = vrot.slane %v2318, %v2896
        %v2898 = vsel %vm2569, %v2897, %v2893
        %v2899 = vlaneseq
        %v2900 = vshrl.u32 %v2899, 7
        %v2901 = vsub.s32 %v2571, %v2900
        %v2902 = vrot.slane %v2319, %v2901
        %v2903 = vsel %vm2576, %v2902, %v2898
        %v2904 = vlaneseq
        %v2905 = vshrl.u32 %v2904, 7
        %v2906 = vsub.s32 %v2578, %v2905
        %v2907 = vrot.slane %v2320, %v2906
        %v2908 = vsel %vm2583, %v2907, %v2903
        %v2909 = vlaneseq
        %v2910 = vshrl.u32 %v2909, 7
        %v2911 = vsub.s32 %v2585, %v2910
        %v2912 = vrot.slane %v2321, %v2911
        %v2913 = vsel %vm2590, %v2912, %v2908
        %v2914 = vlaneseq
        %v2915 = vshrl.u32 %v2914, 7
        %v2916 = vsub.s32 %v2592, %v2915
        %v2917 = vrot.slane %v2322, %v2916
        %v2918 = vsel %vm2597, %v2917, %v2913
        %v2919 = vlaneseq
        %v2920 = vshrl.u32 %v2919, 7
        %v2921 = vsub.s32 %v2599, %v2920
        %v2922 = vrot.slane %v2323, %v2921
        %v2923 = vsel %vm2604, %v2922, %v2918
        %v2924 = vlaneseq
        %v2925 = vshrl.u32 %v2924, 7
        %v2926 = vsub.s32 %v2606, %v2925
        %v2927 = vrot.slane %v2324, %v2926
        %v2928 = vsel %vm2611, %v2927, %v2923
        %v2929 = vlaneseq
        %v2930 = vshrl.u32 %v2929, 7
        %v2931 = vsub.s32 %v2374, %v2930
        %v2932 = vrot.slane %v2325, %v2931
        %v2933 = vlaneseq
        %v2934 = vshrl.u32 %v2933, 7
        %v2935 = vsub.s32 %v2508, %v2934
        %v2936 = vrot.slane %v2326, %v2935
        %v2937 = vsel %vm2513, %v2936, %v2932
        %v2938 = vlaneseq
        %v2939 = vshrl.u32 %v2938, 7
        %v2940 = vsub.s32 %v2515, %v2939
        %v2941 = vrot.slane %v2327, %v2940
        %v2942 = vsel %vm2520, %v2941, %v2937
        %v2943 = vlaneseq
        %v2944 = vshrl.u32 %v2943, 7
        %v2945 = vsub.s32 %v2522, %v2944
        %v2946 = vrot.slane %v2328, %v2945
        %v2947 = vsel %vm2527, %v2946, %v2942
        %v2948 = vlaneseq
        %v2949 = vshrl.u32 %v2948, 7
        %v2950 = vsub.s32 %v2529, %v2949
        %v2951 = vrot.slane %v2329, %v2950
        %v2952 = vsel %vm2534, %v2951, %v2947
        %v2953 = vlaneseq
        %v2954 = vshrl.u32 %v2953, 7
        %v2955 = vsub.s32 %v2536, %v2954
        %v2956 = vrot.slane %v2330, %v2955
        %v2957 = vsel %vm2541, %v2956, %v2952
        %v2958 = vlaneseq
        %v2959 = vshrl.u32 %v2958, 7
        %v2960 = vsub.s32 %v2543, %v2959
        %v2961 = vrot.slane %v2331, %v2960
        %v2962 = vsel %vm2548, %v2961, %v2957
        %v2963 = vlaneseq
        %v2964 = vshrl.u32 %v2963, 7
        %v2965 = vsub.s32 %v2550, %v2964
        %v2966 = vrot.slane %v2332, %v2965
        %v2967 = vsel %vm2555, %v2966, %v2962
        %v2968 = vlaneseq
        %v2969 = vshrl.u32 %v2968, 7
        %v2970 = vsub.s32 %v2557, %v2969
        %v2971 = vrot.slane %v2333, %v2970
        %v2972 = vsel %vm2562, %v2971, %v2967
        %v2973 = vlaneseq
        %v2974 = vshrl.u32 %v2973, 7
        %v2975 = vsub.s32 %v2564, %v2974
        %v2976 = vrot.slane %v2334, %v2975
        %v2977 = vsel %vm2569, %v2976, %v2972
        %v2978 = vlaneseq
        %v2979 = vshrl.u32 %v2978, 7
        %v2980 = vsub.s32 %v2571, %v2979
        %v2981 = vrot.slane %v2335, %v2980
        %v2982 = vsel %vm2576, %v2981, %v2977
        %v2983 = vlaneseq
        %v2984 = vshrl.u32 %v2983, 7
        %v2985 = vsub.s32 %v2578, %v2984
        %v2986 = vrot.slane %v2336, %v2985
        %v2987 = vsel %vm2583, %v2986, %v2982
        %v2988 = vlaneseq
        %v2989 = vshrl.u32 %v2988, 7
        %v2990 = vsub.s32 %v2585, %v2989
        %v2991 = vrot.slane %v2337, %v2990
        %v2992 = vsel %vm2590, %v2991, %v2987
        %v2993 = vlaneseq
        %v2994 = vshrl.u32 %v2993, 7
        %v2995 = vsub.s32 %v2592, %v2994
        %v2996 = vrot.slane %v2338, %v2995
        %v2997 = vsel %vm2597, %v2996, %v2992
        %v2998 = vlaneseq
        %v2999 = vshrl.u32 %v2998, 7
        %v3000 = vsub.s32 %v2599, %v2999
        %v3001 = vrot.slane %v2339, %v3000
        %v3002 = vsel %vm2604, %v3001, %v2997
        %v3003 = vlaneseq
        %v3004 = vshrl.u32 %v3003, 7
        %v3005 = vsub.s32 %v2606, %v3004
        %v3006 = vrot.slane %v2340, %v3005
        %v3007 = vsel %vm2611, %v3006, %v3002
        %v3008 = vlaneseq
        %v3009 = vshrl.u32 %v3008, 7
        %v3010 = vsub.s32 %v2374, %v3009
        %v3011 = vrot.slane %v2341, %v3010
        %v3012 = vlaneseq
        %v3013 = vshrl.u32 %v3012, 7
        %v3014 = vsub.s32 %v2508, %v3013
        %v3015 = vrot.slane %v2342, %v3014
        %v3016 = vsel %vm2513, %v3015, %v3011
        %v3017 = vlaneseq
        %v3018 = vshrl.u32 %v3017, 7
        %v3019 = vsub.s32 %v2515, %v3018
        %v3020 = vrot.slane %v2343, %v3019
        %v3021 = vsel %vm2520, %v3020, %v3016
        %v3022 = vlaneseq
        %v3023 = vshrl.u32 %v3022, 7
        %v3024 = vsub.s32 %v2522, %v3023
        %v3025 = vrot.slane %v2344, %v3024
        %v3026 = vsel %vm2527, %v3025, %v3021
        %v3027 = vlaneseq
        %v3028 = vshrl.u32 %v3027, 7
        %v3029 = vsub.s32 %v2529, %v3028
        %v3030 = vrot.slane %v2345, %v3029
        %v3031 = vsel %vm2534, %v3030, %v3026
        %v3032 = vlaneseq
        %v3033 = vshrl.u32 %v3032, 7
        %v3034 = vsub.s32 %v2536, %v3033
        %v3035 = vrot.slane %v2346, %v3034
        %v3036 = vsel %vm2541, %v3035, %v3031
        %v3037 = vlaneseq
        %v3038 = vshrl.u32 %v3037, 7
        %v3039 = vsub.s32 %v2543, %v3038
        %v3040 = vrot.slane %v2347, %v3039
        %v3041 = vsel %vm2548, %v3040, %v3036
        %v3042 = vlaneseq
        %v3043 = vshrl.u32 %v3042, 7
        %v3044 = vsub.s32 %v2550, %v3043
        %v3045 = vrot.slane %v2348, %v3044
        %v3046 = vsel %vm2555, %v3045, %v3041
        %v3047 = vlaneseq
        %v3048 = vshrl.u32 %v3047, 7
        %v3049 = vsub.s32 %v2557, %v3048
        %v3050 = vrot.slane %v2349, %v3049
        %v3051 = vsel %vm2562, %v3050, %v3046
        %v3052 = vlaneseq
        %v3053 = vshrl.u32 %v3052, 7
        %v3054 = vsub.s32 %v2564, %v3053
        %v3055 = vrot.slane %v2350, %v3054
        %v3056 = vsel %vm2569, %v3055, %v3051
        %v3057 = vlaneseq
        %v3058 = vshrl.u32 %v3057, 7
        %v3059 = vsub.s32 %v2571, %v3058
        %v3060 = vrot.slane %v2351, %v3059
        %v3061 = vsel %vm2576, %v3060, %v3056
        %v3062 = vlaneseq
        %v3063 = vshrl.u32 %v3062, 7
        %v3064 = vsub.s32 %v2578, %v3063
        %v3065 = vrot.slane %v2352, %v3064
        %v3066 = vsel %vm2583, %v3065, %v3061
        %v3067 = vlaneseq
        %v3068 = vshrl.u32 %v3067, 7
        %v3069 = vsub.s32 %v2585, %v3068
        %v3070 = vrot.slane %v2353, %v3069
        %v3071 = vsel %vm2590, %v3070, %v3066
        %v3072 = vlaneseq
        %v3073 = vshrl.u32 %v3072, 7
        %v3074 = vsub.s32 %v2592, %v3073
        %v3075 = vrot.slane %v2354, %v3074
        %v3076 = vsel %vm2597, %v3075, %v3071
        %v3077 = vlaneseq
        %v3078 = vshrl.u32 %v3077, 7
        %v3079 = vsub.s32 %v2599, %v3078
        %v3080 = vrot.slane %v2355, %v3079
        %v3081 = vsel %vm2604, %v3080, %v3076
        %v3082 = vlaneseq
        %v3083 = vshrl.u32 %v3082, 7
        %v3084 = vsub.s32 %v2606, %v3083
        %v3085 = vrot.slane %v2356, %v3084
        %v3086 = vsel %vm2611, %v3085, %v3081
        %v3087 = vlaneseq
        %v3088 = vshrl.u32 %v3087, 7
        %v3089 = vsub.s32 %v2374, %v3088
        %v3090 = vrot.slane %v2357, %v3089
        %v3091 = vlaneseq
        %v3092 = vshrl.u32 %v3091, 7
        %v3093 = vsub.s32 %v2508, %v3092
        %v3094 = vrot.slane %v2358, %v3093
        %v3095 = vsel %vm2513, %v3094, %v3090
        %v3096 = vlaneseq
        %v3097 = vshrl.u32 %v3096, 7
        %v3098 = vsub.s32 %v2515, %v3097
        %v3099 = vrot.slane %v2359, %v3098
        %v3100 = vsel %vm2520, %v3099, %v3095
        %v3101 = vlaneseq
        %v3102 = vshrl.u32 %v3101, 7
        %v3103 = vsub.s32 %v2522, %v3102
        %v3104 = vrot.slane %v2360, %v3103
        %v3105 = vsel %vm2527, %v3104, %v3100
        %v3106 = vlaneseq
        %v3107 = vshrl.u32 %v3106, 7
        %v3108 = vsub.s32 %v2529, %v3107
        %v3109 = vrot.slane %v2361, %v3108
        %v3110 = vsel %vm2534, %v3109, %v3105
        %v3111 = vlaneseq
        %v3112 = vshrl.u32 %v3111, 7
        %v3113 = vsub.s32 %v2536, %v3112
        %v3114 = vrot.slane %v2362, %v3113
        %v3115 = vsel %vm2541, %v3114, %v3110
        %v3116 = vlaneseq
        %v3117 = vshrl.u32 %v3116, 7
        %v3118 = vsub.s32 %v2543, %v3117
        %v3119 = vrot.slane %v2363, %v3118
        %v3120 = vsel %vm2548, %v3119, %v3115
        %v3121 = vlaneseq
        %v3122 = vshrl.u32 %v3121, 7
        %v3123 = vsub.s32 %v2550, %v3122
        %v3124 = vrot.slane %v2364, %v3123
        %v3125 = vsel %vm2555, %v3124, %v3120
        %v3126 = vlaneseq
        %v3127 = vshrl.u32 %v3126, 7
        %v3128 = vsub.s32 %v2557, %v3127
        %v3129 = vrot.slane %v2365, %v3128
        %v3130 = vsel %vm2562, %v3129, %v3125
        %v3131 = vlaneseq
        %v3132 = vshrl.u32 %v3131, 7
        %v3133 = vsub.s32 %v2564, %v3132
        %v3134 = vrot.slane %v2366, %v3133
        %v3135 = vsel %vm2569, %v3134, %v3130
        %v3136 = vlaneseq
        %v3137 = vshrl.u32 %v3136, 7
        %v3138 = vsub.s32 %v2571, %v3137
        %v3139 = vrot.slane %v2367, %v3138
        %v3140 = vsel %vm2576, %v3139, %v3135
        %v3141 = vlaneseq
        %v3142 = vshrl.u32 %v3141, 7
        %v3143 = vsub.s32 %v2578, %v3142
        %v3144 = vrot.slane %v2368, %v3143
        %v3145 = vsel %vm2583, %v3144, %v3140
        %v3146 = vlaneseq
        %v3147 = vshrl.u32 %v3146, 7
        %v3148 = vsub.s32 %v2585, %v3147
        %v3149 = vrot.slane %v2369, %v3148
        %v3150 = vsel %vm2590, %v3149, %v3145
        %v3151 = vlaneseq
        %v3152 = vshrl.u32 %v3151, 7
        %v3153 = vsub.s32 %v2592, %v3152
        %v3154 = vrot.slane %v2370, %v3153
        %v3155 = vsel %vm2597, %v3154, %v3150
        %v3156 = vlaneseq
        %v3157 = vshrl.u32 %v3156, 7
        %v3158 = vsub.s32 %v2599, %v3157
        %v3159 = vrot.slane %v2371, %v3158
        %v3160 = vsel %vm2604, %v3159, %v3155
        %v3161 = vlaneseq
        %v3162 = vshrl.u32 %v3161, 7
        %v3163 = vsub.s32 %v2606, %v3162
        %v3164 = vrot.slane %v2372, %v3163
        %v3165 = vsel %vm2611, %v3164, %v3160
        %vm3166 = vcmask 1041409
        %v3167 = vsel %vm3166, %v2691, %v2612
        %vm3168 = vcmask 1042434
        %v3169 = vsel %vm3168, %v2770, %v3167
        %vm3170 = vcmask 1043459
        %v3171 = vsel %vm3170, %v2849, %v3169
        %vm3172 = vcmask 1044484
        %v3173 = vsel %vm3172, %v2928, %v3171
        %vm3174 = vcmask 1045509
        %v3175 = vsel %vm3174, %v3007, %v3173
        %vm3176 = vcmask 1046534
        %v3177 = vsel %vm3176, %v3086, %v3175
        %vm3178 = vcmask 1047559
        %v3179 = vsel %vm3178, %v3165, %v3177
        %v3181 = vsel %vm2375, %v3179, -inf
        %3182 = vmax.xlane.f32.xlu0 %v3181
        %v3183 = vpop.xlane.xlu0 %3182
        %v3184 = vsub.f32 %v3181, %v3183
        %v3185 = vmul.f32 %v3184, 1.442695
        %v3186 = vpow.pop %v3185
        %3187 = vadd.xlane.f32.xlu0 %v3186
        %v3188 = vpop.xlane.xlu0 %3187
        %v3189 = vrcp.pop %v3188
        %v3190 = vmul.f32 %v3186, %v3189
        %v3191 = vlaneseq
        %v3192 = vshrl.u32 %v3191, 7
        %v3193 = vsub.s32 0, %v3192
        %v3194 = vrot.slane %v3190, %v3193
        %3196 = vbcast.lane.b32.xlu0 %v3194, 256
        %v3197 = vpop.permute.xlu0 %3196
        %s3199 = sor.u32 256, 8
        %3200 = vbcast.lane.b32.xlu0 %v3194, %s3199
        %v3201 = vpop.permute.xlu0 %3200
        %s3203 = sor.u32 256, 16
        %3204 = vbcast.lane.b32.xlu0 %v3194, %s3203
        %v3205 = vpop.permute.xlu0 %3204
        %s3207 = sor.u32 256, 24
        %3208 = vbcast.lane.b32.xlu0 %v3194, %s3207
        %v3209 = vpop.permute.xlu0 %3208
        %s3211 = sor.u32 256, 32
        %3212 = vbcast.lane.b32.xlu0 %v3194, %s3211
        %v3213 = vpop.permute.xlu0 %3212
        %s3215 = sor.u32 256, 40
        %3216 = vbcast.lane.b32.xlu0 %v3194, %s3215
        %v3217 = vpop.permute.xlu0 %3216
        %s3219 = sor.u32 256, 48
        %3220 = vbcast.lane.b32.xlu0 %v3194, %s3219
        %v3221 = vpop.permute.xlu0 %3220
        %s3223 = sor.u32 256, 56
        %3224 = vbcast.lane.b32.xlu0 %v3194, %s3223
        %v3225 = vpop.permute.xlu0 %3224
        %s3227 = sor.u32 256, 64
        %3228 = vbcast.lane.b32.xlu0 %v3194, %s3227
        %v3229 = vpop.permute.xlu0 %3228
        %s3231 = sor.u32 256, 72
        %3232 = vbcast.lane.b32.xlu0 %v3194, %s3231
        %v3233 = vpop.permute.xlu0 %3232
        %s3235 = sor.u32 256, 80
        %3236 = vbcast.lane.b32.xlu0 %v3194, %s3235
        %v3237 = vpop.permute.xlu0 %3236
        %s3239 = sor.u32 256, 88
        %3240 = vbcast.lane.b32.xlu0 %v3194, %s3239
        %v3241 = vpop.permute.xlu0 %3240
        %s3243 = sor.u32 256, 96
        %3244 = vbcast.lane.b32.xlu0 %v3194, %s3243
        %v3245 = vpop.permute.xlu0 %3244
        %s3247 = sor.u32 256, 104
        %3248 = vbcast.lane.b32.xlu0 %v3194, %s3247
        %v3249 = vpop.permute.xlu0 %3248
        %s3251 = sor.u32 256, 112
        %3252 = vbcast.lane.b32.xlu0 %v3194, %s3251
        %v3253 = vpop.permute.xlu0 %3252
        %s3255 = sor.u32 256, 120
        %3256 = vbcast.lane.b32.xlu0 %v3194, %s3255
        %v3257 = vpop.permute.xlu0 %3256
        %v3258 = vlaneseq
        %v3259 = vshrl.u32 %v3258, 7
        %v3260 = vsub.s32 1, %v3259
        %v3261 = vrot.slane %v3190, %v3260
        %3263 = vbcast.lane.b32.xlu0 %v3261, 256
        %v3264 = vpop.permute.xlu0 %3263
        %s3266 = sor.u32 256, 8
        %3267 = vbcast.lane.b32.xlu0 %v3261, %s3266
        %v3268 = vpop.permute.xlu0 %3267
        %s3270 = sor.u32 256, 16
        %3271 = vbcast.lane.b32.xlu0 %v3261, %s3270
        %v3272 = vpop.permute.xlu0 %3271
        %s3274 = sor.u32 256, 24
        %3275 = vbcast.lane.b32.xlu0 %v3261, %s3274
        %v3276 = vpop.permute.xlu0 %3275
        %s3278 = sor.u32 256, 32
        %3279 = vbcast.lane.b32.xlu0 %v3261, %s3278
        %v3280 = vpop.permute.xlu0 %3279
        %s3282 = sor.u32 256, 40
        %3283 = vbcast.lane.b32.xlu0 %v3261, %s3282
        %v3284 = vpop.permute.xlu0 %3283
        %s3286 = sor.u32 256, 48
        %3287 = vbcast.lane.b32.xlu0 %v3261, %s3286
        %v3288 = vpop.permute.xlu0 %3287
        %s3290 = sor.u32 256, 56
        %3291 = vbcast.lane.b32.xlu0 %v3261, %s3290
        %v3292 = vpop.permute.xlu0 %3291
        %s3294 = sor.u32 256, 64
        %3295 = vbcast.lane.b32.xlu0 %v3261, %s3294
        %v3296 = vpop.permute.xlu0 %3295
        %s3298 = sor.u32 256, 72
        %3299 = vbcast.lane.b32.xlu0 %v3261, %s3298
        %v3300 = vpop.permute.xlu0 %3299
        %s3302 = sor.u32 256, 80
        %3303 = vbcast.lane.b32.xlu0 %v3261, %s3302
        %v3304 = vpop.permute.xlu0 %3303
        %s3306 = sor.u32 256, 88
        %3307 = vbcast.lane.b32.xlu0 %v3261, %s3306
        %v3308 = vpop.permute.xlu0 %3307
        %s3310 = sor.u32 256, 96
        %3311 = vbcast.lane.b32.xlu0 %v3261, %s3310
        %v3312 = vpop.permute.xlu0 %3311
        %s3314 = sor.u32 256, 104
        %3315 = vbcast.lane.b32.xlu0 %v3261, %s3314
        %v3316 = vpop.permute.xlu0 %3315
        %s3318 = sor.u32 256, 112
        %3319 = vbcast.lane.b32.xlu0 %v3261, %s3318
        %v3320 = vpop.permute.xlu0 %3319
        %s3322 = sor.u32 256, 120
        %3323 = vbcast.lane.b32.xlu0 %v3261, %s3322
        %v3324 = vpop.permute.xlu0 %3323
        %v3325 = vlaneseq
        %v3326 = vshrl.u32 %v3325, 7
        %v3327 = vsub.s32 2, %v3326
        %v3328 = vrot.slane %v3190, %v3327
        %3330 = vbcast.lane.b32.xlu0 %v3328, 256
        %v3331 = vpop.permute.xlu0 %3330
        %s3333 = sor.u32 256, 8
        %3334 = vbcast.lane.b32.xlu0 %v3328, %s3333
        %v3335 = vpop.permute.xlu0 %3334
        %s3337 = sor.u32 256, 16
        %3338 = vbcast.lane.b32.xlu0 %v3328, %s3337
        %v3339 = vpop.permute.xlu0 %3338
        %s3341 = sor.u32 256, 24
        %3342 = vbcast.lane.b32.xlu0 %v3328, %s3341
        %v3343 = vpop.permute.xlu0 %3342
        %s3345 = sor.u32 256, 32
        %3346 = vbcast.lane.b32.xlu0 %v3328, %s3345
        %v3347 = vpop.permute.xlu0 %3346
        %s3349 = sor.u32 256, 40
        %3350 = vbcast.lane.b32.xlu0 %v3328, %s3349
        %v3351 = vpop.permute.xlu0 %3350
        %s3353 = sor.u32 256, 48
        %3354 = vbcast.lane.b32.xlu0 %v3328, %s3353
        %v3355 = vpop.permute.xlu0 %3354
        %s3357 = sor.u32 256, 56
        %3358 = vbcast.lane.b32.xlu0 %v3328, %s3357
        %v3359 = vpop.permute.xlu0 %3358
        %s3361 = sor.u32 256, 64
        %3362 = vbcast.lane.b32.xlu0 %v3328, %s3361
        %v3363 = vpop.permute.xlu0 %3362
        %s3365 = sor.u32 256, 72
        %3366 = vbcast.lane.b32.xlu0 %v3328, %s3365
        %v3367 = vpop.permute.xlu0 %3366
        %s3369 = sor.u32 256, 80
        %3370 = vbcast.lane.b32.xlu0 %v3328, %s3369
        %v3371 = vpop.permute.xlu0 %3370
        %s3373 = sor.u32 256, 88
        %3374 = vbcast.lane.b32.xlu0 %v3328, %s3373
        %v3375 = vpop.permute.xlu0 %3374
        %s3377 = sor.u32 256, 96
        %3378 = vbcast.lane.b32.xlu0 %v3328, %s3377
        %v3379 = vpop.permute.xlu0 %3378
        %s3381 = sor.u32 256, 104
        %3382 = vbcast.lane.b32.xlu0 %v3328, %s3381
        %v3383 = vpop.permute.xlu0 %3382
        %s3385 = sor.u32 256, 112
        %3386 = vbcast.lane.b32.xlu0 %v3328, %s3385
        %v3387 = vpop.permute.xlu0 %3386
        %s3389 = sor.u32 256, 120
        %3390 = vbcast.lane.b32.xlu0 %v3328, %s3389
        %v3391 = vpop.permute.xlu0 %3390
        %v3392 = vlaneseq
        %v3393 = vshrl.u32 %v3392, 7
        %v3394 = vsub.s32 3, %v3393
        %v3395 = vrot.slane %v3190, %v3394
        %3397 = vbcast.lane.b32.xlu0 %v3395, 256
        %v3398 = vpop.permute.xlu0 %3397
        %s3400 = sor.u32 256, 8
        %3401 = vbcast.lane.b32.xlu0 %v3395, %s3400
        %v3402 = vpop.permute.xlu0 %3401
        %s3404 = sor.u32 256, 16
        %3405 = vbcast.lane.b32.xlu0 %v3395, %s3404
        %v3406 = vpop.permute.xlu0 %3405
        %s3408 = sor.u32 256, 24
        %3409 = vbcast.lane.b32.xlu0 %v3395, %s3408
        %v3410 = vpop.permute.xlu0 %3409
        %s3412 = sor.u32 256, 32
        %3413 = vbcast.lane.b32.xlu0 %v3395, %s3412
        %v3414 = vpop.permute.xlu0 %3413
        %s3416 = sor.u32 256, 40
        %3417 = vbcast.lane.b32.xlu0 %v3395, %s3416
        %v3418 = vpop.permute.xlu0 %3417
        %s3420 = sor.u32 256, 48
        %3421 = vbcast.lane.b32.xlu0 %v3395, %s3420
        %v3422 = vpop.permute.xlu0 %3421
        %s3424 = sor.u32 256, 56
        %3425 = vbcast.lane.b32.xlu0 %v3395, %s3424
        %v3426 = vpop.permute.xlu0 %3425
        %s3428 = sor.u32 256, 64
        %3429 = vbcast.lane.b32.xlu0 %v3395, %s3428
        %v3430 = vpop.permute.xlu0 %3429
        %s3432 = sor.u32 256, 72
        %3433 = vbcast.lane.b32.xlu0 %v3395, %s3432
        %v3434 = vpop.permute.xlu0 %3433
        %s3436 = sor.u32 256, 80
        %3437 = vbcast.lane.b32.xlu0 %v3395, %s3436
        %v3438 = vpop.permute.xlu0 %3437
        %s3440 = sor.u32 256, 88
        %3441 = vbcast.lane.b32.xlu0 %v3395, %s3440
        %v3442 = vpop.permute.xlu0 %3441
        %s3444 = sor.u32 256, 96
        %3445 = vbcast.lane.b32.xlu0 %v3395, %s3444
        %v3446 = vpop.permute.xlu0 %3445
        %s3448 = sor.u32 256, 104
        %3449 = vbcast.lane.b32.xlu0 %v3395, %s3448
        %v3450 = vpop.permute.xlu0 %3449
        %s3452 = sor.u32 256, 112
        %3453 = vbcast.lane.b32.xlu0 %v3395, %s3452
        %v3454 = vpop.permute.xlu0 %3453
        %s3456 = sor.u32 256, 120
        %3457 = vbcast.lane.b32.xlu0 %v3395, %s3456
        %v3458 = vpop.permute.xlu0 %3457
        %v3459 = vlaneseq
        %v3460 = vshrl.u32 %v3459, 7
        %v3461 = vsub.s32 4, %v3460
        %v3462 = vrot.slane %v3190, %v3461
        %3464 = vbcast.lane.b32.xlu0 %v3462, 256
        %v3465 = vpop.permute.xlu0 %3464
        %s3467 = sor.u32 256, 8
        %3468 = vbcast.lane.b32.xlu0 %v3462, %s3467
        %v3469 = vpop.permute.xlu0 %3468
        %s3471 = sor.u32 256, 16
        %3472 = vbcast.lane.b32.xlu0 %v3462, %s3471
        %v3473 = vpop.permute.xlu0 %3472
        %s3475 = sor.u32 256, 24
        %3476 = vbcast.lane.b32.xlu0 %v3462, %s3475
        %v3477 = vpop.permute.xlu0 %3476
        %s3479 = sor.u32 256, 32
        %3480 = vbcast.lane.b32.xlu0 %v3462, %s3479
        %v3481 = vpop.permute.xlu0 %3480
        %s3483 = sor.u32 256, 40
        %3484 = vbcast.lane.b32.xlu0 %v3462, %s3483
        %v3485 = vpop.permute.xlu0 %3484
        %s3487 = sor.u32 256, 48
        %3488 = vbcast.lane.b32.xlu0 %v3462, %s3487
        %v3489 = vpop.permute.xlu0 %3488
        %s3491 = sor.u32 256, 56
        %3492 = vbcast.lane.b32.xlu0 %v3462, %s3491
        %v3493 = vpop.permute.xlu0 %3492
        %s3495 = sor.u32 256, 64
        %3496 = vbcast.lane.b32.xlu0 %v3462, %s3495
        %v3497 = vpop.permute.xlu0 %3496
        %s3499 = sor.u32 256, 72
        %3500 = vbcast.lane.b32.xlu0 %v3462, %s3499
        %v3501 = vpop.permute.xlu0 %3500
        %s3503 = sor.u32 256, 80
        %3504 = vbcast.lane.b32.xlu0 %v3462, %s3503
        %v3505 = vpop.permute.xlu0 %3504
        %s3507 = sor.u32 256, 88
        %3508 = vbcast.lane.b32.xlu0 %v3462, %s3507
        %v3509 = vpop.permute.xlu0 %3508
        %s3511 = sor.u32 256, 96
        %3512 = vbcast.lane.b32.xlu0 %v3462, %s3511
        %v3513 = vpop.permute.xlu0 %3512
        %s3515 = sor.u32 256, 104
        %3516 = vbcast.lane.b32.xlu0 %v3462, %s3515
        %v3517 = vpop.permute.xlu0 %3516
        %s3519 = sor.u32 256, 112
        %3520 = vbcast.lane.b32.xlu0 %v3462, %s3519
        %v3521 = vpop.permute.xlu0 %3520
        %s3523 = sor.u32 256, 120
        %3524 = vbcast.lane.b32.xlu0 %v3462, %s3523
        %v3525 = vpop.permute.xlu0 %3524
        %v3526 = vlaneseq
        %v3527 = vshrl.u32 %v3526, 7
        %v3528 = vsub.s32 5, %v3527
        %v3529 = vrot.slane %v3190, %v3528
        %3531 = vbcast.lane.b32.xlu0 %v3529, 256
        %v3532 = vpop.permute.xlu0 %3531
        %s3534 = sor.u32 256, 8
        %3535 = vbcast.lane.b32.xlu0 %v3529, %s3534
        %v3536 = vpop.permute.xlu0 %3535
        %s3538 = sor.u32 256, 16
        %3539 = vbcast.lane.b32.xlu0 %v3529, %s3538
        %v3540 = vpop.permute.xlu0 %3539
        %s3542 = sor.u32 256, 24
        %3543 = vbcast.lane.b32.xlu0 %v3529, %s3542
        %v3544 = vpop.permute.xlu0 %3543
        %s3546 = sor.u32 256, 32
        %3547 = vbcast.lane.b32.xlu0 %v3529, %s3546
        %v3548 = vpop.permute.xlu0 %3547
        %s3550 = sor.u32 256, 40
        %3551 = vbcast.lane.b32.xlu0 %v3529, %s3550
        %v3552 = vpop.permute.xlu0 %3551
        %s3554 = sor.u32 256, 48
        %3555 = vbcast.lane.b32.xlu0 %v3529, %s3554
        %v3556 = vpop.permute.xlu0 %3555
        %s3558 = sor.u32 256, 56
        %3559 = vbcast.lane.b32.xlu0 %v3529, %s3558
        %v3560 = vpop.permute.xlu0 %3559
        %s3562 = sor.u32 256, 64
        %3563 = vbcast.lane.b32.xlu0 %v3529, %s3562
        %v3564 = vpop.permute.xlu0 %3563
        %s3566 = sor.u32 256, 72
        %3567 = vbcast.lane.b32.xlu0 %v3529, %s3566
        %v3568 = vpop.permute.xlu0 %3567
        %s3570 = sor.u32 256, 80
        %3571 = vbcast.lane.b32.xlu0 %v3529, %s3570
        %v3572 = vpop.permute.xlu0 %3571
        %s3574 = sor.u32 256, 88
        %3575 = vbcast.lane.b32.xlu0 %v3529, %s3574
        %v3576 = vpop.permute.xlu0 %3575
        %s3578 = sor.u32 256, 96
        %3579 = vbcast.lane.b32.xlu0 %v3529, %s3578
        %v3580 = vpop.permute.xlu0 %3579
        %s3582 = sor.u32 256, 104
        %3583 = vbcast.lane.b32.xlu0 %v3529, %s3582
        %v3584 = vpop.permute.xlu0 %3583
        %s3586 = sor.u32 256, 112
        %3587 = vbcast.lane.b32.xlu0 %v3529, %s3586
        %v3588 = vpop.permute.xlu0 %3587
        %s3590 = sor.u32 256, 120
        %3591 = vbcast.lane.b32.xlu0 %v3529, %s3590
        %v3592 = vpop.permute.xlu0 %3591
        %v3593 = vlaneseq
        %v3594 = vshrl.u32 %v3593, 7
        %v3595 = vsub.s32 6, %v3594
        %v3596 = vrot.slane %v3190, %v3595
        %3598 = vbcast.lane.b32.xlu0 %v3596, 256
        %v3599 = vpop.permute.xlu0 %3598
        %s3601 = sor.u32 256, 8
        %3602 = vbcast.lane.b32.xlu0 %v3596, %s3601
        %v3603 = vpop.permute.xlu0 %3602
        %s3605 = sor.u32 256, 16
        %3606 = vbcast.lane.b32.xlu0 %v3596, %s3605
        %v3607 = vpop.permute.xlu0 %3606
        %s3609 = sor.u32 256, 24
        %3610 = vbcast.lane.b32.xlu0 %v3596, %s3609
        %v3611 = vpop.permute.xlu0 %3610
        %s3613 = sor.u32 256, 32
        %3614 = vbcast.lane.b32.xlu0 %v3596, %s3613
        %v3615 = vpop.permute.xlu0 %3614
        %s3617 = sor.u32 256, 40
        %3618 = vbcast.lane.b32.xlu0 %v3596, %s3617
        %v3619 = vpop.permute.xlu0 %3618
        %s3621 = sor.u32 256, 48
        %3622 = vbcast.lane.b32.xlu0 %v3596, %s3621
        %v3623 = vpop.permute.xlu0 %3622
        %s3625 = sor.u32 256, 56
        %3626 = vbcast.lane.b32.xlu0 %v3596, %s3625
        %v3627 = vpop.permute.xlu0 %3626
        %s3629 = sor.u32 256, 64
        %3630 = vbcast.lane.b32.xlu0 %v3596, %s3629
        %v3631 = vpop.permute.xlu0 %3630
        %s3633 = sor.u32 256, 72
        %3634 = vbcast.lane.b32.xlu0 %v3596, %s3633
        %v3635 = vpop.permute.xlu0 %3634
        %s3637 = sor.u32 256, 80
        %3638 = vbcast.lane.b32.xlu0 %v3596, %s3637
        %v3639 = vpop.permute.xlu0 %3638
        %s3641 = sor.u32 256, 88
        %3642 = vbcast.lane.b32.xlu0 %v3596, %s3641
        %v3643 = vpop.permute.xlu0 %3642
        %s3645 = sor.u32 256, 96
        %3646 = vbcast.lane.b32.xlu0 %v3596, %s3645
        %v3647 = vpop.permute.xlu0 %3646
        %s3649 = sor.u32 256, 104
        %3650 = vbcast.lane.b32.xlu0 %v3596, %s3649
        %v3651 = vpop.permute.xlu0 %3650
        %s3653 = sor.u32 256, 112
        %3654 = vbcast.lane.b32.xlu0 %v3596, %s3653
        %v3655 = vpop.permute.xlu0 %3654
        %s3657 = sor.u32 256, 120
        %3658 = vbcast.lane.b32.xlu0 %v3596, %s3657
        %v3659 = vpop.permute.xlu0 %3658
        %v3660 = vlaneseq
        %v3661 = vshrl.u32 %v3660, 7
        %v3662 = vsub.s32 7, %v3661
        %v3663 = vrot.slane %v3190, %v3662
        %3665 = vbcast.lane.b32.xlu0 %v3663, 256
        %v3666 = vpop.permute.xlu0 %3665
        %s3668 = sor.u32 256, 8
        %3669 = vbcast.lane.b32.xlu0 %v3663, %s3668
        %v3670 = vpop.permute.xlu0 %3669
        %s3672 = sor.u32 256, 16
        %3673 = vbcast.lane.b32.xlu0 %v3663, %s3672
        %v3674 = vpop.permute.xlu0 %3673
        %s3676 = sor.u32 256, 24
        %3677 = vbcast.lane.b32.xlu0 %v3663, %s3676
        %v3678 = vpop.permute.xlu0 %3677
        %s3680 = sor.u32 256, 32
        %3681 = vbcast.lane.b32.xlu0 %v3663, %s3680
        %v3682 = vpop.permute.xlu0 %3681
        %s3684 = sor.u32 256, 40
        %3685 = vbcast.lane.b32.xlu0 %v3663, %s3684
        %v3686 = vpop.permute.xlu0 %3685
        %s3688 = sor.u32 256, 48
        %3689 = vbcast.lane.b32.xlu0 %v3663, %s3688
        %v3690 = vpop.permute.xlu0 %3689
        %s3692 = sor.u32 256, 56
        %3693 = vbcast.lane.b32.xlu0 %v3663, %s3692
        %v3694 = vpop.permute.xlu0 %3693
        %s3696 = sor.u32 256, 64
        %3697 = vbcast.lane.b32.xlu0 %v3663, %s3696
        %v3698 = vpop.permute.xlu0 %3697
        %s3700 = sor.u32 256, 72
        %3701 = vbcast.lane.b32.xlu0 %v3663, %s3700
        %v3702 = vpop.permute.xlu0 %3701
        %s3704 = sor.u32 256, 80
        %3705 = vbcast.lane.b32.xlu0 %v3663, %s3704
        %v3706 = vpop.permute.xlu0 %3705
        %s3708 = sor.u32 256, 88
        %3709 = vbcast.lane.b32.xlu0 %v3663, %s3708
        %v3710 = vpop.permute.xlu0 %3709
        %s3712 = sor.u32 256, 96
        %3713 = vbcast.lane.b32.xlu0 %v3663, %s3712
        %v3714 = vpop.permute.xlu0 %3713
        %s3716 = sor.u32 256, 104
        %3717 = vbcast.lane.b32.xlu0 %v3663, %s3716
        %v3718 = vpop.permute.xlu0 %3717
        %s3720 = sor.u32 256, 112
        %3721 = vbcast.lane.b32.xlu0 %v3663, %s3720
        %v3722 = vpop.permute.xlu0 %3721
        %s3724 = sor.u32 256, 120
        %3725 = vbcast.lane.b32.xlu0 %v3663, %s3724
        %v3726 = vpop.permute.xlu0 %3725
        %v3727 = vld [vmem:[%s588] sm:$0xff]
        %v3728 = vld [vmem:[%s588 + $0x8] sm:$0xff]
        %v3729 = vld [vmem:[%s588 + $0x10] sm:$0xff]
        %v3730 = vld [vmem:[%s588 + $0x18] sm:$0xff]
        %v3731 = vld [vmem:[%s588 + $0x20] sm:$0xff]
        %v3732 = vld [vmem:[%s588 + $0x28] sm:$0xff]
        %v3733 = vld [vmem:[%s588 + $0x30] sm:$0xff]
        %v3734 = vld [vmem:[%s588 + $0x38] sm:$0xff]
        %v3735 = vld [vmem:[%s588 + $0x40] sm:$0xff]
        %v3736 = vld [vmem:[%s588 + $0x48] sm:$0xff]
        %v3737 = vld [vmem:[%s588 + $0x50] sm:$0xff]
        %v3738 = vld [vmem:[%s588 + $0x58] sm:$0xff]
        %v3739 = vld [vmem:[%s588 + $0x60] sm:$0xff]
        %v3740 = vld [vmem:[%s588 + $0x68] sm:$0xff]
        %v3741 = vld [vmem:[%s588 + $0x70] sm:$0xff]
        %v3742 = vld [vmem:[%s588 + $0x78] sm:$0xff]
        %v3743 = vld [vmem:[%s588 + $0x80] sm:$0xff]
        %v3744 = vld [vmem:[%s588 + $0x88] sm:$0xff]
        %v3745 = vld [vmem:[%s588 + $0x90] sm:$0xff]
        %v3746 = vld [vmem:[%s588 + $0x98] sm:$0xff]
        %v3747 = vld [vmem:[%s588 + $0xa0] sm:$0xff]
        %v3748 = vld [vmem:[%s588 + $0xa8] sm:$0xff]
        %v3749 = vld [vmem:[%s588 + $0xb0] sm:$0xff]
        %v3750 = vld [vmem:[%s588 + $0xb8] sm:$0xff]
        %v3751 = vld [vmem:[%s588 + $0xc0] sm:$0xff]
        %v3752 = vld [vmem:[%s588 + $0xc8] sm:$0xff]
        %v3753 = vld [vmem:[%s588 + $0xd0] sm:$0xff]
        %v3754 = vld [vmem:[%s588 + $0xd8] sm:$0xff]
        %v3755 = vld [vmem:[%s588 + $0xe0] sm:$0xff]
        %v3756 = vld [vmem:[%s588 + $0xe8] sm:$0xff]
        %v3757 = vld [vmem:[%s588 + $0xf0] sm:$0xff]
        %v3758 = vld [vmem:[%s588 + $0xf8] sm:$0xff]
        %v3759 = vld [vmem:[%s588 + $0x100] sm:$0xff]
        %v3760 = vld [vmem:[%s588 + $0x108] sm:$0xff]
        %v3761 = vld [vmem:[%s588 + $0x110] sm:$0xff]
        %v3762 = vld [vmem:[%s588 + $0x118] sm:$0xff]
        %v3763 = vld [vmem:[%s588 + $0x120] sm:$0xff]
        %v3764 = vld [vmem:[%s588 + $0x128] sm:$0xff]
        %v3765 = vld [vmem:[%s588 + $0x130] sm:$0xff]
        %v3766 = vld [vmem:[%s588 + $0x138] sm:$0xff]
        %v3767 = vld [vmem:[%s588 + $0x140] sm:$0xff]
        %v3768 = vld [vmem:[%s588 + $0x148] sm:$0xff]
        %v3769 = vld [vmem:[%s588 + $0x150] sm:$0xff]
        %v3770 = vld [vmem:[%s588 + $0x158] sm:$0xff]
        %v3771 = vld [vmem:[%s588 + $0x160] sm:$0xff]
        %v3772 = vld [vmem:[%s588 + $0x168] sm:$0xff]
        %v3773 = vld [vmem:[%s588 + $0x170] sm:$0xff]
        %v3774 = vld [vmem:[%s588 + $0x178] sm:$0xff]
        %v3775 = vld [vmem:[%s588 + $0x180] sm:$0xff]
        %v3776 = vld [vmem:[%s588 + $0x188] sm:$0xff]
        %v3777 = vld [vmem:[%s588 + $0x190] sm:$0xff]
        %v3778 = vld [vmem:[%s588 + $0x198] sm:$0xff]
        %v3779 = vld [vmem:[%s588 + $0x1a0] sm:$0xff]
        %v3780 = vld [vmem:[%s588 + $0x1a8] sm:$0xff]
        %v3781 = vld [vmem:[%s588 + $0x1b0] sm:$0xff]
        %v3782 = vld [vmem:[%s588 + $0x1b8] sm:$0xff]
        %v3783 = vld [vmem:[%s588 + $0x1c0] sm:$0xff]
        %v3784 = vld [vmem:[%s588 + $0x1c8] sm:$0xff]
        %v3785 = vld [vmem:[%s588 + $0x1d0] sm:$0xff]
        %v3786 = vld [vmem:[%s588 + $0x1d8] sm:$0xff]
        %v3787 = vld [vmem:[%s588 + $0x1e0] sm:$0xff]
        %v3788 = vld [vmem:[%s588 + $0x1e8] sm:$0xff]
        %v3789 = vld [vmem:[%s588 + $0x1f0] sm:$0xff]
        %v3790 = vld [vmem:[%s588 + $0x1f8] sm:$0xff]
        %v3791 = vld [vmem:[%s588 + $0x200] sm:$0xff]
        %v3792 = vld [vmem:[%s588 + $0x208] sm:$0xff]
        %v3793 = vld [vmem:[%s588 + $0x210] sm:$0xff]
        %v3794 = vld [vmem:[%s588 + $0x218] sm:$0xff]
        %v3795 = vld [vmem:[%s588 + $0x220] sm:$0xff]
        %v3796 = vld [vmem:[%s588 + $0x228] sm:$0xff]
        %v3797 = vld [vmem:[%s588 + $0x230] sm:$0xff]
        %v3798 = vld [vmem:[%s588 + $0x238] sm:$0xff]
        %v3799 = vld [vmem:[%s588 + $0x240] sm:$0xff]
        %v3800 = vld [vmem:[%s588 + $0x248] sm:$0xff]
        %v3801 = vld [vmem:[%s588 + $0x250] sm:$0xff]
        %v3802 = vld [vmem:[%s588 + $0x258] sm:$0xff]
        %v3803 = vld [vmem:[%s588 + $0x260] sm:$0xff]
        %v3804 = vld [vmem:[%s588 + $0x268] sm:$0xff]
        %v3805 = vld [vmem:[%s588 + $0x270] sm:$0xff]
        %v3806 = vld [vmem:[%s588 + $0x278] sm:$0xff]
        %v3807 = vld [vmem:[%s588 + $0x280] sm:$0xff]
        %v3808 = vld [vmem:[%s588 + $0x288] sm:$0xff]
        %v3809 = vld [vmem:[%s588 + $0x290] sm:$0xff]
        %v3810 = vld [vmem:[%s588 + $0x298] sm:$0xff]
        %v3811 = vld [vmem:[%s588 + $0x2a0] sm:$0xff]
        %v3812 = vld [vmem:[%s588 + $0x2a8] sm:$0xff]
        %v3813 = vld [vmem:[%s588 + $0x2b0] sm:$0xff]
        %v3814 = vld [vmem:[%s588 + $0x2b8] sm:$0xff]
        %v3815 = vld [vmem:[%s588 + $0x2c0] sm:$0xff]
        %v3816 = vld [vmem:[%s588 + $0x2c8] sm:$0xff]
        %v3817 = vld [vmem:[%s588 + $0x2d0] sm:$0xff]
        %v3818 = vld [vmem:[%s588 + $0x2d8] sm:$0xff]
        %v3819 = vld [vmem:[%s588 + $0x2e0] sm:$0xff]
        %v3820 = vld [vmem:[%s588 + $0x2e8] sm:$0xff]
        %v3821 = vld [vmem:[%s588 + $0x2f0] sm:$0xff]
        %v3822 = vld [vmem:[%s588 + $0x2f8] sm:$0xff]
        %v3823 = vld [vmem:[%s588 + $0x300] sm:$0xff]
        %v3824 = vld [vmem:[%s588 + $0x308] sm:$0xff]
        %v3825 = vld [vmem:[%s588 + $0x310] sm:$0xff]
        %v3826 = vld [vmem:[%s588 + $0x318] sm:$0xff]
        %v3827 = vld [vmem:[%s588 + $0x320] sm:$0xff]
        %v3828 = vld [vmem:[%s588 + $0x328] sm:$0xff]
        %v3829 = vld [vmem:[%s588 + $0x330] sm:$0xff]
        %v3830 = vld [vmem:[%s588 + $0x338] sm:$0xff]
        %v3831 = vld [vmem:[%s588 + $0x340] sm:$0xff]
        %v3832 = vld [vmem:[%s588 + $0x348] sm:$0xff]
        %v3833 = vld [vmem:[%s588 + $0x350] sm:$0xff]
        %v3834 = vld [vmem:[%s588 + $0x358] sm:$0xff]
        %v3835 = vld [vmem:[%s588 + $0x360] sm:$0xff]
        %v3836 = vld [vmem:[%s588 + $0x368] sm:$0xff]
        %v3837 = vld [vmem:[%s588 + $0x370] sm:$0xff]
        %v3838 = vld [vmem:[%s588 + $0x378] sm:$0xff]
        %v3839 = vld [vmem:[%s588 + $0x380] sm:$0xff]
        %v3840 = vld [vmem:[%s588 + $0x388] sm:$0xff]
        %v3841 = vld [vmem:[%s588 + $0x390] sm:$0xff]
        %v3842 = vld [vmem:[%s588 + $0x398] sm:$0xff]
        %v3843 = vld [vmem:[%s588 + $0x3a0] sm:$0xff]
        %v3844 = vld [vmem:[%s588 + $0x3a8] sm:$0xff]
        %v3845 = vld [vmem:[%s588 + $0x3b0] sm:$0xff]
        %v3846 = vld [vmem:[%s588 + $0x3b8] sm:$0xff]
        %v3847 = vld [vmem:[%s588 + $0x3c0] sm:$0xff]
        %v3848 = vld [vmem:[%s588 + $0x3c8] sm:$0xff]
        %v3849 = vld [vmem:[%s588 + $0x3d0] sm:$0xff]
        %v3850 = vld [vmem:[%s588 + $0x3d8] sm:$0xff]
        %v3851 = vld [vmem:[%s588 + $0x3e0] sm:$0xff]
        %v3852 = vld [vmem:[%s588 + $0x3e8] sm:$0xff]
        %v3853 = vld [vmem:[%s588 + $0x3f0] sm:$0xff]
        %v3854 = vld [vmem:[%s588 + $0x3f8] sm:$0xff]
        %v3855 = vmul.f32 %v3197, %v3727
        %v3856 = vmul.f32 %v3201, %v3728
        %v3857 = vmul.f32 %v3205, %v3729
        %v3858 = vmul.f32 %v3209, %v3730
        %v3859 = vmul.f32 %v3213, %v3731
        %v3860 = vmul.f32 %v3217, %v3732
        %v3861 = vmul.f32 %v3221, %v3733
        %v3862 = vmul.f32 %v3225, %v3734
        %v3863 = vmul.f32 %v3229, %v3735
        %v3864 = vmul.f32 %v3233, %v3736
        %v3865 = vmul.f32 %v3237, %v3737
        %v3866 = vmul.f32 %v3241, %v3738
        %v3867 = vmul.f32 %v3245, %v3739
        %v3868 = vmul.f32 %v3249, %v3740
        %v3869 = vmul.f32 %v3253, %v3741
        %v3870 = vmul.f32 %v3257, %v3742
        %v3871 = vmul.f32 %v3264, %v3743
        %v3872 = vmul.f32 %v3268, %v3744
        %v3873 = vmul.f32 %v3272, %v3745
        %v3874 = vmul.f32 %v3276, %v3746
        %v3875 = vmul.f32 %v3280, %v3747
        %v3876 = vmul.f32 %v3284, %v3748
        %v3877 = vmul.f32 %v3288, %v3749
        %v3878 = vmul.f32 %v3292, %v3750
        %v3879 = vmul.f32 %v3296, %v3751
        %v3880 = vmul.f32 %v3300, %v3752
        %v3881 = vmul.f32 %v3304, %v3753
        %v3882 = vmul.f32 %v3308, %v3754
        %v3883 = vmul.f32 %v3312, %v3755
        %v3884 = vmul.f32 %v3316, %v3756
        %v3885 = vmul.f32 %v3320, %v3757
        %v3886 = vmul.f32 %v3324, %v3758
        %v3887 = vmul.f32 %v3331, %v3759
        %v3888 = vmul.f32 %v3335, %v3760
        %v3889 = vmul.f32 %v3339, %v3761
        %v3890 = vmul.f32 %v3343, %v3762
        %v3891 = vmul.f32 %v3347, %v3763
        %v3892 = vmul.f32 %v3351, %v3764
        %v3893 = vmul.f32 %v3355, %v3765
        %v3894 = vmul.f32 %v3359, %v3766
        %v3895 = vmul.f32 %v3363, %v3767
        %v3896 = vmul.f32 %v3367, %v3768
        %v3897 = vmul.f32 %v3371, %v3769
        %v3898 = vmul.f32 %v3375, %v3770
        %v3899 = vmul.f32 %v3379, %v3771
        %v3900 = vmul.f32 %v3383, %v3772
        %v3901 = vmul.f32 %v3387, %v3773
        %v3902 = vmul.f32 %v3391, %v3774
        %v3903 = vmul.f32 %v3398, %v3775
        %v3904 = vmul.f32 %v3402, %v3776
        %v3905 = vmul.f32 %v3406, %v3777
        %v3906 = vmul.f32 %v3410, %v3778
        %v3907 = vmul.f32 %v3414, %v3779
        %v3908 = vmul.f32 %v3418, %v3780
        %v3909 = vmul.f32 %v3422, %v3781
        %v3910 = vmul.f32 %v3426, %v3782
        %v3911 = vmul.f32 %v3430, %v3783
        %v3912 = vmul.f32 %v3434, %v3784
        %v3913 = vmul.f32 %v3438, %v3785
        %v3914 = vmul.f32 %v3442, %v3786
        %v3915 = vmul.f32 %v3446, %v3787
        %v3916 = vmul.f32 %v3450, %v3788
        %v3917 = vmul.f32 %v3454, %v3789
        %v3918 = vmul.f32 %v3458, %v3790
        %v3919 = vmul.f32 %v3465, %v3791
        %v3920 = vmul.f32 %v3469, %v3792
        %v3921 = vmul.f32 %v3473, %v3793
        %v3922 = vmul.f32 %v3477, %v3794
        %v3923 = vmul.f32 %v3481, %v3795
        %v3924 = vmul.f32 %v3485, %v3796
        %v3925 = vmul.f32 %v3489, %v3797
        %v3926 = vmul.f32 %v3493, %v3798
        %v3927 = vmul.f32 %v3497, %v3799
        %v3928 = vmul.f32 %v3501, %v3800
        %v3929 = vmul.f32 %v3505, %v3801
        %v3930 = vmul.f32 %v3509, %v3802
        %v3931 = vmul.f32 %v3513, %v3803
        %v3932 = vmul.f32 %v3517, %v3804
        %v3933 = vmul.f32 %v3521, %v3805
        %v3934 = vmul.f32 %v3525, %v3806
        %v3935 = vmul.f32 %v3532, %v3807
        %v3936 = vmul.f32 %v3536, %v3808
        %v3937 = vmul.f32 %v3540, %v3809
        %v3938 = vmul.f32 %v3544, %v3810
        %v3939 = vmul.f32 %v3548, %v3811
        %v3940 = vmul.f32 %v3552, %v3812
        %v3941 = vmul.f32 %v3556, %v3813
        %v3942 = vmul.f32 %v3560, %v3814
        %v3943 = vmul.f32 %v3564, %v3815
        %v3944 = vmul.f32 %v3568, %v3816
        %v3945 = vmul.f32 %v3572, %v3817
        %v3946 = vmul.f32 %v3576, %v3818
        %v3947 = vmul.f32 %v3580, %v3819
        %v3948 = vmul.f32 %v3584, %v3820
        %v3949 = vmul.f32 %v3588, %v3821
        %v3950 = vmul.f32 %v3592, %v3822
        %v3951 = vmul.f32 %v3599, %v3823
        %v3952 = vmul.f32 %v3603, %v3824
        %v3953 = vmul.f32 %v3607, %v3825
        %v3954 = vmul.f32 %v3611, %v3826
        %v3955 = vmul.f32 %v3615, %v3827
        %v3956 = vmul.f32 %v3619, %v3828
        %v3957 = vmul.f32 %v3623, %v3829
        %v3958 = vmul.f32 %v3627, %v3830
        %v3959 = vmul.f32 %v3631, %v3831
        %v3960 = vmul.f32 %v3635, %v3832
        %v3961 = vmul.f32 %v3639, %v3833
        %v3962 = vmul.f32 %v3643, %v3834
        %v3963 = vmul.f32 %v3647, %v3835
        %v3964 = vmul.f32 %v3651, %v3836
        %v3965 = vmul.f32 %v3655, %v3837
        %v3966 = vmul.f32 %v3659, %v3838
        %v3967 = vmul.f32 %v3666, %v3839
        %v3968 = vmul.f32 %v3670, %v3840
        %v3969 = vmul.f32 %v3674, %v3841
        %v3970 = vmul.f32 %v3678, %v3842
        %v3971 = vmul.f32 %v3682, %v3843
        %v3972 = vmul.f32 %v3686, %v3844
        %v3973 = vmul.f32 %v3690, %v3845
        %v3974 = vmul.f32 %v3694, %v3846
        %v3975 = vmul.f32 %v3698, %v3847
        %v3976 = vmul.f32 %v3702, %v3848
        %v3977 = vmul.f32 %v3706, %v3849
        %v3978 = vmul.f32 %v3710, %v3850
        %v3979 = vmul.f32 %v3714, %v3851
        %v3980 = vmul.f32 %v3718, %v3852
        %v3981 = vmul.f32 %v3722, %v3853
        %v3982 = vmul.f32 %v3726, %v3854
        %v3983 = vsel %vm1167, %v3855, 0.0
        %v3984 = vsel %vm1167, %v3856, 0.0
        %v3985 = vadd.f32 %v3983, %v3984
        %v3986 = vsel %vm1167, %v3857, 0.0
        %v3987 = vadd.f32 %v3985, %v3986
        %v3988 = vsel %vm1167, %v3858, 0.0
        %v3989 = vadd.f32 %v3987, %v3988
        %v3990 = vsel %vm1167, %v3859, 0.0
        %v3991 = vadd.f32 %v3989, %v3990
        %v3992 = vsel %vm1167, %v3860, 0.0
        %v3993 = vadd.f32 %v3991, %v3992
        %v3994 = vsel %vm1167, %v3861, 0.0
        %v3995 = vadd.f32 %v3993, %v3994
        %v3996 = vsel %vm1167, %v3862, 0.0
        %v3997 = vadd.f32 %v3995, %v3996
        %v3998 = vsel %vm1167, %v3863, 0.0
        %v3999 = vadd.f32 %v3997, %v3998
        %v4000 = vsel %vm1167, %v3864, 0.0
        %v4001 = vadd.f32 %v3999, %v4000
        %v4002 = vsel %vm1167, %v3865, 0.0
        %v4003 = vadd.f32 %v4001, %v4002
        %v4004 = vsel %vm1167, %v3866, 0.0
        %v4005 = vadd.f32 %v4003, %v4004
        %v4006 = vsel %vm1167, %v3867, 0.0
        %v4007 = vadd.f32 %v4005, %v4006
        %v4008 = vsel %vm1167, %v3868, 0.0
        %v4009 = vadd.f32 %v4007, %v4008
        %v4010 = vsel %vm1167, %v3869, 0.0
        %v4011 = vadd.f32 %v4009, %v4010
        %v4012 = vsel %vm1167, %v3870, 0.0
        %v4013 = vadd.f32 %v4011, %v4012
        %v4014 = vrot.slane %v4013, 4
        %v4015 = vadd.f32 %v4013, %v4014
        %v4016 = vrot.slane %v4015, 2
        %v4017 = vadd.f32 %v4015, %v4016
        %v4018 = vrot.slane %v4017, 1
        %v4019 = vadd.f32 %v4017, %v4018
        %v4020 = vsel %vm1167, %v3871, 0.0
        %v4021 = vsel %vm1167, %v3872, 0.0
        %v4022 = vadd.f32 %v4020, %v4021
        %v4023 = vsel %vm1167, %v3873, 0.0
        %v4024 = vadd.f32 %v4022, %v4023
        %v4025 = vsel %vm1167, %v3874, 0.0
        %v4026 = vadd.f32 %v4024, %v4025
        %v4027 = vsel %vm1167, %v3875, 0.0
        %v4028 = vadd.f32 %v4026, %v4027
        %v4029 = vsel %vm1167, %v3876, 0.0
        %v4030 = vadd.f32 %v4028, %v4029
        %v4031 = vsel %vm1167, %v3877, 0.0
        %v4032 = vadd.f32 %v4030, %v4031
        %v4033 = vsel %vm1167, %v3878, 0.0
        %v4034 = vadd.f32 %v4032, %v4033
        %v4035 = vsel %vm1167, %v3879, 0.0
        %v4036 = vadd.f32 %v4034, %v4035
        %v4037 = vsel %vm1167, %v3880, 0.0
        %v4038 = vadd.f32 %v4036, %v4037
        %v4039 = vsel %vm1167, %v3881, 0.0
        %v4040 = vadd.f32 %v4038, %v4039
        %v4041 = vsel %vm1167, %v3882, 0.0
        %v4042 = vadd.f32 %v4040, %v4041
        %v4043 = vsel %vm1167, %v3883, 0.0
        %v4044 = vadd.f32 %v4042, %v4043
        %v4045 = vsel %vm1167, %v3884, 0.0
        %v4046 = vadd.f32 %v4044, %v4045
        %v4047 = vsel %vm1167, %v3885, 0.0
        %v4048 = vadd.f32 %v4046, %v4047
        %v4049 = vsel %vm1167, %v3886, 0.0
        %v4050 = vadd.f32 %v4048, %v4049
        %v4051 = vrot.slane %v4050, 4
        %v4052 = vadd.f32 %v4050, %v4051
        %v4053 = vrot.slane %v4052, 2
        %v4054 = vadd.f32 %v4052, %v4053
        %v4055 = vrot.slane %v4054, 1
        %v4056 = vadd.f32 %v4054, %v4055
        %v4057 = vsel %vm1167, %v3887, 0.0
        %v4058 = vsel %vm1167, %v3888, 0.0
        %v4059 = vadd.f32 %v4057, %v4058
        %v4060 = vsel %vm1167, %v3889, 0.0
        %v4061 = vadd.f32 %v4059, %v4060
        %v4062 = vsel %vm1167, %v3890, 0.0
        %v4063 = vadd.f32 %v4061, %v4062
        %v4064 = vsel %vm1167, %v3891, 0.0
        %v4065 = vadd.f32 %v4063, %v4064
        %v4066 = vsel %vm1167, %v3892, 0.0
        %v4067 = vadd.f32 %v4065, %v4066
        %v4068 = vsel %vm1167, %v3893, 0.0
        %v4069 = vadd.f32 %v4067, %v4068
        %v4070 = vsel %vm1167, %v3894, 0.0
        %v4071 = vadd.f32 %v4069, %v4070
        %v4072 = vsel %vm1167, %v3895, 0.0
        %v4073 = vadd.f32 %v4071, %v4072
        %v4074 = vsel %vm1167, %v3896, 0.0
        %v4075 = vadd.f32 %v4073, %v4074
        %v4076 = vsel %vm1167, %v3897, 0.0
        %v4077 = vadd.f32 %v4075, %v4076
        %v4078 = vsel %vm1167, %v3898, 0.0
        %v4079 = vadd.f32 %v4077, %v4078
        %v4080 = vsel %vm1167, %v3899, 0.0
        %v4081 = vadd.f32 %v4079, %v4080
        %v4082 = vsel %vm1167, %v3900, 0.0
        %v4083 = vadd.f32 %v4081, %v4082
        %v4084 = vsel %vm1167, %v3901, 0.0
        %v4085 = vadd.f32 %v4083, %v4084
        %v4086 = vsel %vm1167, %v3902, 0.0
        %v4087 = vadd.f32 %v4085, %v4086
        %v4088 = vrot.slane %v4087, 4
        %v4089 = vadd.f32 %v4087, %v4088
        %v4090 = vrot.slane %v4089, 2
        %v4091 = vadd.f32 %v4089, %v4090
        %v4092 = vrot.slane %v4091, 1
        %v4093 = vadd.f32 %v4091, %v4092
        %v4094 = vsel %vm1167, %v3903, 0.0
        %v4095 = vsel %vm1167, %v3904, 0.0
        %v4096 = vadd.f32 %v4094, %v4095
        %v4097 = vsel %vm1167, %v3905, 0.0
        %v4098 = vadd.f32 %v4096, %v4097
        %v4099 = vsel %vm1167, %v3906, 0.0
        %v4100 = vadd.f32 %v4098, %v4099
        %v4101 = vsel %vm1167, %v3907, 0.0
        %v4102 = vadd.f32 %v4100, %v4101
        %v4103 = vsel %vm1167, %v3908, 0.0
        %v4104 = vadd.f32 %v4102, %v4103
        %v4105 = vsel %vm1167, %v3909, 0.0
        %v4106 = vadd.f32 %v4104, %v4105
        %v4107 = vsel %vm1167, %v3910, 0.0
        %v4108 = vadd.f32 %v4106, %v4107
        %v4109 = vsel %vm1167, %v3911, 0.0
        %v4110 = vadd.f32 %v4108, %v4109
        %v4111 = vsel %vm1167, %v3912, 0.0
        %v4112 = vadd.f32 %v4110, %v4111
        %v4113 = vsel %vm1167, %v3913, 0.0
        %v4114 = vadd.f32 %v4112, %v4113
        %v4115 = vsel %vm1167, %v3914, 0.0
        %v4116 = vadd.f32 %v4114, %v4115
        %v4117 = vsel %vm1167, %v3915, 0.0
        %v4118 = vadd.f32 %v4116, %v4117
        %v4119 = vsel %vm1167, %v3916, 0.0
        %v4120 = vadd.f32 %v4118, %v4119
        %v4121 = vsel %vm1167, %v3917, 0.0
        %v4122 = vadd.f32 %v4120, %v4121
        %v4123 = vsel %vm1167, %v3918, 0.0
        %v4124 = vadd.f32 %v4122, %v4123
        %v4125 = vrot.slane %v4124, 4
        %v4126 = vadd.f32 %v4124, %v4125
        %v4127 = vrot.slane %v4126, 2
        %v4128 = vadd.f32 %v4126, %v4127
        %v4129 = vrot.slane %v4128, 1
        %v4130 = vadd.f32 %v4128, %v4129
        %v4131 = vsel %vm1167, %v3919, 0.0
        %v4132 = vsel %vm1167, %v3920, 0.0
        %v4133 = vadd.f32 %v4131, %v4132
        %v4134 = vsel %vm1167, %v3921, 0.0
        %v4135 = vadd.f32 %v4133, %v4134
        %v4136 = vsel %vm1167, %v3922, 0.0
        %v4137 = vadd.f32 %v4135, %v4136
        %v4138 = vsel %vm1167, %v3923, 0.0
        %v4139 = vadd.f32 %v4137, %v4138
        %v4140 = vsel %vm1167, %v3924, 0.0
        %v4141 = vadd.f32 %v4139, %v4140
        %v4142 = vsel %vm1167, %v3925, 0.0
        %v4143 = vadd.f32 %v4141, %v4142
        %v4144 = vsel %vm1167, %v3926, 0.0
        %v4145 = vadd.f32 %v4143, %v4144
        %v4146 = vsel %vm1167, %v3927, 0.0
        %v4147 = vadd.f32 %v4145, %v4146
        %v4148 = vsel %vm1167, %v3928, 0.0
        %v4149 = vadd.f32 %v4147, %v4148
        %v4150 = vsel %vm1167, %v3929, 0.0
        %v4151 = vadd.f32 %v4149, %v4150
        %v4152 = vsel %vm1167, %v3930, 0.0
        %v4153 = vadd.f32 %v4151, %v4152
        %v4154 = vsel %vm1167, %v3931, 0.0
        %v4155 = vadd.f32 %v4153, %v4154
        %v4156 = vsel %vm1167, %v3932, 0.0
        %v4157 = vadd.f32 %v4155, %v4156
        %v4158 = vsel %vm1167, %v3933, 0.0
        %v4159 = vadd.f32 %v4157, %v4158
        %v4160 = vsel %vm1167, %v3934, 0.0
        %v4161 = vadd.f32 %v4159, %v4160
        %v4162 = vrot.slane %v4161, 4
        %v4163 = vadd.f32 %v4161, %v4162
        %v4164 = vrot.slane %v4163, 2
        %v4165 = vadd.f32 %v4163, %v4164
        %v4166 = vrot.slane %v4165, 1
        %v4167 = vadd.f32 %v4165, %v4166
        %v4168 = vsel %vm1167, %v3935, 0.0
        %v4169 = vsel %vm1167, %v3936, 0.0
        %v4170 = vadd.f32 %v4168, %v4169
        %v4171 = vsel %vm1167, %v3937, 0.0
        %v4172 = vadd.f32 %v4170, %v4171
        %v4173 = vsel %vm1167, %v3938, 0.0
        %v4174 = vadd.f32 %v4172, %v4173
        %v4175 = vsel %vm1167, %v3939, 0.0
        %v4176 = vadd.f32 %v4174, %v4175
        %v4177 = vsel %vm1167, %v3940, 0.0
        %v4178 = vadd.f32 %v4176, %v4177
        %v4179 = vsel %vm1167, %v3941, 0.0
        %v4180 = vadd.f32 %v4178, %v4179
        %v4181 = vsel %vm1167, %v3942, 0.0
        %v4182 = vadd.f32 %v4180, %v4181
        %v4183 = vsel %vm1167, %v3943, 0.0
        %v4184 = vadd.f32 %v4182, %v4183
        %v4185 = vsel %vm1167, %v3944, 0.0
        %v4186 = vadd.f32 %v4184, %v4185
        %v4187 = vsel %vm1167, %v3945, 0.0
        %v4188 = vadd.f32 %v4186, %v4187
        %v4189 = vsel %vm1167, %v3946, 0.0
        %v4190 = vadd.f32 %v4188, %v4189
        %v4191 = vsel %vm1167, %v3947, 0.0
        %v4192 = vadd.f32 %v4190, %v4191
        %v4193 = vsel %vm1167, %v3948, 0.0
        %v4194 = vadd.f32 %v4192, %v4193
        %v4195 = vsel %vm1167, %v3949, 0.0
        %v4196 = vadd.f32 %v4194, %v4195
        %v4197 = vsel %vm1167, %v3950, 0.0
        %v4198 = vadd.f32 %v4196, %v4197
        %v4199 = vrot.slane %v4198, 4
        %v4200 = vadd.f32 %v4198, %v4199
        %v4201 = vrot.slane %v4200, 2
        %v4202 = vadd.f32 %v4200, %v4201
        %v4203 = vrot.slane %v4202, 1
        %v4204 = vadd.f32 %v4202, %v4203
        %v4205 = vsel %vm1167, %v3951, 0.0
        %v4206 = vsel %vm1167, %v3952, 0.0
        %v4207 = vadd.f32 %v4205, %v4206
        %v4208 = vsel %vm1167, %v3953, 0.0
        %v4209 = vadd.f32 %v4207, %v4208
        %v4210 = vsel %vm1167, %v3954, 0.0
        %v4211 = vadd.f32 %v4209, %v4210
        %v4212 = vsel %vm1167, %v3955, 0.0
        %v4213 = vadd.f32 %v4211, %v4212
        %v4214 = vsel %vm1167, %v3956, 0.0
        %v4215 = vadd.f32 %v4213, %v4214
        %v4216 = vsel %vm1167, %v3957, 0.0
        %v4217 = vadd.f32 %v4215, %v4216
        %v4218 = vsel %vm1167, %v3958, 0.0
        %v4219 = vadd.f32 %v4217, %v4218
        %v4220 = vsel %vm1167, %v3959, 0.0
        %v4221 = vadd.f32 %v4219, %v4220
        %v4222 = vsel %vm1167, %v3960, 0.0
        %v4223 = vadd.f32 %v4221, %v4222
        %v4224 = vsel %vm1167, %v3961, 0.0
        %v4225 = vadd.f32 %v4223, %v4224
        %v4226 = vsel %vm1167, %v3962, 0.0
        %v4227 = vadd.f32 %v4225, %v4226
        %v4228 = vsel %vm1167, %v3963, 0.0
        %v4229 = vadd.f32 %v4227, %v4228
        %v4230 = vsel %vm1167, %v3964, 0.0
        %v4231 = vadd.f32 %v4229, %v4230
        %v4232 = vsel %vm1167, %v3965, 0.0
        %v4233 = vadd.f32 %v4231, %v4232
        %v4234 = vsel %vm1167, %v3966, 0.0
        %v4235 = vadd.f32 %v4233, %v4234
        %v4236 = vrot.slane %v4235, 4
        %v4237 = vadd.f32 %v4235, %v4236
        %v4238 = vrot.slane %v4237, 2
        %v4239 = vadd.f32 %v4237, %v4238
        %v4240 = vrot.slane %v4239, 1
        %v4241 = vadd.f32 %v4239, %v4240
        %v4242 = vsel %vm1167, %v3967, 0.0
        %v4243 = vsel %vm1167, %v3968, 0.0
        %v4244 = vadd.f32 %v4242, %v4243
        %v4245 = vsel %vm1167, %v3969, 0.0
        %v4246 = vadd.f32 %v4244, %v4245
        %v4247 = vsel %vm1167, %v3970, 0.0
        %v4248 = vadd.f32 %v4246, %v4247
        %v4249 = vsel %vm1167, %v3971, 0.0
        %v4250 = vadd.f32 %v4248, %v4249
        %v4251 = vsel %vm1167, %v3972, 0.0
        %v4252 = vadd.f32 %v4250, %v4251
        %v4253 = vsel %vm1167, %v3973, 0.0
        %v4254 = vadd.f32 %v4252, %v4253
        %v4255 = vsel %vm1167, %v3974, 0.0
        %v4256 = vadd.f32 %v4254, %v4255
        %v4257 = vsel %vm1167, %v3975, 0.0
        %v4258 = vadd.f32 %v4256, %v4257
        %v4259 = vsel %vm1167, %v3976, 0.0
        %v4260 = vadd.f32 %v4258, %v4259
        %v4261 = vsel %vm1167, %v3977, 0.0
        %v4262 = vadd.f32 %v4260, %v4261
        %v4263 = vsel %vm1167, %v3978, 0.0
        %v4264 = vadd.f32 %v4262, %v4263
        %v4265 = vsel %vm1167, %v3979, 0.0
        %v4266 = vadd.f32 %v4264, %v4265
        %v4267 = vsel %vm1167, %v3980, 0.0
        %v4268 = vadd.f32 %v4266, %v4267
        %v4269 = vsel %vm1167, %v3981, 0.0
        %v4270 = vadd.f32 %v4268, %v4269
        %v4271 = vsel %vm1167, %v3982, 0.0
        %v4272 = vadd.f32 %v4270, %v4271
        %v4273 = vrot.slane %v4272, 4
        %v4274 = vadd.f32 %v4272, %v4273
        %v4275 = vrot.slane %v4274, 2
        %v4276 = vadd.f32 %v4274, %v4275
        %v4277 = vrot.slane %v4276, 1
        %v4278 = vadd.f32 %v4276, %v4277
        %v4279 = vxor.u32 %v1238, 2147483648
        %v4280 = vmul.f32 %v4279, 1.442695
        %v4281 = vpow.pop %v4280
        %v4282 = vadd.f32 %v4281, 1.0
        %v4283 = vrcp.pop %v4282
        %v4284 = vmul.f32 1.0, %v4283
        %v4293 = vsel %vm3166, %v4056, %v4019
        %v4294 = vsel %vm3168, %v4093, %v4293
        %v4295 = vsel %vm3170, %v4130, %v4294
        %v4296 = vsel %vm3172, %v4167, %v4295
        %v4297 = vsel %vm3174, %v4204, %v4296
        %v4298 = vsel %vm3176, %v4241, %v4297
        %v4299 = vsel %vm3178, %v4278, %v4298
        %4300 = vrot.lane.b32.xlu0 %v4299, 32
        %v4301 = vpop.permute.xlu0 %4300
        %v4303 = vmul.f32 %v4284, %v4301
        %v4304 = vld [vmem:[%s596] sm:$0xff]
        %v4305 = vsel %vm1167, %v4304, %v4303
        %v4306 = vld [vmem:[%s8] sm:$0xff]
        %v4307 = vld [vmem:[%s8 + $0x8] sm:$0xff]
        %v4308 = vld [vmem:[%s8 + $0x10] sm:$0xff]
        %v4309 = vld [vmem:[%s8 + $0x18] sm:$0xff]
        %v4310 = vld [vmem:[%s8 + $0x20] sm:$0xff]
        %v4311 = vld [vmem:[%s8 + $0x28] sm:$0xff]
        %v4312 = vld [vmem:[%s8 + $0x30] sm:$0xff]
        %v4313 = vld [vmem:[%s8 + $0x38] sm:$0xff]
        %v4314 = vld [vmem:[%s9] sm:$0x1]
        %v4316 = vlaneseq
        %v4317 = vshrl.u32 %v4316, 7
        %v4318 = vsub.s32 0, %v4317
        %v4319 = vrot.slane %v4314, %v4318
        %vm4321 = vcmask 523264
        %v4323 = vsel %vm4321, %v4305, 0
        %4325 = vmatprep.subr.mxu0 0.0
        %4326 = vmatpush1.msra.mxu0 0.0
        %4327 = vmatprep.subr.mxu0 0.0
        %4328 = vmatpush1.msra.mxu0 0.0
        %4329 = vmatprep.subr.mxu0 0.0
        %4330 = vmatpush1.msra.mxu0 0.0
        %4331 = vmatprep.subr.mxu0 0.0
        %4332 = vmatpush1.msra.mxu0 0.0
        %4333 = vmatprep.subr.mxu0 0.0
        %4334 = vmatpush1.msra.mxu0 0.0
        %4335 = vmatprep.subr.mxu0 0.0
        %4336 = vmatpush1.msra.mxu0 0.0
        %4337 = vmatprep.subr.mxu0 0.0
        %4338 = vmatpush1.msra.mxu0 0.0
        %4339 = vmatprep.subr.mxu0 0.0
        %4340 = vmatpush1.msra.mxu0 0.0
        %4341 = vmatprep.subr.mxu0 0.0
        %4342 = vmatpush1.msra.mxu0 %v4313
        %4343 = vmatprep.subr.mxu0 0.0
        %4344 = vmatpush1.msra.mxu0 %v4312
        %4345 = vmatprep.subr.mxu0 0.0
        %4346 = vmatpush1.msra.mxu0 %v4311
        %4347 = vmatprep.subr.mxu0 0.0
        %4348 = vmatpush1.msra.mxu0 %v4310
        %4349 = vmatprep.subr.mxu0 0.0
        %4350 = vmatpush1.msra.mxu0 %v4309
        %4351 = vmatprep.subr.mxu0 0.0
        %4352 = vmatpush1.msra.mxu0 %v4308
        %4353 = vmatprep.subr.mxu0 0.0
        %4354 = vmatpush1.msra.mxu0 %v4307
        %4355 = vmatprep.subr.mxu0 0.0
        %4356 = vmatpush1.msra.mxu0 %v4306
        %4357 = vmatprep.subr.mxu0 0.0
        %4358 = vmatpush2.msra.mxu0 0.0
        %4359 = vmatprep.subr.mxu0 0.0
        %4360 = vmatpush2.msra.mxu0 0.0
        %4361 = vmatprep.subr.mxu0 0.0
        %4362 = vmatpush2.msra.mxu0 0.0
        %4363 = vmatprep.subr.mxu0 0.0
        %4364 = vmatpush2.msra.mxu0 0.0
        %4365 = vmatprep.subr.mxu0 0.0
        %4366 = vmatpush2.msra.mxu0 0.0
        %4367 = vmatprep.subr.mxu0 0.0
        %4368 = vmatpush2.msra.mxu0 0.0
        %4369 = vmatprep.subr.mxu0 0.0
        %4370 = vmatpush2.msra.mxu0 0.0
        %4371 = vmatprep.subr.mxu0 0.0
        %4372 = vmatpush2.msra.mxu0 0.0
        %4373 = vmatprep.subr.mxu0 0.0
        %4374 = vmatpush2.msra.mxu0 0.0
        %4375 = vmatprep.subr.mxu0 0.0
        %4376 = vmatpush2.msra.mxu0 0.0
        %4377 = vmatprep.subr.mxu0 0.0
        %4378 = vmatpush2.msra.mxu0 0.0
        %4379 = vmatprep.subr.mxu0 0.0
        %4380 = vmatpush2.msra.mxu0 0.0
        %4381 = vmatprep.subr.mxu0 0.0
        %4382 = vmatpush2.msra.mxu0 0.0
        %4383 = vmatprep.subr.mxu0 0.0
        %4384 = vmatpush2.msra.mxu0 0.0
        %4385 = vmatprep.subr.mxu0 0.0
        %4386 = vmatpush2.msra.mxu0 0.0
        %4387 = vmatprep.subr.mxu0 0.0
        %4388 = vmatpush2.msra.mxu0 0.0
        %4389 = vmatprep.mubr.f32.mxu0 0.0
        %4390 = vmatmul.mubr.f32.gmra.mxu0 %v4323
        %v4391 = vpop.f32.mrf.mxu0
        %v4392 = vadd.f32 %v4319, %v4391
        %v4393 = vpop.f32.mrf.mxu0
        %4394 = vdwg.mxu0
        %4396 = vrot.lane.b32.xlu0 %v1238, 64
        %v4397 = vpop.permute.xlu0 %4396
        %4398 = vrot.lane.b32.xlu0 %v1240, 64
        %v4399 = vpop.permute.xlu0 %4398
        %v4400 = vsel %vm4321, %v4397, %v4399
        %v4402 = vadd.f32 %v4392, %v4400
        %v4403 = vxor.u32 %v4402, 2147483648
        %v4404 = vmul.f32 %v4403, 1.442695
        %v4405 = vpow.pop %v4404
        %v4406 = vadd.f32 %v4405, 1.0
        %v4407 = vrcp.pop %v4406
        %v4408 = vmul.f32 1.0, %v4407
        %v4409 = vtanh.pop %v4402
        %4411 = vrot.lane.b32.xlu0 %v1146, 32
        %v4412 = vpop.permute.xlu0 %4411
        %v4414 = vmul.f32 %v4408, %v4412
        %4416 = vrot.lane.b32.xlu0 %v4409, 64
        %v4417 = vpop.permute.xlu0 %4416
        %v4419 = vmul.f32 %v4408, %v4417
        %4421 = vrot.lane.b32.xlu0 %v4419, 32
        %v4422 = vpop.permute.xlu0 %4421
        %v4424 = vadd.f32 %v4414, %v4422
        %v4425 = vtanh.pop %v4424
        %4427 = vrot.lane.b32.xlu0 %v4425, 64
        %v4428 = vpop.permute.xlu0 %4427
        %v4430 = vmul.f32 %v4408, %v4428
        %v4431 = vld [vmem:[%s10] sm:$0xff]
        %v4432 = vld [vmem:[%s10 + $0x8] sm:$0xff]
        %v4433 = vld [vmem:[%s10 + $0x10] sm:$0xff]
        %v4434 = vld [vmem:[%s10 + $0x18] sm:$0xff]
        %v4435 = vld [vmem:[%s11] sm:$0x1]
        %v4437 = vlaneseq
        %v4438 = vshrl.u32 %v4437, 7
        %v4439 = vsub.s32 0, %v4438
        %v4440 = vrot.slane %v4435, %v4439
        %4443 = vrot.lane.b32.xlu0 %v4430, 32
        %v4444 = vpop.permute.xlu0 %4443
        %v4445 = vsel %vm1167, %v4444, 0
        %4447 = vmatprep.subr.mxu0 0.0
        %4448 = vmatpush1.msra.mxu0 0.0
        %4449 = vmatprep.subr.mxu0 0.0
        %4450 = vmatpush1.msra.mxu0 0.0
        %4451 = vmatprep.subr.mxu0 0.0
        %4452 = vmatpush1.msra.mxu0 0.0
        %4453 = vmatprep.subr.mxu0 0.0
        %4454 = vmatpush1.msra.mxu0 0.0
        %4455 = vmatprep.subr.mxu0 0.0
        %4456 = vmatpush1.msra.mxu0 0.0
        %4457 = vmatprep.subr.mxu0 0.0
        %4458 = vmatpush1.msra.mxu0 0.0
        %4459 = vmatprep.subr.mxu0 0.0
        %4460 = vmatpush1.msra.mxu0 0.0
        %4461 = vmatprep.subr.mxu0 0.0
        %4462 = vmatpush1.msra.mxu0 0.0
        %4463 = vmatprep.subr.mxu0 0.0
        %4464 = vmatpush1.msra.mxu0 0.0
        %4465 = vmatprep.subr.mxu0 0.0
        %4466 = vmatpush1.msra.mxu0 0.0
        %4467 = vmatprep.subr.mxu0 0.0
        %4468 = vmatpush1.msra.mxu0 0.0
        %4469 = vmatprep.subr.mxu0 0.0
        %4470 = vmatpush1.msra.mxu0 0.0
        %4471 = vmatprep.subr.mxu0 0.0
        %4472 = vmatpush1.msra.mxu0 %v4434
        %4473 = vmatprep.subr.mxu0 0.0
        %4474 = vmatpush1.msra.mxu0 %v4433
        %4475 = vmatprep.subr.mxu0 0.0
        %4476 = vmatpush1.msra.mxu0 %v4432
        %4477 = vmatprep.subr.mxu0 0.0
        %4478 = vmatpush1.msra.mxu0 %v4431
        %4479 = vmatprep.subr.mxu0 0.0
        %4480 = vmatpush2.msra.mxu0 0.0
        %4481 = vmatprep.subr.mxu0 0.0
        %4482 = vmatpush2.msra.mxu0 0.0
        %4483 = vmatprep.subr.mxu0 0.0
        %4484 = vmatpush2.msra.mxu0 0.0
        %4485 = vmatprep.subr.mxu0 0.0
        %4486 = vmatpush2.msra.mxu0 0.0
        %4487 = vmatprep.subr.mxu0 0.0
        %4488 = vmatpush2.msra.mxu0 0.0
        %4489 = vmatprep.subr.mxu0 0.0
        %4490 = vmatpush2.msra.mxu0 0.0
        %4491 = vmatprep.subr.mxu0 0.0
        %4492 = vmatpush2.msra.mxu0 0.0
        %4493 = vmatprep.subr.mxu0 0.0
        %4494 = vmatpush2.msra.mxu0 0.0
        %4495 = vmatprep.subr.mxu0 0.0
        %4496 = vmatpush2.msra.mxu0 0.0
        %4497 = vmatprep.subr.mxu0 0.0
        %4498 = vmatpush2.msra.mxu0 0.0
        %4499 = vmatprep.subr.mxu0 0.0
        %4500 = vmatpush2.msra.mxu0 0.0
        %4501 = vmatprep.subr.mxu0 0.0
        %4502 = vmatpush2.msra.mxu0 0.0
        %4503 = vmatprep.subr.mxu0 0.0
        %4504 = vmatpush2.msra.mxu0 0.0
        %4505 = vmatprep.subr.mxu0 0.0
        %4506 = vmatpush2.msra.mxu0 0.0
        %4507 = vmatprep.subr.mxu0 0.0
        %4508 = vmatpush2.msra.mxu0 0.0
        %4509 = vmatprep.subr.mxu0 0.0
        %4510 = vmatpush2.msra.mxu0 0.0
        %4511 = vmatprep.mubr.f32.mxu0 0.0
        %4512 = vmatmul.mubr.f32.gmra.mxu0 %v4445
        %v4513 = vpop.f32.mrf.mxu0
        %v4514 = vadd.f32 %v4440, %v4513
        %v4515 = vpop.f32.mrf.mxu0
        %4516 = vdwg.mxu0
        %v4517 = vld [vmem:[%s575] sm:$0xff]
        %v4518 = vstv %s40
        %vm4519 = vcmp.gt.s32.totalorder %v4517, %v4518
        %v4520 = vsel %vm4519, 1, 0
        %4521 = vset.pattern.permute.xlu0 0
        %4522 = vperm.xlu0 %4521, %v4520
        %v4523 = vpop.permute.xlu0 %4522
        %vm4524 = vcmp.eq.s32.totalorder %v4523, 1
        %4525 = vrot.lane.b32.xlu0 %v1145, 96
        %v4526 = vpop.permute.xlu0 %4525
        %v4528 = vsel %vm4524, %v4430, %v4526
        %4530 = vrot.lane.b32.xlu0 %v4528, 32
        %v4531 = vpop.permute.xlu0 %4530
        %4533 = vst.msk [vmem:[#allocation2] sm:$0xff] %vm1167, %v4531
        %v4534 = vsel %vm4524, %v4424, %v4412
        %4536 = vrot.lane.b32.xlu0 %v4534, 96
        %v4537 = vpop.permute.xlu0 %4536
        %4539 = vst.msk [vmem:[#allocation3] sm:$0xff] %vm1167, %v4537
        %v4540 = vsel %vm4524, %v4514, 0.0
        %4541 = vst [vmem:[%s564] sm:$0xff] %v4540
        %v4542 = vsel %vm4524, %v3190, 0.0
        %4543 = vst [vmem:[%s571] sm:$0xff] %v4542
        %s4544 = sand.u32 %s373, 1
        %s4545 = scalar_lea.sflag [#allocation6], %s4544
        %s4546 = sand.u32 %s373, 1
        %s4547 = smul.addr %s4546, 8
        %s4548 = scalar_lea.vmem [#allocation5], %s4547
        %s4549 = sand.u32 %s401, 1
        %s4550 = scalar_lea.sflag [#allocation8], %s4549
        %s4551 = sand.u32 %s401, 1
        %s4552 = smul.addr %s4551, 8
        %s4553 = scalar_lea.vmem [#allocation7], %s4552
        // Predicated region
        $region81: #{tpu_custom_call.1} parent=75 // pred_check
          %p4554 = pneg %p383
        $region82: #{tpu_custom_call.1} parent=75 // pred_check_branch
          %4556 = sbr.rel (%p4554) target = $region84
        $region83: #{tpu_custom_call.1} parent=75 // pred_region
          %s4558 = ssub.s32 128, 128
          %4559 = vsyncadd %s4545, %s4558
          %s4560 = sadd.s32 %s39, %s40
          %s4561 = smul.addr %s4560, 128
          %s4562 = scalar_lea.hbm %s14, %s4561
          %s4564 = sshll.u32 %s4548, 4
          %s4565 = int_to_ptr.vmem [resolvable:$true] %s4564
          %4567 = dma.vmem_to_hbm [thread:$0]  %s4565, 128, %s4562, %s4545
        $region84: #{tpu_custom_call.1} parent=75 // pred_fallthru
          _
        // Predicated region
        $region85: #{tpu_custom_call.1} parent=75 // pred_check
          %p4568 = pneg %p411
        $region86: #{tpu_custom_call.1} parent=75 // pred_check_branch
          %4570 = sbr.rel (%p4568) target = $region88
        $region87: #{tpu_custom_call.1} parent=75 // pred_region
          %s4572 = ssub.s32 128, 128
          %4573 = vsyncadd %s4550, %s4572
          %s4574 = sadd.s32 %s39, %s40
          %s4575 = smul.addr %s4574, 128
          %s4576 = scalar_lea.hbm %s15, %s4575
          %s4578 = sshll.u32 %s4553, 4
          %s4579 = int_to_ptr.vmem [resolvable:$true] %s4578
          %4581 = dma.vmem_to_hbm [thread:$0]  %s4579, 128, %s4576, %s4550
        $region88: #{tpu_custom_call.1} parent=75 // pred_fallthru
          _
      $region76: #{tpu_custom_call.1} parent=5 // pred_fallthru
        _
      %p4582 = scmp.le.s32.totalorder 2, %s30
      // Predicated region
      $region89: #{tpu_custom_call.1} parent=5 // pred_check
        %p4583 = pneg %p4582
      $region90: #{tpu_custom_call.1} parent=5 // pred_check_branch
        %4585 = sbr.rel (%p4583) target = $region92
      $region91: #{tpu_custom_call.1} parent=5 // pred_region
        %s4586 = ssub.s32 %s30, 2
        // Predicated region
        $region93: #{tpu_custom_call.1} parent=91 // pred_check
          %p4587 = pneg %p389
        $region94: #{tpu_custom_call.1} parent=91 // pred_check_branch
          %4589 = sbr.rel (%p4587) target = $region96
        $region95: #{tpu_custom_call.1} parent=91 // pred_region
          %s4590 = sand.u32 %s374, 1
          %s4591 = scalar_lea.sflag [#allocation6], %s4590
          %s4592 = sand.u32 %s374, 1
          %s4593 = smul.addr %s4592, 8
          %s4594 = scalar_lea.vmem [#allocation5], %s4593
          %4595 = dma.done %s4591, 128
        $region96: #{tpu_custom_call.1} parent=91 // pred_fallthru
          _
        // Predicated region
        $region97: #{tpu_custom_call.1} parent=91 // pred_check
          %p4596 = pneg %p417
        $region98: #{tpu_custom_call.1} parent=91 // pred_check_branch
          %4598 = sbr.rel (%p4596) target = $region100
        $region99: #{tpu_custom_call.1} parent=91 // pred_region
          %s4599 = sand.u32 %s402, 1
          %s4600 = scalar_lea.sflag [#allocation8], %s4599
          %s4601 = sand.u32 %s402, 1
          %s4602 = smul.addr %s4601, 8
          %s4603 = scalar_lea.vmem [#allocation7], %s4602
          %4604 = dma.done %s4600, 128
        $region100: #{tpu_custom_call.1} parent=91 // pred_fallthru
          _
      $region92: #{tpu_custom_call.1} parent=5 // pred_fallthru
        _
    $region6: #{tpu_custom_call.1} parent=1 // loop_footer
      %s34 = sadd.s32 1, %s30
    $region7: #{tpu_custom_call.1} parent=1 // loop_footer_branch
      %29 = sbr.rel target = $region3
    $region8: #{tpu_custom_call.1} parent=1 // loop_exit
      _
    %4605 = vsyncpa [#allocation6], 1
    %s4606 = scalar_lea.sflag [#allocation6], 1
    %4607 = vsyncpa %s4606, 1
    %4608 = vsyncpa [#allocation8], 1
    %s4609 = scalar_lea.sflag [#allocation8], 1
    %4610 = vsyncpa %s4609, 1

</llo_original>
